<compile_context>
chip_gen: v6e
topology: v6e:2x2x1
jax: 0.10.0
libtpu: 0.0.40
codegen_flags: <defaults>
</compile_context>

<pallas_src>
import functools

import jax
import jax.numpy as jnp
from jax.experimental import pallas as pl
from jax.experimental.pallas import tpu as pltpu

NCLASS = 2
NCLASS_PAD = 128        # lane-dense classifier output; real classes live in [:, :2]
NEG_BIG = -1e30         # bias of padded classes -> exp() == 0 -> exact 2-class softmax


# ---------------------------------------------------------------------------
# Fused kernel: graph build (streamed over bank chunks) + 4x GraphConv + head
# ---------------------------------------------------------------------------
def _fused_kernel(topk, feat_ref, neigh_ref, bank_ref,
                  w1, b1, w2, b2, w3, b3, w4, b4,
                  wc1, bc1, alpha, wc2, bc2,
                  out_ref, adj_acc):
    c = pl.program_id(1)
    n_chunks = pl.num_programs(1)
    Bb, n, D = feat_ref.shape
    Nc = bank_ref.shape[0]
    rows = Bb * n

    @pl.when(c == 0)
    def _():
        adj_acc[...] = jnp.zeros_like(adj_acc)

    feat = feat_ref[...]                                          # (Bb, n, D) f32

    # ---- similarity of the Bb*n query nodes vs this chunk of the bank -------
    A = jax.lax.dot_general(
        feat.reshape(rows, D).astype(jnp.bfloat16),
        bank_ref[...].astype(jnp.bfloat16),
        (((1,), (1,)), ((), ())),
        preferred_element_type=jnp.float32)                       # (rows, Nc)
    A3 = A.reshape(Bb, n, Nc)

    # ---- in-kernel top-k mask: keep column j iff j is in this row's knn list -
    ids = neigh_ref[...]                                          # (Bb, n, topk) i32
    col = jax.lax.broadcasted_iota(jnp.int32, (1, 1, Nc), 2) + c * Nc
    keep = ids[:, :, 0:1] == col
    for k in range(1, topk):                                      # topk VPU compares
        keep = jnp.logical_or(keep, ids[:, :, k:k + 1] == col)
    tmp = jnp.where(keep, A3, 0.0)                                # (Bb, n, Nc)
    gt = (tmp > 0.0).astype(jnp.bfloat16)

    # adj[b, r, s] += sum_j tmp[b, r, j] * (tmp[b, s, j] > 0)
    adj_acc[...] += jnp.einsum('brj,bsj->brs',
                               tmp.astype(jnp.bfloat16), gt,
                               preferred_element_type=jnp.float32)

    # ---- last bank chunk: softmax(adj) -> 4 GCN layers -> classifier ---------
    @pl.when(c == n_chunks - 1)
    def _():
        a = adj_acc[...]
        e = jnp.exp(a - jnp.max(a, axis=-1, keepdims=True))
        adj = e * pl.reciprocal(jnp.sum(e, axis=-1, keepdims=True), approx=True)
        adj_b = adj.astype(jnp.bfloat16)

        x = feat - feat[:, 0:1, :]                                # center on node 0

        def graph_conv(x, w_ref, b_ref):
            d_in = x.shape[-1]
            agg = jnp.einsum('brs,bsd->brd', adj_b, x.astype(jnp.bfloat16),
                             preferred_element_type=jnp.float32)  # (Bb, n, d_in)
            x2 = x.reshape(rows, d_in)
            a2 = agg.reshape(rows, d_in)
            if d_in % 128 == 0:
                # lane-aligned: one K = 2*d_in matmul on the concatenated acts.
                cat = jnp.concatenate([x2, a2], axis=-1).astype(jnp.bfloat16)
                out = jax.lax.dot_general(
                    cat, w_ref[...].astype(jnp.bfloat16),
                    (((1,), (0,)), ((), ())),
                    preferred_element_type=jnp.float32)
            else:
                w = w_ref[...].astype(jnp.bfloat16)
                out = (jax.lax.dot_general(
                           x2.astype(jnp.bfloat16), w[:d_in],
                           (((1,), (0,)), ((), ())),
                           preferred_element_type=jnp.float32)
                       + jax.lax.dot_general(
                           a2.astype(jnp.bfloat16), w[d_in:],
                           (((1,), (0,)), ((), ())),
                           preferred_element_type=jnp.float32))
            out = jnp.maximum(out + b_ref[...], 0.0)
            return out.reshape(Bb, n, -1)

        x = graph_conv(x, w1, b1)
        x = graph_conv(x, w2, b2)
        x = graph_conv(x, w3, b3)
        x = graph_conv(x, w4, b4)

        # classifier: Linear(256,256) -> PReLU(256) -> Linear(256, 2) -> softmax
        x2 = x.reshape(rows, x.shape[-1])
        h = jax.lax.dot_general(
            x2.astype(jnp.bfloat16), wc1[...].astype(jnp.bfloat16),
            (((1,), (0,)), ((), ())),
            preferred_element_type=jnp.float32) + bc1[...]
        h = jnp.where(h >= 0.0, h, alpha[...] * h)                # PReLU
        logits = jax.lax.dot_general(
            h.astype(jnp.bfloat16), wc2[...].astype(jnp.bfloat16),
            (((1,), (0,)), ((), ())),
            preferred_element_type=jnp.float32) + bc2[...]        # (rows, 128) padded
        le = jnp.exp(logits - jnp.max(logits, axis=-1, keepdims=True))
        out_ref[...] = le * pl.reciprocal(jnp.sum(le, axis=-1, keepdims=True),
                                          approx=True)


# ---------------------------------------------------------------------------
# Tiling helpers
# ---------------------------------------------------------------------------
def _pick_batch_block(B, cap=8):
    for bb in range(min(B, cap), 0, -1):
        if B % bb == 0:
            return bb
    return 1


def _pick_bank_chunk(N, cap=2048):
    if N <= cap:
        return N
    for nc in range(cap - cap % 128, 0, -128):     # prefer lane-aligned chunks
        if N % nc == 0:
            return nc
    for nc in range(cap - cap % 8, 0, -8):
        if N % nc == 0:
            return nc
    return N


# ---------------------------------------------------------------------------
# Full forward (domain=True, output_feat=True path of Point_Level_GCN.forward)
# ---------------------------------------------------------------------------
def point_level_gcn_forward(features, ori_knn_neighbor, ori_0, params, topk=10):
    """
    features:         (N, D)   full feature bank
    ori_knn_neighbor: (B, n)   int32 node ids per query
    ori_0:            (N, >=topk) int32 knn table over the feature bank
    returns:          (B, n, 2) softmax class probabilities
    """
    features = features.astype(jnp.float32)
    N, D = features.shape
    B, n = ori_knn_neighbor.shape

    # --- tiny glue gathers (node features + their knn column ids) ------------
    feat_gathered = features[ori_knn_neighbor]                       # (B, n, D)
    neigh = ori_0[ori_knn_neighbor][:, :, :topk].astype(jnp.int32)   # (B, n, topk)

    (w1, b1) = params["conv1"]
    (w2, b2) = params["conv2"]
    (w3, b3) = params["conv3"]
    (w4, b4) = params["conv4"]
    wc1, bc1, alpha, wc2, bc2 = params["classifier"]

    # lane-dense classifier head: pad 2 classes -> 128 lanes; padded bias is
    # -1e30 so padded lanes vanish in the softmax. Sliced back to 2 below.
    wc2p = jnp.pad(wc2, ((0, 0), (0, NCLASS_PAD - NCLASS)))
    bc2p = jnp.pad(bc2, ((0, 0), (0, NCLASS_PAD - NCLASS)), constant_values=NEG_BIG)

    Bb = _pick_batch_block(B)
    Nc = _pick_bank_chunk(N)
    grid = (B // Bb, N // Nc)

    def full(shape):
        return pl.BlockSpec(shape, lambda b, c: (0,) * len(shape))

    pred_pad = pl.pallas_call(
        functools.partial(_fused_kernel, topk),
        out_shape=jax.ShapeDtypeStruct((B * n, NCLASS_PAD), jnp.float32),
        grid=grid,
        in_specs=[
            pl.BlockSpec((Bb, n, D), lambda b, c: (b, 0, 0)),        # node feats
            pl.BlockSpec((Bb, n, topk), lambda b, c: (b, 0, 0)),     # knn ids
            pl.BlockSpec((Nc, D), lambda b, c: (c, 0)),              # bank chunk
            full(w1.shape), full(b1.shape), full(w2.shape), full(b2.shape),
            full(w3.shape), full(b3.shape), full(w4.shape), full(b4.shape),
            full(wc1.shape), full(bc1.shape), full(alpha.shape),
            full(wc2p.shape), full(bc2p.shape),
        ],
        out_specs=pl.BlockSpec((Bb * n, NCLASS_PAD), lambda b, c: (b, 0)),
        scratch_shapes=[pltpu.VMEM((Bb, n, n), jnp.float32)],        # adj accumulator
        compiler_params=pltpu.CompilerParams(
            dimension_semantics=("parallel", "arbitrary"),
            vmem_limit_bytes=48 * 1024 * 1024),
    )(feat_gathered, neigh, features,
      w1, b1, w2, b2, w3, b3, w4, b4, wc1, bc1, alpha, wc2p, bc2p)

    return pred_pad[:, :NCLASS].reshape(B, n, NCLASS)
    # TODO(synk): return_loss branch (masked CrossEntropyLoss over gt_weights)
    # is training-only bookkeeping and is not implemented here.


# ---------------------------------------------------------------------------
# Deterministic parameter construction (matches module __init__ shapes;
# GraphConv weights stored pre-concatenated as (2*d_in, d_out)).
# ---------------------------------------------------------------------------
def make_params(key, feature_dim, nhid):
    dims = [(feature_dim, nhid), (nhid, 512), (512, 256), (256, 256)]
    params = {}
    keys = jax.random.split(key, len(dims) + 2)
    for i, (d_in, d_out) in enumerate(dims):
        w = jax.random.normal(keys[i], (2 * d_in, d_out), jnp.float32) * 0.05
        b = jnp.zeros((1, d_out), jnp.float32)
        params[f"conv{i + 1}"] = (w, b)
    w1 = jax.random.normal(keys[-2], (256, 256), jnp.float32) * 0.05
    b1 = jnp.zeros((1, 256), jnp.float32)
    alpha = jnp.full((1, 256), 0.25, jnp.float32)    # PReLU default init
    w2 = jax.random.normal(keys[-1], (256, NCLASS), jnp.float32) * 0.05
    b2 = jnp.zeros((1, NCLASS), jnp.float32)
    params["classifier"] = (w1, b1, alpha, w2, b2)
    return params


if __name__ == "__main__":
    key = jax.random.PRNGKey(0)
    k_feat, k_knn, k_ori, k_param = jax.random.split(key, 4)

    # Small, module-consistent shapes.
    N_total = 64        # size of the feature bank
    feature_dim = 32
    nhid = 32
    B = 2               # len(indexes)
    neighbor_num = 16   # nodes per query graph
    topk = 10

    features = jax.random.normal(k_feat, (N_total, feature_dim), jnp.float32)
    ori_knn_neighbor = jax.random.randint(
        k_knn, (B, neighbor_num), 0, N_total, dtype=jnp.int32)
    ori_0 = jax.random.randint(
        k_ori, (N_total, topk), 0, N_total, dtype=jnp.int32)

    params = make_params(k_param, feature_dim, nhid)

    pred = point_level_gcn_forward(features, ori_knn_neighbor, ori_0,
                                   params, topk=topk)
    jax.block_until_ready(pred)
    assert pred.shape == (B, neighbor_num, 2)
    assert bool(jnp.all(jnp.isfinite(pred)))
    print("KERNEL_OK")
</pallas_src>

<mosaic_0001>
module attributes {stable_mosaic.version = 11 : i64} {
  func.func @_fused_kernel(%arg0: i32, %arg1: i32, %arg2: memref<2x16x32xf32, #tpu.memory_space<vmem>>, %arg3: memref<2x16x10xi32, #tpu.memory_space<vmem>>, %arg4: memref<64x32xf32, #tpu.memory_space<vmem>>, %arg5: memref<64x32xf32, #tpu.memory_space<vmem>>, %arg6: memref<1x32xf32, #tpu.memory_space<vmem>>, %arg7: memref<64x512xf32, #tpu.memory_space<vmem>>, %arg8: memref<1x512xf32, #tpu.memory_space<vmem>>, %arg9: memref<1024x256xf32, #tpu.memory_space<vmem>>, %arg10: memref<1x256xf32, #tpu.memory_space<vmem>>, %arg11: memref<512x256xf32, #tpu.memory_space<vmem>>, %arg12: memref<1x256xf32, #tpu.memory_space<vmem>>, %arg13: memref<256x256xf32, #tpu.memory_space<vmem>>, %arg14: memref<1x256xf32, #tpu.memory_space<vmem>>, %arg15: memref<1x256xf32, #tpu.memory_space<vmem>>, %arg16: memref<256x128xf32, #tpu.memory_space<vmem>>, %arg17: memref<1x128xf32, #tpu.memory_space<vmem>>, %arg18: memref<32x128xf32, #tpu.memory_space<vmem>>, %arg19: memref<2x16x16xf32, #tpu.memory_space<vmem>>) attributes {dimension_semantics = [#tpu.dimension_semantics<parallel>, #tpu.dimension_semantics<arbitrary>], iteration_bounds = array<i64: 1, 1>, scalar_prefetch = 0 : i64, scratch_operands = 1 : i64, tpu.core_type = #tpu.core_type<tc>, window_params = [{transform_indices = @transform_0, window_bounds = array<i64: 2, 16, 32>}, {transform_indices = @transform_1, window_bounds = array<i64: 2, 16, 10>}, {transform_indices = @transform_2, window_bounds = array<i64: 64, 32>}, {pipeline_mode = #tpu.pipeline_mode<synchronous>, transform_indices = @transform_3, window_bounds = array<i64: 64, 32>}, {pipeline_mode = #tpu.pipeline_mode<synchronous>, transform_indices = @transform_4, window_bounds = array<i64: 1, 32>}, {pipeline_mode = #tpu.pipeline_mode<synchronous>, transform_indices = @transform_5, window_bounds = array<i64: 64, 512>}, {pipeline_mode = #tpu.pipeline_mode<synchronous>, transform_indices = @transform_6, window_bounds = array<i64: 1, 512>}, {pipeline_mode = #tpu.pipeline_mode<synchronous>, transform_indices = @transform_7, window_bounds = array<i64: 1024, 256>}, {pipeline_mode = #tpu.pipeline_mode<synchronous>, transform_indices = @transform_8, window_bounds = array<i64: 1, 256>}, {pipeline_mode = #tpu.pipeline_mode<synchronous>, transform_indices = @transform_9, window_bounds = array<i64: 512, 256>}, {pipeline_mode = #tpu.pipeline_mode<synchronous>, transform_indices = @transform_10, window_bounds = array<i64: 1, 256>}, {pipeline_mode = #tpu.pipeline_mode<synchronous>, transform_indices = @transform_11, window_bounds = array<i64: 256, 256>}, {pipeline_mode = #tpu.pipeline_mode<synchronous>, transform_indices = @transform_12, window_bounds = array<i64: 1, 256>}, {pipeline_mode = #tpu.pipeline_mode<synchronous>, transform_indices = @transform_13, window_bounds = array<i64: 1, 256>}, {pipeline_mode = #tpu.pipeline_mode<synchronous>, transform_indices = @transform_14, window_bounds = array<i64: 256, 128>}, {pipeline_mode = #tpu.pipeline_mode<synchronous>, transform_indices = @transform_15, window_bounds = array<i64: 1, 128>}, {transform_indices = @transform_16, window_bounds = array<i64: 32, 128>}]} {
    %c0_i32 = arith.constant 0 : i32
    %0 = arith.cmpi eq, %arg1, %c0_i32 : i32
    %1 = arith.extui %0 : i1 to i32
    %c0_i32_0 = arith.constant 0 : i32
    %2 = arith.cmpi ne, %1, %c0_i32_0 : i32
    scf.if %2 {
      %cst_19 = arith.constant 0.000000e+00 : f32
      %79 = vector.broadcast %cst_19 : f32 to vector<2x16x16xf32>
      %c0_20 = arith.constant 0 : index
      %c0_21 = arith.constant 0 : index
      %c0_22 = arith.constant 0 : index
      %80 = vector.load %arg19[%c0_20, %c0_21, %c0_22] : memref<2x16x16xf32, #tpu.memory_space<vmem>>, vector<2x16x16xf32>
      tpu.vector_store %arg19[%c0_20, %c0_21, %c0_22], %79 {strides = array<i32>} : memref<2x16x16xf32, #tpu.memory_space<vmem>>, vector<2x16x16xf32>,
    } else {
    }
    %c0 = arith.constant 0 : index
    %c0_1 = arith.constant 0 : index
    %c0_2 = arith.constant 0 : index
    %3 = vector.load %arg2[%c0, %c0_1, %c0_2] : memref<2x16x32xf32, #tpu.memory_space<vmem>>, vector<2x16x32xf32>
    %4 = vector.shape_cast %3 : vector<2x16x32xf32> to vector<32x32xf32>
    %5 = arith.truncf %4 : vector<32x32xf32> to vector<32x32xbf16>
    %c0_3 = arith.constant 0 : index
    %c0_4 = arith.constant 0 : index
    %6 = vector.load %arg4[%c0_3, %c0_4] : memref<64x32xf32, #tpu.memory_space<vmem>>, vector<64x32xf32>
    %7 = arith.truncf %6 : vector<64x32xf32> to vector<64x32xbf16>
    %cst = arith.constant dense<0.000000e+00> : vector<32x64xf32>
    %8 = tpu.matmul %5, %7, %cst {dimension_numbers = #tpu.dot_dimension_numbers<[1], [1], [0], [0], [0, 0, 1, 0], [], []>} : vector<32x32xbf16>, vector<64x32xbf16>, vector<32x64xf32> -> vector<32x64xf32>
    %9 = vector.shape_cast %8 : vector<32x64xf32> to vector<2x16x64xf32>
    %c0_5 = arith.constant 0 : index
    %c0_6 = arith.constant 0 : index
    %c0_7 = arith.constant 0 : index
    %10 = vector.load %arg3[%c0_5, %c0_6, %c0_7] : memref<2x16x10xi32, #tpu.memory_space<vmem>>, vector<2x16x10xi32>
    %11 = tpu.iota {dimensions = array<i32: 2>} : vector<1x1x64xi32>
    %c64_i32 = arith.constant 64 : i32
    %12 = arith.muli %arg1, %c64_i32 : i32
    %13 = vector.broadcast %12 : i32 to vector<1x1x64xi32>
    %14 = arith.addi %11, %13 : vector<1x1x64xi32>
    %15 = vector.extract_strided_slice %10 {offsets = [0, 0, 0], sizes = [2, 16, 1], strides = [1, 1, 1]} : vector<2x16x10xi32> to vector<2x16x1xi32>
    %16 = vector.broadcast %15 : vector<2x16x1xi32> to vector<2x16x64xi32>
    %17 = vector.broadcast %14 : vector<1x1x64xi32> to vector<2x16x64xi32>
    %18 = arith.cmpi eq, %16, %17 : vector<2x16x64xi32>
    %19 = vector.extract_strided_slice %10 {offsets = [0, 0, 1], sizes = [2, 16, 1], strides = [1, 1, 1]} : vector<2x16x10xi32> to vector<2x16x1xi32>
    %20 = vector.broadcast %19 : vector<2x16x1xi32> to vector<2x16x64xi32>
    %21 = vector.broadcast %14 : vector<1x1x64xi32> to vector<2x16x64xi32>
    %22 = arith.cmpi eq, %20, %21 : vector<2x16x64xi32>
    %23 = arith.ori %18, %22 : vector<2x16x64xi1>
    %24 = vector.extract_strided_slice %10 {offsets = [0, 0, 2], sizes = [2, 16, 1], strides = [1, 1, 1]} : vector<2x16x10xi32> to vector<2x16x1xi32>
    %25 = vector.broadcast %24 : vector<2x16x1xi32> to vector<2x16x64xi32>
    %26 = vector.broadcast %14 : vector<1x1x64xi32> to vector<2x16x64xi32>
    %27 = arith.cmpi eq, %25, %26 : vector<2x16x64xi32>
    %28 = arith.ori %23, %27 : vector<2x16x64xi1>
    %29 = vector.extract_strided_slice %10 {offsets = [0, 0, 3], sizes = [2, 16, 1], strides = [1, 1, 1]} : vector<2x16x10xi32> to vector<2x16x1xi32>
    %30 = vector.broadcast %29 : vector<2x16x1xi32> to vector<2x16x64xi32>
    %31 = vector.broadcast %14 : vector<1x1x64xi32> to vector<2x16x64xi32>
    %32 = arith.cmpi eq, %30, %31 : vector<2x16x64xi32>
    %33 = arith.ori %28, %32 : vector<2x16x64xi1>
    %34 = vector.extract_strided_slice %10 {offsets = [0, 0, 4], sizes = [2, 16, 1], strides = [1, 1, 1]} : vector<2x16x10xi32> to vector<2x16x1xi32>
    %35 = vector.broadcast %34 : vector<2x16x1xi32> to vector<2x16x64xi32>
    %36 = vector.broadcast %14 : vector<1x1x64xi32> to vector<2x16x64xi32>
    %37 = arith.cmpi eq, %35, %36 : vector<2x16x64xi32>
    %38 = arith.ori %33, %37 : vector<2x16x64xi1>
    %39 = vector.extract_strided_slice %10 {offsets = [0, 0, 5], sizes = [2, 16, 1], strides = [1, 1, 1]} : vector<2x16x10xi32> to vector<2x16x1xi32>
    %40 = vector.broadcast %39 : vector<2x16x1xi32> to vector<2x16x64xi32>
    %41 = vector.broadcast %14 : vector<1x1x64xi32> to vector<2x16x64xi32>
    %42 = arith.cmpi eq, %40, %41 : vector<2x16x64xi32>
    %43 = arith.ori %38, %42 : vector<2x16x64xi1>
    %44 = vector.extract_strided_slice %10 {offsets = [0, 0, 6], sizes = [2, 16, 1], strides = [1, 1, 1]} : vector<2x16x10xi32> to vector<2x16x1xi32>
    %45 = vector.broadcast %44 : vector<2x16x1xi32> to vector<2x16x64xi32>
    %46 = vector.broadcast %14 : vector<1x1x64xi32> to vector<2x16x64xi32>
    %47 = arith.cmpi eq, %45, %46 : vector<2x16x64xi32>
    %48 = arith.ori %43, %47 : vector<2x16x64xi1>
    %49 = vector.extract_strided_slice %10 {offsets = [0, 0, 7], sizes = [2, 16, 1], strides = [1, 1, 1]} : vector<2x16x10xi32> to vector<2x16x1xi32>
    %50 = vector.broadcast %49 : vector<2x16x1xi32> to vector<2x16x64xi32>
    %51 = vector.broadcast %14 : vector<1x1x64xi32> to vector<2x16x64xi32>
    %52 = arith.cmpi eq, %50, %51 : vector<2x16x64xi32>
    %53 = arith.ori %48, %52 : vector<2x16x64xi1>
    %54 = vector.extract_strided_slice %10 {offsets = [0, 0, 8], sizes = [2, 16, 1], strides = [1, 1, 1]} : vector<2x16x10xi32> to vector<2x16x1xi32>
    %55 = vector.broadcast %54 : vector<2x16x1xi32> to vector<2x16x64xi32>
    %56 = vector.broadcast %14 : vector<1x1x64xi32> to vector<2x16x64xi32>
    %57 = arith.cmpi eq, %55, %56 : vector<2x16x64xi32>
    %58 = arith.ori %53, %57 : vector<2x16x64xi1>
    %59 = vector.extract_strided_slice %10 {offsets = [0, 0, 9], sizes = [2, 16, 1], strides = [1, 1, 1]} : vector<2x16x10xi32> to vector<2x16x1xi32>
    %60 = vector.broadcast %59 : vector<2x16x1xi32> to vector<2x16x64xi32>
    %61 = vector.broadcast %14 : vector<1x1x64xi32> to vector<2x16x64xi32>
    %62 = arith.cmpi eq, %60, %61 : vector<2x16x64xi32>
    %63 = arith.ori %58, %62 : vector<2x16x64xi1>
    %cst_8 = arith.constant 0.000000e+00 : f32
    %64 = vector.broadcast %cst_8 : f32 to vector<2x16x64xf32>
    %65 = arith.select %63, %9, %64 : vector<2x16x64xi1>, vector<2x16x64xf32>
    %cst_9 = arith.constant 0.000000e+00 : f32
    %66 = vector.broadcast %cst_9 : f32 to vector<2x16x64xf32>
    %67 = arith.cmpf ogt, %65, %66 : vector<2x16x64xf32>
    %68 = arith.extui %67 : vector<2x16x64xi1> to vector<2x16x64xi32>
    %69 = arith.sitofp %68 : vector<2x16x64xi32> to vector<2x16x64xf32>
    %70 = arith.truncf %69 : vector<2x16x64xf32> to vector<2x16x64xbf16>
    %c0_10 = arith.constant 0 : index
    %c0_11 = arith.constant 0 : index
    %c0_12 = arith.constant 0 : index
    %71 = vector.load %arg19[%c0_10, %c0_11, %c0_12] : memref<2x16x16xf32, #tpu.memory_space<vmem>>, vector<2x16x16xf32>
    %72 = arith.truncf %65 : vector<2x16x64xf32> to vector<2x16x64xbf16>
    "tpu.trace_start"() <{level = 10 : i32, message = "brj,bsj->brs"}> : () -> ()
    %cst_13 = arith.constant dense<0.000000e+00> : vector<2x16x16xf32>
    %73 = tpu.matmul %72, %70, %cst_13 {dimension_numbers = #tpu.dot_dimension_numbers<[2], [2], [1], [1], [0, 0, 0, 1, 1, 1], [0], [0]>} : vector<2x16x64xbf16>, vector<2x16x64xbf16>, vector<2x16x16xf32> -> vector<2x16x16xf32>
    "tpu.trace_stop"() : () -> ()
    %74 = arith.addf %71, %73 : vector<2x16x16xf32>
    %c0_14 = arith.constant 0 : index
    %c0_15 = arith.constant 0 : index
    %c0_16 = arith.constant 0 : index
    %75 = vector.load %arg19[%c0_14, %c0_15, %c0_16] : memref<2x16x16xf32, #tpu.memory_space<vmem>>, vector<2x16x16xf32>
    tpu.vector_store %arg19[%c0_14, %c0_15, %c0_16], %74 {strides = array<i32>} : memref<2x16x16xf32, #tpu.memory_space<vmem>>, vector<2x16x16xf32>,
    %c0_i32_17 = arith.constant 0 : i32
    %76 = arith.cmpi eq, %arg1, %c0_i32_17 : i32
    %77 = arith.extui %76 : i1 to i32
    %c0_i32_18 = arith.constant 0 : i32
    %78 = arith.cmpi ne, %77, %c0_i32_18 : i32
    scf.if %78 {
      %c0_19 = arith.constant 0 : index
      %c0_20 = arith.constant 0 : index
      %c0_21 = arith.constant 0 : index
      %79 = vector.load %arg19[%c0_19, %c0_20, %c0_21] : memref<2x16x16xf32, #tpu.memory_space<vmem>>, vector<2x16x16xf32>
      %cst_22 = arith.constant dense<0xFF800000> : vector<2x16xf32>
      %80 = vector.multi_reduction <maximumf>, %79, %cst_22 [2] : vector<2x16x16xf32> to vector<2x16xf32>
      %81 = vector.shape_cast %80 : vector<2x16xf32> to vector<2x16x1xf32>
      %82 = vector.broadcast %81 : vector<2x16x1xf32> to vector<2x16x16xf32>
      %83 = arith.subf %79, %82 : vector<2x16x16xf32>
      %84 = math.exp %83 : vector<2x16x16xf32>
      %cst_23 = arith.constant dense<0.000000e+00> : vector<2x16xf32>
      %85 = vector.multi_reduction <add>, %84, %cst_23 [2] : vector<2x16x16xf32> to vector<2x16xf32>
      %86 = vector.shape_cast %85 : vector<2x16xf32> to vector<2x16x1xf32>
      %87 = tpu.reciprocal %86 {approx = true} : vector<2x16x1xf32> -> vector<2x16x1xf32>
      %88 = vector.broadcast %87 : vector<2x16x1xf32> to vector<2x16x16xf32>
      %89 = arith.mulf %84, %88 : vector<2x16x16xf32>
      %90 = arith.truncf %89 : vector<2x16x16xf32> to vector<2x16x16xbf16>
      %91 = vector.extract_strided_slice %3 {offsets = [0, 0, 0], sizes = [2, 1, 32], strides = [1, 1, 1]} : vector<2x16x32xf32> to vector<2x1x32xf32>
      %92 = vector.broadcast %91 : vector<2x1x32xf32> to vector<2x16x32xf32>
      %93 = arith.subf %3, %92 : vector<2x16x32xf32>
      %94 = arith.truncf %93 : vector<2x16x32xf32> to vector<2x16x32xbf16>
      "tpu.trace_start"() <{level = 10 : i32, message = "brs,bsd->brd"}> : () -> ()
      %cst_24 = arith.constant dense<0.000000e+00> : vector<2x16x32xf32>
      %95 = tpu.matmul %90, %94, %cst_24 {dimension_numbers = #tpu.dot_dimension_numbers<[2], [1], [1], [2], [0, 0, 0, 1, 1, 2], [0], [0]>} : vector<2x16x16xbf16>, vector<2x16x32xbf16>, vector<2x16x32xf32> -> vector<2x16x32xf32>
      "tpu.trace_stop"() : () -> ()
      %96 = vector.shape_cast %93 : vector<2x16x32xf32> to vector<32x32xf32>
      %97 = vector.shape_cast %95 : vector<2x16x32xf32> to vector<32x32xf32>
      %c0_25 = arith.constant 0 : index
      %c0_26 = arith.constant 0 : index
      %98 = vector.load %arg5[%c0_25, %c0_26] : memref<64x32xf32, #tpu.memory_space<vmem>>, vector<64x32xf32>
      %99 = arith.truncf %98 : vector<64x32xf32> to vector<64x32xbf16>
      %100 = arith.truncf %96 : vector<32x32xf32> to vector<32x32xbf16>
      %101 = vector.extract_strided_slice %99 {offsets = [0, 0], sizes = [32, 32], strides = [1, 1]} : vector<64x32xbf16> to vector<32x32xbf16>
      %cst_27 = arith.constant dense<0.000000e+00> : vector<32x32xf32>
      %102 = tpu.matmul %100, %101, %cst_27 {dimension_numbers = #tpu.dot_dimension_numbers<[1], [0], [0], [1], [0, 0, 1, 1], [], []>} : vector<32x32xbf16>, vector<32x32xbf16>, vector<32x32xf32> -> vector<32x32xf32>
      %103 = arith.truncf %97 : vector<32x32xf32> to vector<32x32xbf16>
      %104 = vector.extract_strided_slice %99 {offsets = [32, 0], sizes = [32, 32], strides = [1, 1]} : vector<64x32xbf16> to vector<32x32xbf16>
      %cst_28 = arith.constant dense<0.000000e+00> : vector<32x32xf32>
      %105 = tpu.matmul %103, %104, %cst_28 {dimension_numbers = #tpu.dot_dimension_numbers<[1], [0], [0], [1], [0, 0, 1, 1], [], []>} : vector<32x32xbf16>, vector<32x32xbf16>, vector<32x32xf32> -> vector<32x32xf32>
      %106 = arith.addf %102, %105 : vector<32x32xf32>
      %c0_29 = arith.constant 0 : index
      %c0_30 = arith.constant 0 : index
      %107 = vector.load %arg6[%c0_29, %c0_30] : memref<1x32xf32, #tpu.memory_space<vmem>>, vector<1x32xf32>
      %108 = vector.broadcast %107 : vector<1x32xf32> to vector<32x32xf32>
      %109 = arith.addf %106, %108 : vector<32x32xf32>
      %cst_31 = arith.constant 0.000000e+00 : f32
      %110 = vector.broadcast %cst_31 : f32 to vector<32x32xf32>
      %111 = arith.maximumf %109, %110 : vector<32x32xf32>
      %112 = vector.shape_cast %111 : vector<32x32xf32> to vector<2x16x32xf32>
      %113 = arith.truncf %112 : vector<2x16x32xf32> to vector<2x16x32xbf16>
      "tpu.trace_start"() <{level = 10 : i32, message = "brs,bsd->brd"}> : () -> ()
      %cst_32 = arith.constant dense<0.000000e+00> : vector<2x16x32xf32>
      %114 = tpu.matmul %90, %113, %cst_32 {dimension_numbers = #tpu.dot_dimension_numbers<[2], [1], [1], [2], [0, 0, 0, 1, 1, 2], [0], [0]>} : vector<2x16x16xbf16>, vector<2x16x32xbf16>, vector<2x16x32xf32> -> vector<2x16x32xf32>
      "tpu.trace_stop"() : () -> ()
      %115 = vector.shape_cast %112 : vector<2x16x32xf32> to vector<32x32xf32>
      %116 = vector.shape_cast %114 : vector<2x16x32xf32> to vector<32x32xf32>
      %c0_33 = arith.constant 0 : index
      %c0_34 = arith.constant 0 : index
      %117 = vector.load %arg7[%c0_33, %c0_34] : memref<64x512xf32, #tpu.memory_space<vmem>>, vector<64x512xf32>
      %118 = arith.truncf %117 : vector<64x512xf32> to vector<64x512xbf16>
      %119 = arith.truncf %115 : vector<32x32xf32> to vector<32x32xbf16>
      %120 = vector.extract_strided_slice %118 {offsets = [0, 0], sizes = [32, 512], strides = [1, 1]} : vector<64x512xbf16> to vector<32x512xbf16>
      %cst_35 = arith.constant dense<0.000000e+00> : vector<32x512xf32>
      %121 = tpu.matmul %119, %120, %cst_35 {dimension_numbers = #tpu.dot_dimension_numbers<[1], [0], [0], [1], [0, 0, 1, 1], [], []>} : vector<32x32xbf16>, vector<32x512xbf16>, vector<32x512xf32> -> vector<32x512xf32>
      %122 = arith.truncf %116 : vector<32x32xf32> to vector<32x32xbf16>
      %123 = vector.extract_strided_slice %118 {offsets = [32, 0], sizes = [32, 512], strides = [1, 1]} : vector<64x512xbf16> to vector<32x512xbf16>
      %cst_36 = arith.constant dense<0.000000e+00> : vector<32x512xf32>
      %124 = tpu.matmul %122, %123, %cst_36 {dimension_numbers = #tpu.dot_dimension_numbers<[1], [0], [0], [1], [0, 0, 1, 1], [], []>} : vector<32x32xbf16>, vector<32x512xbf16>, vector<32x512xf32> -> vector<32x512xf32>
      %125 = arith.addf %121, %124 : vector<32x512xf32>
      %c0_37 = arith.constant 0 : index
      %c0_38 = arith.constant 0 : index
      %126 = vector.load %arg8[%c0_37, %c0_38] : memref<1x512xf32, #tpu.memory_space<vmem>>, vector<1x512xf32>
      %127 = vector.broadcast %126 : vector<1x512xf32> to vector<32x512xf32>
      %128 = arith.addf %125, %127 : vector<32x512xf32>
      %cst_39 = arith.constant 0.000000e+00 : f32
      %129 = vector.broadcast %cst_39 : f32 to vector<32x512xf32>
      %130 = arith.maximumf %128, %129 : vector<32x512xf32>
      %131 = vector.shape_cast %130 : vector<32x512xf32> to vector<2x16x512xf32>
      %132 = arith.truncf %131 : vector<2x16x512xf32> to vector<2x16x512xbf16>
      "tpu.trace_start"() <{level = 10 : i32, message = "brs,bsd->brd"}> : () -> ()
      %cst_40 = arith.constant dense<0.000000e+00> : vector<2x16x512xf32>
      %133 = tpu.matmul %90, %132, %cst_40 {dimension_numbers = #tpu.dot_dimension_numbers<[2], [1], [1], [2], [0, 0, 0, 1, 1, 2], [0], [0]>} : vector<2x16x16xbf16>, vector<2x16x512xbf16>, vector<2x16x512xf32> -> vector<2x16x512xf32>
      "tpu.trace_stop"() : () -> ()
      %134 = vector.shape_cast %131 : vector<2x16x512xf32> to vector<32x512xf32>
      %135 = vector.shape_cast %133 : vector<2x16x512xf32> to vector<32x512xf32>
      %136 = tpu.concatenate %134, %135 in 1 : vector<32x512xf32>, vector<32x512xf32> -> vector<32x1024xf32>
      %137 = arith.truncf %136 : vector<32x1024xf32> to vector<32x1024xbf16>
      %c0_41 = arith.constant 0 : index
      %c0_42 = arith.constant 0 : index
      %138 = vector.load %arg9[%c0_41, %c0_42] : memref<1024x256xf32, #tpu.memory_space<vmem>>, vector<1024x256xf32>
      %139 = arith.truncf %138 : vector<1024x256xf32> to vector<1024x256xbf16>
      %cst_43 = arith.constant dense<0.000000e+00> : vector<32x256xf32>
      %140 = tpu.matmul %137, %139, %cst_43 {dimension_numbers = #tpu.dot_dimension_numbers<[1], [0], [0], [1], [0, 0, 1, 1], [], []>} : vector<32x1024xbf16>, vector<1024x256xbf16>, vector<32x256xf32> -> vector<32x256xf32>
      %c0_44 = arith.constant 0 : index
      %c0_45 = arith.constant 0 : index
      %141 = vector.load %arg10[%c0_44, %c0_45] : memref<1x256xf32, #tpu.memory_space<vmem>>, vector<1x256xf32>
      %142 = vector.broadcast %141 : vector<1x256xf32> to vector<32x256xf32>
      %143 = arith.addf %140, %142 : vector<32x256xf32>
      %cst_46 = arith.constant 0.000000e+00 : f32
      %144 = vector.broadcast %cst_46 : f32 to vector<32x256xf32>
      %145 = arith.maximumf %143, %144 : vector<32x256xf32>
      %146 = vector.shape_cast %145 : vector<32x256xf32> to vector<2x16x256xf32>
      %147 = arith.truncf %146 : vector<2x16x256xf32> to vector<2x16x256xbf16>
      "tpu.trace_start"() <{level = 10 : i32, message = "brs,bsd->brd"}> : () -> ()
      %cst_47 = arith.constant dense<0.000000e+00> : vector<2x16x256xf32>
      %148 = tpu.matmul %90, %147, %cst_47 {dimension_numbers = #tpu.dot_dimension_numbers<[2], [1], [1], [2], [0, 0, 0, 1, 1, 2], [0], [0]>} : vector<2x16x16xbf16>, vector<2x16x256xbf16>, vector<2x16x256xf32> -> vector<2x16x256xf32>
      "tpu.trace_stop"() : () -> ()
      %149 = vector.shape_cast %146 : vector<2x16x256xf32> to vector<32x256xf32>
      %150 = vector.shape_cast %148 : vector<2x16x256xf32> to vector<32x256xf32>
      %151 = tpu.concatenate %149, %150 in 1 : vector<32x256xf32>, vector<32x256xf32> -> vector<32x512xf32>
      %152 = arith.truncf %151 : vector<32x512xf32> to vector<32x512xbf16>
      %c0_48 = arith.constant 0 : index
      %c0_49 = arith.constant 0 : index
      %153 = vector.load %arg11[%c0_48, %c0_49] : memref<512x256xf32, #tpu.memory_space<vmem>>, vector<512x256xf32>
      %154 = arith.truncf %153 : vector<512x256xf32> to vector<512x256xbf16>
      %cst_50 = arith.constant dense<0.000000e+00> : vector<32x256xf32>
      %155 = tpu.matmul %152, %154, %cst_50 {dimension_numbers = #tpu.dot_dimension_numbers<[1], [0], [0], [1], [0, 0, 1, 1], [], []>} : vector<32x512xbf16>, vector<512x256xbf16>, vector<32x256xf32> -> vector<32x256xf32>
      %c0_51 = arith.constant 0 : index
      %c0_52 = arith.constant 0 : index
      %156 = vector.load %arg12[%c0_51, %c0_52] : memref<1x256xf32, #tpu.memory_space<vmem>>, vector<1x256xf32>
      %157 = vector.broadcast %156 : vector<1x256xf32> to vector<32x256xf32>
      %158 = arith.addf %155, %157 : vector<32x256xf32>
      %cst_53 = arith.constant 0.000000e+00 : f32
      %159 = vector.broadcast %cst_53 : f32 to vector<32x256xf32>
      %160 = arith.maximumf %158, %159 : vector<32x256xf32>
      %161 = vector.shape_cast %160 : vector<32x256xf32> to vector<2x16x256xf32>
      %162 = vector.shape_cast %161 : vector<2x16x256xf32> to vector<32x256xf32>
      %163 = arith.truncf %162 : vector<32x256xf32> to vector<32x256xbf16>
      %c0_54 = arith.constant 0 : index
      %c0_55 = arith.constant 0 : index
      %164 = vector.load %arg13[%c0_54, %c0_55] : memref<256x256xf32, #tpu.memory_space<vmem>>, vector<256x256xf32>
      %165 = arith.truncf %164 : vector<256x256xf32> to vector<256x256xbf16>
      %cst_56 = arith.constant dense<0.000000e+00> : vector<32x256xf32>
      %166 = tpu.matmul %163, %165, %cst_56 {dimension_numbers = #tpu.dot_dimension_numbers<[1], [0], [0], [1], [0, 0, 1, 1], [], []>} : vector<32x256xbf16>, vector<256x256xbf16>, vector<32x256xf32> -> vector<32x256xf32>
      %c0_57 = arith.constant 0 : index
      %c0_58 = arith.constant 0 : index
      %167 = vector.load %arg14[%c0_57, %c0_58] : memref<1x256xf32, #tpu.memory_space<vmem>>, vector<1x256xf32>
      %168 = vector.broadcast %167 : vector<1x256xf32> to vector<32x256xf32>
      %169 = arith.addf %166, %168 : vector<32x256xf32>
      %cst_59 = arith.constant 0.000000e+00 : f32
      %170 = vector.broadcast %cst_59 : f32 to vector<32x256xf32>
      %171 = arith.cmpf oge, %169, %170 : vector<32x256xf32>
      %c0_60 = arith.constant 0 : index
      %c0_61 = arith.constant 0 : index
      %172 = vector.load %arg15[%c0_60, %c0_61] : memref<1x256xf32, #tpu.memory_space<vmem>>, vector<1x256xf32>
      %173 = vector.broadcast %172 : vector<1x256xf32> to vector<32x256xf32>
      %174 = arith.mulf %173, %169 : vector<32x256xf32>
      %175 = arith.select %171, %169, %174 : vector<32x256xi1>, vector<32x256xf32>
      %176 = arith.truncf %175 : vector<32x256xf32> to vector<32x256xbf16>
      %c0_62 = arith.constant 0 : index
      %c0_63 = arith.constant 0 : index
      %177 = vector.load %arg16[%c0_62, %c0_63] : memref<256x128xf32, #tpu.memory_space<vmem>>, vector<256x128xf32>
      %178 = arith.truncf %177 : vector<256x128xf32> to vector<256x128xbf16>
      %cst_64 = arith.constant dense<0.000000e+00> : vector<32x128xf32>
      %179 = tpu.matmul %176, %178, %cst_64 {dimension_numbers = #tpu.dot_dimension_numbers<[1], [0], [0], [1], [0, 0, 1, 1], [], []>} : vector<32x256xbf16>, vector<256x128xbf16>, vector<32x128xf32> -> vector<32x128xf32>
      %c0_65 = arith.constant 0 : index
      %c0_66 = arith.constant 0 : index
      %180 = vector.load %arg17[%c0_65, %c0_66] : memref<1x128xf32, #tpu.memory_space<vmem>>, vector<1x128xf32>
      %181 = vector.broadcast %180 : vector<1x128xf32> to vector<32x128xf32>
      %182 = arith.addf %179, %181 : vector<32x128xf32>
      %cst_67 = arith.constant dense<0xFF800000> : vector<32xf32>
      %183 = vector.multi_reduction <maximumf>, %182, %cst_67 [1] : vector<32x128xf32> to vector<32xf32>
      %184 = vector.shape_cast %183 : vector<32xf32> to vector<32x1xf32>
      %185 = vector.broadcast %184 : vector<32x1xf32> to vector<32x128xf32>
      %186 = arith.subf %182, %185 : vector<32x128xf32>
      %187 = math.exp %186 : vector<32x128xf32>
      %cst_68 = arith.constant dense<0.000000e+00> : vector<32xf32>
      %188 = vector.multi_reduction <add>, %187, %cst_68 [1] : vector<32x128xf32> to vector<32xf32>
      %189 = vector.shape_cast %188 : vector<32xf32> to vector<32x1xf32>
      %190 = tpu.reciprocal %189 {approx = true} : vector<32x1xf32> -> vector<32x1xf32>
      %191 = vector.broadcast %190 : vector<32x1xf32> to vector<32x128xf32>
      %192 = arith.mulf %187, %191 : vector<32x128xf32>
      %c0_69 = arith.constant 0 : index
      %c0_70 = arith.constant 0 : index
      %193 = vector.load %arg18[%c0_69, %c0_70] : memref<32x128xf32, #tpu.memory_space<vmem>>, vector<32x128xf32>
      tpu.vector_store %arg18[%c0_69, %c0_70], %192 {strides = array<i32>} : memref<32x128xf32, #tpu.memory_space<vmem>>, vector<32x128xf32>,
    } else {
    }
    return
  }
  func.func @transform_0(%arg0: i32, %arg1: i32) -> (i32, i32, i32) {
    %c0_i32 = arith.constant 0 : i32
    %c0_i32_0 = arith.constant 0 : i32
    %c0_i32_1 = arith.constant 0 : i32
    return %arg0, %c0_i32, %c0_i32_0 : i32, i32, i32
  }
  func.func @transform_1(%arg0: i32, %arg1: i32) -> (i32, i32, i32) {
    %c0_i32 = arith.constant 0 : i32
    %c0_i32_0 = arith.constant 0 : i32
    %c0_i32_1 = arith.constant 0 : i32
    return %arg0, %c0_i32, %c0_i32_0 : i32, i32, i32
  }
  func.func @transform_2(%arg0: i32, %arg1: i32) -> (i32, i32) {
    %c0_i32 = arith.constant 0 : i32
    %c0_i32_0 = arith.constant 0 : i32
    return %arg1, %c0_i32 : i32, i32
  }
  func.func @transform_3(%arg0: i32, %arg1: i32) -> (i32, i32) {
    %c0_i32 = arith.constant 0 : i32
    %c0_i32_0 = arith.constant 0 : i32
    %c0_i32_1 = arith.constant 0 : i32
    return %c0_i32, %c0_i32_0 : i32, i32
  }
  func.func @transform_4(%arg0: i32, %arg1: i32) -> (i32, i32) {
    %c0_i32 = arith.constant 0 : i32
    %c0_i32_0 = arith.constant 0 : i32
    %c0_i32_1 = arith.constant 0 : i32
    return %c0_i32, %c0_i32_0 : i32, i32
  }
  func.func @transform_5(%arg0: i32, %arg1: i32) -> (i32, i32) {
    %c0_i32 = arith.constant 0 : i32
    %c0_i32_0 = arith.constant 0 : i32
    %c0_i32_1 = arith.constant 0 : i32
    return %c0_i32, %c0_i32_0 : i32, i32
  }
  func.func @transform_6(%arg0: i32, %arg1: i32) -> (i32, i32) {
    %c0_i32 = arith.constant 0 : i32
    %c0_i32_0 = arith.constant 0 : i32
    %c0_i32_1 = arith.constant 0 : i32
    return %c0_i32, %c0_i32_0 : i32, i32
  }
  func.func @transform_7(%arg0: i32, %arg1: i32) -> (i32, i32) {
    %c0_i32 = arith.constant 0 : i32
    %c0_i32_0 = arith.constant 0 : i32
    %c0_i32_1 = arith.constant 0 : i32
    return %c0_i32, %c0_i32_0 : i32, i32
  }
  func.func @transform_8(%arg0: i32, %arg1: i32) -> (i32, i32) {
    %c0_i32 = arith.constant 0 : i32
    %c0_i32_0 = arith.constant 0 : i32
    %c0_i32_1 = arith.constant 0 : i32
    return %c0_i32, %c0_i32_0 : i32, i32
  }
  func.func @transform_9(%arg0: i32, %arg1: i32) -> (i32, i32) {
    %c0_i32 = arith.constant 0 : i32
    %c0_i32_0 = arith.constant 0 : i32
    %c0_i32_1 = arith.constant 0 : i32
    return %c0_i32, %c0_i32_0 : i32, i32
  }
  func.func @transform_10(%arg0: i32, %arg1: i32) -> (i32, i32) {
    %c0_i32 = arith.constant 0 : i32
    %c0_i32_0 = arith.constant 0 : i32
    %c0_i32_1 = arith.constant 0 : i32
    return %c0_i32, %c0_i32_0 : i32, i32
  }
  func.func @transform_11(%arg0: i32, %arg1: i32) -> (i32, i32) {
    %c0_i32 = arith.constant 0 : i32
    %c0_i32_0 = arith.constant 0 : i32
    %c0_i32_1 = arith.constant 0 : i32
    return %c0_i32, %c0_i32_0 : i32, i32
  }
  func.func @transform_12(%arg0: i32, %arg1: i32) -> (i32, i32) {
    %c0_i32 = arith.constant 0 : i32
    %c0_i32_0 = arith.constant 0 : i32
    %c0_i32_1 = arith.constant 0 : i32
    return %c0_i32, %c0_i32_0 : i32, i32
  }
  func.func @transform_13(%arg0: i32, %arg1: i32) -> (i32, i32) {
    %c0_i32 = arith.constant 0 : i32
    %c0_i32_0 = arith.constant 0 : i32
    %c0_i32_1 = arith.constant 0 : i32
    return %c0_i32, %c0_i32_0 : i32, i32
  }
  func.func @transform_14(%arg0: i32, %arg1: i32) -> (i32, i32) {
    %c0_i32 = arith.constant 0 : i32
    %c0_i32_0 = arith.constant 0 : i32
    %c0_i32_1 = arith.constant 0 : i32
    return %c0_i32, %c0_i32_0 : i32, i32
  }
  func.func @transform_15(%arg0: i32, %arg1: i32) -> (i32, i32) {
    %c0_i32 = arith.constant 0 : i32
    %c0_i32_0 = arith.constant 0 : i32
    %c0_i32_1 = arith.constant 0 : i32
    return %c0_i32, %c0_i32_0 : i32, i32
  }
  func.func @transform_16(%arg0: i32, %arg1: i32) -> (i32, i32) {
    %c0_i32 = arith.constant 0 : i32
    %c0_i32_0 = arith.constant 0 : i32
    return %arg0, %c0_i32 : i32, i32
  }
}

</mosaic_0001>

<llo_original>
// kernel: tpu_custom_call.1
$region0: #{tpu_custom_call.1}
  #allocation0 [shape = 'u32[]', space=smem, size = 0x4, offset = 0x4, fixed_abs, tag = 'smem constant byte address 0x4 - core index']
  #allocation1 [shape = 'u32[144,128]{1,0:T(1,128)}', space=vmem, size = 0x12000, scoped, tag = 'internal scratch']
  #allocation2 [shape = 'f32[2,16,16]{2,1,0:T(8,128)}', space=vmem, size = 0x4000, scoped, tag = 'scratch operand']
  %s0 = inlined_call_operand.hbm [shape: f32[2,16,32], index: 0, kind: input, shape index: {}]
  %s1 = inlined_call_operand.vmem [shape: s32[2,16,10], index: 1, kind: input, shape index: {}]
  %s2 = inlined_call_operand.vmem [shape: f32[64,32], index: 2, kind: input, shape index: {}]
  %s3 = inlined_call_operand.vmem [shape: f32[64,32], index: 3, kind: input, shape index: {}]
  %s4 = inlined_call_operand.vmem [shape: f32[1,32], index: 4, kind: input, shape index: {}]
  %s5 = inlined_call_operand.hbm [shape: f32[64,512], index: 5, kind: input, shape index: {}]
  %s6 = inlined_call_operand.vmem [shape: f32[1,512], index: 6, kind: input, shape index: {}]
  %s7 = inlined_call_operand.hbm [shape: f32[1024,256], index: 7, kind: input, shape index: {}]
  %s8 = inlined_call_operand.vmem [shape: f32[1,256], index: 8, kind: input, shape index: {}]
  %s9 = inlined_call_operand.hbm [shape: f32[512,256], index: 9, kind: input, shape index: {}]
  %s10 = inlined_call_operand.vmem [shape: f32[1,256], index: 10, kind: input, shape index: {}]
  %s11 = inlined_call_operand.hbm [shape: f32[256,256], index: 11, kind: input, shape index: {}]
  %s12 = inlined_call_operand.vmem [shape: f32[1,256], index: 12, kind: input, shape index: {}]
  %s13 = inlined_call_operand.vmem [shape: f32[1,256], index: 13, kind: input, shape index: {}]
  %s14 = inlined_call_operand.vmem [shape: f32[256,128], index: 14, kind: input, shape index: {}]
  %s15 = inlined_call_operand.hbm [shape: f32[1,128], index: 15, kind: input, shape index: {}]
  %s16 = inlined_call_operand.hbm [shape: f32[32,128], index: 16, kind: output, shape index: {}]
  %s17 = sld [smem:[#allocation0]]
  $region106: #{tpu_custom_call.1} parent=0
    _
  %s19 = ssub.s32 1, %s17
  %s20 = scalar_select 0, %s19, %s17
  $region1: #{tpu_custom_call.1} parent=0
    #allocation3 [shape = 'u8[16384]{0}', space=vmem, size = 0x4000, scoped, tag = 'input window, operand 0, single buffered']
    #allocation4 [shape = 's32[1]{0}', space=sflag, size = 0x4, scoped, tag = 'scoped memory for tpu_custom_call.1']
    #allocation5 [shape = 's32[1]{0}', space=sflag, size = 0x4, scoped, tag = 'scoped memory for tpu_custom_call.1']
    #allocation6 [shape = 'u8[131072]{0}', space=vmem, size = 0x20000, scoped, tag = 'input window, operand 5, single buffered']
    #allocation7 [shape = 's32[1]{0}', space=sflag, size = 0x4, scoped, tag = 'scoped memory for tpu_custom_call.1']
    #allocation8 [shape = 'u8[1048576]{0}', space=vmem, size = 0x100000, scoped, tag = 'input window, operand 7, single buffered']
    #allocation9 [shape = 'u8[524288]{0}', space=vmem, size = 0x80000, scoped, tag = 'input window, operand 9, single buffered']
    #allocation10 [shape = 's32[1]{0}', space=sflag, size = 0x4, scoped, tag = 'scoped memory for tpu_custom_call.1']
    #allocation11 [shape = 'u8[262144]{0}', space=vmem, size = 0x40000, scoped, tag = 'input window, operand 11, single buffered']
    #allocation12 [shape = 'u8[512]{0}', space=vmem, size = 0x400, scoped, tag = 'input window, operand 15, single buffered']
    #allocation13 [shape = 's32[1]{0}', space=sflag, size = 0x4, scoped, tag = 'scoped memory for tpu_custom_call.1']
    #allocation14 [shape = 'u8[16384]{0}', space=vmem, size = 0x4000, scoped, tag = 'output window, operand 0, single buffered']
    %21 = vsyncpa [#allocation4], 0
    %22 = vsyncpa [#allocation7], 0
    %23 = vsyncpa [#allocation10], 0
    %24 = vsyncpa [#allocation13], 0
    %25 = vsyncpa [#allocation5], 0
    // Predicated region
    $region2: #{tpu_custom_call.1} parent=1 // pred_check
      _
    $region3: #{tpu_custom_call.1} parent=1 // pred_check_branch
      %27 = sbr.rel (0) target = $region5
    $region4: #{tpu_custom_call.1} parent=1 // pred_region
      %s29 = ssub.s32 512, 512
      %30 = vsyncadd [#allocation4], %s29
      %s31 = sshll.u32 [#allocation3], 4
      %s32 = int_to_ptr.vmem [resolvable:$true] %s31
      %37 = dma.hbm_to_vmem [thread:$0]  %s0, 512, %s32, [#allocation4], 128, 128, 8
    $region5: #{tpu_custom_call.1} parent=1 // pred_fallthru
      _
    // Predicated region
    $region6: #{tpu_custom_call.1} parent=1 // pred_check
      _
    $region7: #{tpu_custom_call.1} parent=1 // pred_check_branch
      %39 = sbr.rel (0) target = $region9
    $region8: #{tpu_custom_call.1} parent=1 // pred_region
      _
    $region9: #{tpu_custom_call.1} parent=1 // pred_fallthru
      _
    // Predicated region
    $region10: #{tpu_custom_call.1} parent=1 // pred_check
      _
    $region11: #{tpu_custom_call.1} parent=1 // pred_check_branch
      %41 = sbr.rel (0) target = $region13
    $region12: #{tpu_custom_call.1} parent=1 // pred_region
      _
    $region13: #{tpu_custom_call.1} parent=1 // pred_fallthru
      _
    // Predicated region
    $region14: #{tpu_custom_call.1} parent=1 // pred_check
      _
    $region15: #{tpu_custom_call.1} parent=1 // pred_check_branch
      %43 = sbr.rel (0) target = $region17
    $region16: #{tpu_custom_call.1} parent=1 // pred_region
      _
    $region17: #{tpu_custom_call.1} parent=1 // pred_fallthru
      _
    // Predicated region
    $region18: #{tpu_custom_call.1} parent=1 // pred_check
      _
    $region19: #{tpu_custom_call.1} parent=1 // pred_check_branch
      %45 = sbr.rel (0) target = $region21
    $region20: #{tpu_custom_call.1} parent=1 // pred_region
      _
    $region21: #{tpu_custom_call.1} parent=1 // pred_fallthru
      _
    // Predicated region
    $region22: #{tpu_custom_call.1} parent=1 // pred_check
      _
    $region23: #{tpu_custom_call.1} parent=1 // pred_check_branch
      %47 = sbr.rel (0) target = $region25
    $region24: #{tpu_custom_call.1} parent=1 // pred_region
      %s49 = ssub.s32 4096, 4096
      %50 = vsyncadd [#allocation7], %s49
      %s51 = sshll.u32 [#allocation6], 4
      %s52 = int_to_ptr.vmem [resolvable:$true] %s51
      %57 = dma.hbm_to_vmem [thread:$0]  %s5, 4096, %s52, [#allocation7], 512, 512, 32
    $region25: #{tpu_custom_call.1} parent=1 // pred_fallthru
      _
    // Predicated region
    $region26: #{tpu_custom_call.1} parent=1 // pred_check
      _
    $region27: #{tpu_custom_call.1} parent=1 // pred_check_branch
      %59 = sbr.rel (0) target = $region29
    $region28: #{tpu_custom_call.1} parent=1 // pred_region
      _
    $region29: #{tpu_custom_call.1} parent=1 // pred_fallthru
      _
    // Predicated region
    $region30: #{tpu_custom_call.1} parent=1 // pred_check
      _
    $region31: #{tpu_custom_call.1} parent=1 // pred_check_branch
      %61 = sbr.rel (0) target = $region33
    $region32: #{tpu_custom_call.1} parent=1 // pred_region
      %s63 = ssub.s32 32768, 32768
      %64 = vsyncadd [#allocation7], %s63
      %s65 = sshll.u32 [#allocation8], 4
      %s66 = int_to_ptr.vmem [resolvable:$true] %s65
      %71 = dma.hbm_to_vmem [thread:$0]  %s7, 32768, %s66, [#allocation7], 256, 256, 16
    $region33: #{tpu_custom_call.1} parent=1 // pred_fallthru
      _
    // Predicated region
    $region34: #{tpu_custom_call.1} parent=1 // pred_check
      _
    $region35: #{tpu_custom_call.1} parent=1 // pred_check_branch
      %73 = sbr.rel (0) target = $region37
    $region36: #{tpu_custom_call.1} parent=1 // pred_region
      _
    $region37: #{tpu_custom_call.1} parent=1 // pred_fallthru
      _
    // Predicated region
    $region38: #{tpu_custom_call.1} parent=1 // pred_check
      _
    $region39: #{tpu_custom_call.1} parent=1 // pred_check_branch
      %75 = sbr.rel (0) target = $region41
    $region40: #{tpu_custom_call.1} parent=1 // pred_region
      %s77 = ssub.s32 16384, 16384
      %78 = vsyncadd [#allocation10], %s77
      %s79 = sshll.u32 [#allocation9], 4
      %s80 = int_to_ptr.vmem [resolvable:$true] %s79
      %85 = dma.hbm_to_vmem [thread:$0]  %s9, 16384, %s80, [#allocation10], 256, 256, 16
    $region41: #{tpu_custom_call.1} parent=1 // pred_fallthru
      _
    // Predicated region
    $region42: #{tpu_custom_call.1} parent=1 // pred_check
      _
    $region43: #{tpu_custom_call.1} parent=1 // pred_check_branch
      %87 = sbr.rel (0) target = $region45
    $region44: #{tpu_custom_call.1} parent=1 // pred_region
      _
    $region45: #{tpu_custom_call.1} parent=1 // pred_fallthru
      _
    // Predicated region
    $region46: #{tpu_custom_call.1} parent=1 // pred_check
      _
    $region47: #{tpu_custom_call.1} parent=1 // pred_check_branch
      %89 = sbr.rel (0) target = $region49
    $region48: #{tpu_custom_call.1} parent=1 // pred_region
      %s91 = ssub.s32 8192, 8192
      %92 = vsyncadd [#allocation10], %s91
      %s93 = sshll.u32 [#allocation11], 4
      %s94 = int_to_ptr.vmem [resolvable:$true] %s93
      %99 = dma.hbm_to_vmem [thread:$0]  %s11, 8192, %s94, [#allocation10], 256, 256, 16
    $region49: #{tpu_custom_call.1} parent=1 // pred_fallthru
      _
    // Predicated region
    $region50: #{tpu_custom_call.1} parent=1 // pred_check
      _
    $region51: #{tpu_custom_call.1} parent=1 // pred_check_branch
      %101 = sbr.rel (0) target = $region53
    $region52: #{tpu_custom_call.1} parent=1 // pred_region
      _
    $region53: #{tpu_custom_call.1} parent=1 // pred_fallthru
      _
    // Predicated region
    $region54: #{tpu_custom_call.1} parent=1 // pred_check
      _
    $region55: #{tpu_custom_call.1} parent=1 // pred_check_branch
      %103 = sbr.rel (0) target = $region57
    $region56: #{tpu_custom_call.1} parent=1 // pred_region
      _
    $region57: #{tpu_custom_call.1} parent=1 // pred_fallthru
      _
    // Predicated region
    $region58: #{tpu_custom_call.1} parent=1 // pred_check
      _
    $region59: #{tpu_custom_call.1} parent=1 // pred_check_branch
      %105 = sbr.rel (0) target = $region61
    $region60: #{tpu_custom_call.1} parent=1 // pred_region
      _
    $region61: #{tpu_custom_call.1} parent=1 // pred_fallthru
      _
    // Predicated region
    $region62: #{tpu_custom_call.1} parent=1 // pred_check
      _
    $region63: #{tpu_custom_call.1} parent=1 // pred_check_branch
      %107 = sbr.rel (0) target = $region65
    $region64: #{tpu_custom_call.1} parent=1 // pred_region
      %s109 = ssub.s32 16, 16
      %110 = vsyncadd [#allocation13], %s109
      %s112 = sshll.u32 [#allocation12], 4
      %s113 = int_to_ptr.vmem [resolvable:$true] %s112
      %115 = dma.hbm_to_vmem [thread:$0]  %s15, 16, %s113, [#allocation13]
    $region65: #{tpu_custom_call.1} parent=1 // pred_fallthru
      _
    // Predicated region
    $region66: #{tpu_custom_call.1} parent=1 // pred_check
      _
    $region67: #{tpu_custom_call.1} parent=1 // pred_check_branch
      %117 = sbr.rel (0) target = $region69
    $region68: #{tpu_custom_call.1} parent=1 // pred_region
      %118 = dma.done [#allocation4], 512
    $region69: #{tpu_custom_call.1} parent=1 // pred_fallthru
      _
    // Predicated region
    $region70: #{tpu_custom_call.1} parent=1 // pred_check
      _
    $region71: #{tpu_custom_call.1} parent=1 // pred_check_branch
      %120 = sbr.rel (0) target = $region73
    $region72: #{tpu_custom_call.1} parent=1 // pred_region
      %121 = dma.done [#allocation7], 4096
    $region73: #{tpu_custom_call.1} parent=1 // pred_fallthru
      _
    // Predicated region
    $region74: #{tpu_custom_call.1} parent=1 // pred_check
      _
    $region75: #{tpu_custom_call.1} parent=1 // pred_check_branch
      %123 = sbr.rel (0) target = $region77
    $region76: #{tpu_custom_call.1} parent=1 // pred_region
      %124 = dma.done [#allocation7], 32768
    $region77: #{tpu_custom_call.1} parent=1 // pred_fallthru
      _
    // Predicated region
    $region78: #{tpu_custom_call.1} parent=1 // pred_check
      _
    $region79: #{tpu_custom_call.1} parent=1 // pred_check_branch
      %126 = sbr.rel (0) target = $region81
    $region80: #{tpu_custom_call.1} parent=1 // pred_region
      %127 = dma.done [#allocation10], 16384
    $region81: #{tpu_custom_call.1} parent=1 // pred_fallthru
      _
    // Predicated region
    $region82: #{tpu_custom_call.1} parent=1 // pred_check
      _
    $region83: #{tpu_custom_call.1} parent=1 // pred_check_branch
      %129 = sbr.rel (0) target = $region85
    $region84: #{tpu_custom_call.1} parent=1 // pred_region
      %130 = dma.done [#allocation10], 8192
    $region85: #{tpu_custom_call.1} parent=1 // pred_fallthru
      _
    // Predicated region
    $region86: #{tpu_custom_call.1} parent=1 // pred_check
      _
    $region87: #{tpu_custom_call.1} parent=1 // pred_check_branch
      %132 = sbr.rel (0) target = $region89
    $region88: #{tpu_custom_call.1} parent=1 // pred_region
      %133 = dma.done [#allocation13], 16
    $region89: #{tpu_custom_call.1} parent=1 // pred_fallthru
      _
    %p135 = scmp.eq.s32.totalorder 0, 0
    // Predicated region
    $region90: #{tpu_custom_call.1} parent=1 // pred_check
      %p136 = pneg %p135
    $region91: #{tpu_custom_call.1} parent=1 // pred_check_branch
      %138 = sbr.rel (%p136) target = $region93
    $region92: #{tpu_custom_call.1} parent=1 // pred_region
      %vm139 = vcmask 130048
      %140 = vst.msk [vmem:[#allocation2] sm:$0xff] %vm139, 0.0
      %141 = vst.msk [vmem:[#allocation2 + $0x8] sm:$0xff] %vm139, 0.0
      %142 = vst.msk [vmem:[#allocation2 + $0x10] sm:$0xff] %vm139, 0.0
      %143 = vst.msk [vmem:[#allocation2 + $0x18] sm:$0xff] %vm139, 0.0
    $region93: #{tpu_custom_call.1} parent=1 // pred_fallthru
      _
    %v144 = vld [vmem:[#allocation3] sm:$0xff]
    %v145 = vld [vmem:[#allocation3 + $0x8] sm:$0xff]
    %v146 = vld [vmem:[#allocation3 + $0x10] sm:$0xff]
    %v147 = vld [vmem:[#allocation3 + $0x18] sm:$0xff]
    %v148 = vpack.c.bf16 %v145, %v144
    %v149 = vpack.c.bf16 %v147, %v146
    %v150 = vld [vmem:[%s2] sm:$0xff]
    %v151 = vld [vmem:[%s2 + $0x8] sm:$0xff]
    %v152 = vld [vmem:[%s2 + $0x10] sm:$0xff]
    %v153 = vld [vmem:[%s2 + $0x18] sm:$0xff]
    %v154 = vld [vmem:[%s2 + $0x20] sm:$0xff]
    %v155 = vld [vmem:[%s2 + $0x28] sm:$0xff]
    %v156 = vld [vmem:[%s2 + $0x30] sm:$0xff]
    %v157 = vld [vmem:[%s2 + $0x38] sm:$0xff]
    %v158 = vpack.c.bf16 %v151, %v150
    %v159 = vpack.c.bf16 %v153, %v152
    %v160 = vpack.c.bf16 %v155, %v154
    %v161 = vpack.c.bf16 %v157, %v156
    %vm162 = vcmask 261120
    %v164 = vsel %vm162, %v148, 0
    %v167 = vsel %vm162, %v149, 0
    %v170 = vsel %vm162, %v158, 0
    %v173 = vsel %vm162, %v159, 0
    %v176 = vsel %vm162, %v160, 0
    %v179 = vsel %vm162, %v161, 0
    %181 = vmatprep.subr.bf16.mxu0 0
    %182 = vmatpush1.bf16.xpose.msra.mxu0 0
    %183 = vmatprep.subr.bf16.mxu0 0
    %184 = vmatpush1.bf16.xpose.msra.mxu0 0
    %185 = vmatprep.subr.bf16.mxu0 0
    %186 = vmatpush1.bf16.xpose.msra.mxu0 0
    %187 = vmatprep.subr.bf16.mxu0 0
    %188 = vmatpush1.bf16.xpose.msra.mxu0 0
    %189 = vmatprep.subr.bf16.mxu0 0
    %190 = vmatpush1.bf16.xpose.msra.mxu0 %v179
    %191 = vmatprep.subr.bf16.mxu0 0
    %192 = vmatpush1.bf16.xpose.msra.mxu0 %v176
    %193 = vmatprep.subr.bf16.mxu0 0
    %194 = vmatpush1.bf16.xpose.msra.mxu0 %v173
    %195 = vmatprep.subr.bf16.mxu0 0
    %196 = vmatpush1.bf16.xpose.msra.mxu0 %v170
    %197 = vmatprep.subr.bf16.mxu0 0
    %198 = vmatpush2.bf16.xpose.msra.mxu0 0
    %199 = vmatprep.subr.bf16.mxu0 0
    %200 = vmatpush2.bf16.xpose.msra.mxu0 0
    %201 = vmatprep.subr.bf16.mxu0 0
    %202 = vmatpush2.bf16.xpose.msra.mxu0 0
    %203 = vmatprep.subr.bf16.mxu0 0
    %204 = vmatpush2.bf16.xpose.msra.mxu0 0
    %205 = vmatprep.subr.bf16.mxu0 0
    %206 = vmatpush2.bf16.xpose.msra.mxu0 0
    %207 = vmatprep.subr.bf16.mxu0 0
    %208 = vmatpush2.bf16.xpose.msra.mxu0 0
    %209 = vmatprep.subr.bf16.mxu0 0
    %210 = vmatpush2.bf16.xpose.msra.mxu0 0
    %211 = vmatprep.subr.bf16.mxu0 0
    %212 = vmatpush2.bf16.xpose.msra.mxu0 0
    %213 = vmatprep.mubr.bf16.mxu0 0
    %214 = vmatmul.mubr.bf16.gmra.mxu0 %v164
    %v215 = vpop.f32.mrf.mxu0
    %v216 = vadd.f32 0.0, %v215
    %v217 = vpop.f32.mrf.mxu0
    %v218 = vpop.f32.mrf.mxu0
    %v219 = vadd.f32 0.0, %v218
    %v220 = vpop.f32.mrf.mxu0
    %221 = vmatprep.mubr.bf16.mxu0 0
    %222 = vmatmul.mubr.bf16.gmra.mxu0 %v167
    %v223 = vpop.f32.mrf.mxu0
    %v224 = vadd.f32 0.0, %v223
    %v225 = vpop.f32.mrf.mxu0
    %v226 = vpop.f32.mrf.mxu0
    %v227 = vadd.f32 0.0, %v226
    %v228 = vpop.f32.mrf.mxu0
    %229 = vdwg.mxu0
    %v230 = vld [vmem:[%s1] sm:$0xff]
    %v231 = vld [vmem:[%s1 + $0x8] sm:$0xff]
    %v232 = vld [vmem:[%s1 + $0x10] sm:$0xff]
    %v233 = vld [vmem:[%s1 + $0x18] sm:$0xff]
    %v234 = vlaneseq
    %v235 = vand.u32 %v234, 127
    %s236 = smul.u32 0, 64
    %v237 = vstv %s236
    %v238 = vadd.s32 %v235, %v237
    %239 = vset.pattern.permute.xlu0 0
    %240 = vperm.xlu0 %239, %v230
    %v241 = vpop.permute.xlu0 %240
    %242 = vset.pattern.permute.xlu0 0
    %243 = vperm.xlu0 %242, %v231
    %v244 = vpop.permute.xlu0 %243
    %245 = vset.pattern.permute.xlu0 0
    %246 = vperm.xlu0 %245, %v232
    %v247 = vpop.permute.xlu0 %246
    %248 = vset.pattern.permute.xlu0 0
    %249 = vperm.xlu0 %248, %v233
    %v250 = vpop.permute.xlu0 %249
    %vm251 = vcmp.eq.s32.totalorder %v241, %v238
    %vm252 = vcmp.eq.s32.totalorder %v244, %v238
    %vm253 = vcmp.eq.s32.totalorder %v247, %v238
    %vm254 = vcmp.eq.s32.totalorder %v250, %v238
    %255 = vset.pattern.permute.xlu0 1
    %256 = vperm.xlu0 %255, %v230
    %v257 = vpop.permute.xlu0 %256
    %258 = vset.pattern.permute.xlu0 1
    %259 = vperm.xlu0 %258, %v231
    %v260 = vpop.permute.xlu0 %259
    %261 = vset.pattern.permute.xlu0 1
    %262 = vperm.xlu0 %261, %v232
    %v263 = vpop.permute.xlu0 %262
    %264 = vset.pattern.permute.xlu0 1
    %265 = vperm.xlu0 %264, %v233
    %v266 = vpop.permute.xlu0 %265
    %vm267 = vcmp.eq.s32.totalorder %v257, %v238
    %vm268 = vcmp.eq.s32.totalorder %v260, %v238
    %vm269 = vcmp.eq.s32.totalorder %v263, %v238
    %vm270 = vcmp.eq.s32.totalorder %v266, %v238
    %vm271 = vmor %vm251, %vm267
    %vm272 = vmor %vm252, %vm268
    %vm273 = vmor %vm253, %vm269
    %vm274 = vmor %vm254, %vm270
    %275 = vset.pattern.permute.xlu0 2
    %276 = vperm.xlu0 %275, %v230
    %v277 = vpop.permute.xlu0 %276
    %278 = vset.pattern.permute.xlu0 2
    %279 = vperm.xlu0 %278, %v231
    %v280 = vpop.permute.xlu0 %279
    %281 = vset.pattern.permute.xlu0 2
    %282 = vperm.xlu0 %281, %v232
    %v283 = vpop.permute.xlu0 %282
    %284 = vset.pattern.permute.xlu0 2
    %285 = vperm.xlu0 %284, %v233
    %v286 = vpop.permute.xlu0 %285
    %vm287 = vcmp.eq.s32.totalorder %v277, %v238
    %vm288 = vcmp.eq.s32.totalorder %v280, %v238
    %vm289 = vcmp.eq.s32.totalorder %v283, %v238
    %vm290 = vcmp.eq.s32.totalorder %v286, %v238
    %vm291 = vmor %vm271, %vm287
    %vm292 = vmor %vm272, %vm288
    %vm293 = vmor %vm273, %vm289
    %vm294 = vmor %vm274, %vm290
    %295 = vset.pattern.permute.xlu0 3
    %296 = vperm.xlu0 %295, %v230
    %v297 = vpop.permute.xlu0 %296
    %298 = vset.pattern.permute.xlu0 3
    %299 = vperm.xlu0 %298, %v231
    %v300 = vpop.permute.xlu0 %299
    %301 = vset.pattern.permute.xlu0 3
    %302 = vperm.xlu0 %301, %v232
    %v303 = vpop.permute.xlu0 %302
    %304 = vset.pattern.permute.xlu0 3
    %305 = vperm.xlu0 %304, %v233
    %v306 = vpop.permute.xlu0 %305
    %vm307 = vcmp.eq.s32.totalorder %v297, %v238
    %vm308 = vcmp.eq.s32.totalorder %v300, %v238
    %vm309 = vcmp.eq.s32.totalorder %v303, %v238
    %vm310 = vcmp.eq.s32.totalorder %v306, %v238
    %vm311 = vmor %vm291, %vm307
    %vm312 = vmor %vm292, %vm308
    %vm313 = vmor %vm293, %vm309
    %vm314 = vmor %vm294, %vm310
    %315 = vset.pattern.permute.xlu0 4
    %316 = vperm.xlu0 %315, %v230
    %v317 = vpop.permute.xlu0 %316
    %318 = vset.pattern.permute.xlu0 4
    %319 = vperm.xlu0 %318, %v231
    %v320 = vpop.permute.xlu0 %319
    %321 = vset.pattern.permute.xlu0 4
    %322 = vperm.xlu0 %321, %v232
    %v323 = vpop.permute.xlu0 %322
    %324 = vset.pattern.permute.xlu0 4
    %325 = vperm.xlu0 %324, %v233
    %v326 = vpop.permute.xlu0 %325
    %vm327 = vcmp.eq.s32.totalorder %v317, %v238
    %vm328 = vcmp.eq.s32.totalorder %v320, %v238
    %vm329 = vcmp.eq.s32.totalorder %v323, %v238
    %vm330 = vcmp.eq.s32.totalorder %v326, %v238
    %vm331 = vmor %vm311, %vm327
    %vm332 = vmor %vm312, %vm328
    %vm333 = vmor %vm313, %vm329
    %vm334 = vmor %vm314, %vm330
    %335 = vset.pattern.permute.xlu0 5
    %336 = vperm.xlu0 %335, %v230
    %v337 = vpop.permute.xlu0 %336
    %338 = vset.pattern.permute.xlu0 5
    %339 = vperm.xlu0 %338, %v231
    %v340 = vpop.permute.xlu0 %339
    %341 = vset.pattern.permute.xlu0 5
    %342 = vperm.xlu0 %341, %v232
    %v343 = vpop.permute.xlu0 %342
    %344 = vset.pattern.permute.xlu0 5
    %345 = vperm.xlu0 %344, %v233
    %v346 = vpop.permute.xlu0 %345
    %vm347 = vcmp.eq.s32.totalorder %v337, %v238
    %vm348 = vcmp.eq.s32.totalorder %v340, %v238
    %vm349 = vcmp.eq.s32.totalorder %v343, %v238
    %vm350 = vcmp.eq.s32.totalorder %v346, %v238
    %vm351 = vmor %vm331, %vm347
    %vm352 = vmor %vm332, %vm348
    %vm353 = vmor %vm333, %vm349
    %vm354 = vmor %vm334, %vm350
    %355 = vset.pattern.permute.xlu0 6
    %356 = vperm.xlu0 %355, %v230
    %v357 = vpop.permute.xlu0 %356
    %358 = vset.pattern.permute.xlu0 6
    %359 = vperm.xlu0 %358, %v231
    %v360 = vpop.permute.xlu0 %359
    %361 = vset.pattern.permute.xlu0 6
    %362 = vperm.xlu0 %361, %v232
    %v363 = vpop.permute.xlu0 %362
    %364 = vset.pattern.permute.xlu0 6
    %365 = vperm.xlu0 %364, %v233
    %v366 = vpop.permute.xlu0 %365
    %vm367 = vcmp.eq.s32.totalorder %v357, %v238
    %vm368 = vcmp.eq.s32.totalorder %v360, %v238
    %vm369 = vcmp.eq.s32.totalorder %v363, %v238
    %vm370 = vcmp.eq.s32.totalorder %v366, %v238
    %vm371 = vmor %vm351, %vm367
    %vm372 = vmor %vm352, %vm368
    %vm373 = vmor %vm353, %vm369
    %vm374 = vmor %vm354, %vm370
    %375 = vset.pattern.permute.xlu0 7
    %376 = vperm.xlu0 %375, %v230
    %v377 = vpop.permute.xlu0 %376
    %378 = vset.pattern.permute.xlu0 7
    %379 = vperm.xlu0 %378, %v231
    %v380 = vpop.permute.xlu0 %379
    %381 = vset.pattern.permute.xlu0 7
    %382 = vperm.xlu0 %381, %v232
    %v383 = vpop.permute.xlu0 %382
    %384 = vset.pattern.permute.xlu0 7
    %385 = vperm.xlu0 %384, %v233
    %v386 = vpop.permute.xlu0 %385
    %vm387 = vcmp.eq.s32.totalorder %v377, %v238
    %vm388 = vcmp.eq.s32.totalorder %v380, %v238
    %vm389 = vcmp.eq.s32.totalorder %v383, %v238
    %vm390 = vcmp.eq.s32.totalorder %v386, %v238
    %vm391 = vmor %vm371, %vm387
    %vm392 = vmor %vm372, %vm388
    %vm393 = vmor %vm373, %vm389
    %vm394 = vmor %vm374, %vm390
    %395 = vset.pattern.permute.xlu0 8
    %396 = vperm.xlu0 %395, %v230
    %v397 = vpop.permute.xlu0 %396
    %398 = vset.pattern.permute.xlu0 8
    %399 = vperm.xlu0 %398, %v231
    %v400 = vpop.permute.xlu0 %399
    %401 = vset.pattern.permute.xlu0 8
    %402 = vperm.xlu0 %401, %v232
    %v403 = vpop.permute.xlu0 %402
    %404 = vset.pattern.permute.xlu0 8
    %405 = vperm.xlu0 %404, %v233
    %v406 = vpop.permute.xlu0 %405
    %vm407 = vcmp.eq.s32.totalorder %v397, %v238
    %vm408 = vcmp.eq.s32.totalorder %v400, %v238
    %vm409 = vcmp.eq.s32.totalorder %v403, %v238
    %vm410 = vcmp.eq.s32.totalorder %v406, %v238
    %vm411 = vmor %vm391, %vm407
    %vm412 = vmor %vm392, %vm408
    %vm413 = vmor %vm393, %vm409
    %vm414 = vmor %vm394, %vm410
    %415 = vset.pattern.permute.xlu0 9
    %416 = vperm.xlu0 %415, %v230
    %v417 = vpop.permute.xlu0 %416
    %418 = vset.pattern.permute.xlu0 9
    %419 = vperm.xlu0 %418, %v231
    %v420 = vpop.permute.xlu0 %419
    %421 = vset.pattern.permute.xlu0 9
    %422 = vperm.xlu0 %421, %v232
    %v423 = vpop.permute.xlu0 %422
    %424 = vset.pattern.permute.xlu0 9
    %425 = vperm.xlu0 %424, %v233
    %v426 = vpop.permute.xlu0 %425
    %vm427 = vcmp.eq.s32.totalorder %v417, %v238
    %vm428 = vcmp.eq.s32.totalorder %v420, %v238
    %vm429 = vcmp.eq.s32.totalorder %v423, %v238
    %vm430 = vcmp.eq.s32.totalorder %v426, %v238
    %vm431 = vmor %vm411, %vm427
    %vm432 = vmor %vm412, %vm428
    %vm433 = vmor %vm413, %vm429
    %vm434 = vmor %vm414, %vm430
    %v435 = vsel %vm431, %v216, 0.0
    %v436 = vsel %vm432, %v219, 0.0
    %v437 = vsel %vm433, %v224, 0.0
    %v438 = vsel %vm434, %v227, 0.0
    %vm439 = vcmp.gt.f32.partialorder %v435, 0.0
    %vm440 = vcmp.gt.f32.partialorder %v436, 0.0
    %vm441 = vcmp.gt.f32.partialorder %v437, 0.0
    %vm442 = vcmp.gt.f32.partialorder %v438, 0.0
    %v443 = vsel %vm439, 1, 0
    %v444 = vsel %vm440, 1, 0
    %v445 = vsel %vm441, 1, 0
    %v446 = vsel %vm442, 1, 0
    %v447 = vcvt.s32.f32 %v443
    %v448 = vcvt.s32.f32 %v444
    %v449 = vcvt.s32.f32 %v445
    %v450 = vcvt.s32.f32 %v446
    %v451 = vpack.c.bf16 %v448, %v447
    %v452 = vpack.c.bf16 %v450, %v449
    %v453 = vld [vmem:[#allocation2] sm:$0xff]
    %v454 = vld [vmem:[#allocation2 + $0x8] sm:$0xff]
    %v455 = vld [vmem:[#allocation2 + $0x10] sm:$0xff]
    %v456 = vld [vmem:[#allocation2 + $0x18] sm:$0xff]
    %v457 = vpack.c.bf16 %v436, %v435
    %v458 = vpack.c.bf16 %v438, %v437
    %vm459 = vcmask 523264
    %v461 = vsel %vm459, %v457, 0
    %v464 = vsel %vm459, %v451, 0
    %466 = vmatprep.subr.bf16.mxu0 0
    %467 = vmatpush1.bf16.xpose.msra.mxu0 0
    %468 = vmatprep.subr.bf16.mxu0 0
    %469 = vmatpush1.bf16.xpose.msra.mxu0 0
    %470 = vmatprep.subr.bf16.mxu0 0
    %471 = vmatpush1.bf16.xpose.msra.mxu0 0
    %472 = vmatprep.subr.bf16.mxu0 0
    %473 = vmatpush1.bf16.xpose.msra.mxu0 0
    %474 = vmatprep.subr.bf16.mxu0 0
    %475 = vmatpush1.bf16.xpose.msra.mxu0 0
    %476 = vmatprep.subr.bf16.mxu0 0
    %477 = vmatpush1.bf16.xpose.msra.mxu0 0
    %478 = vmatprep.subr.bf16.mxu0 0
    %479 = vmatpush1.bf16.xpose.msra.mxu0 0
    %480 = vmatprep.subr.bf16.mxu0 0
    %481 = vmatpush1.bf16.xpose.msra.mxu0 %v464
    %482 = vmatprep.subr.bf16.mxu0 0
    %483 = vmatpush2.bf16.xpose.msra.mxu0 0
    %484 = vmatprep.subr.bf16.mxu0 0
    %485 = vmatpush2.bf16.xpose.msra.mxu0 0
    %486 = vmatprep.subr.bf16.mxu0 0
    %487 = vmatpush2.bf16.xpose.msra.mxu0 0
    %488 = vmatprep.subr.bf16.mxu0 0
    %489 = vmatpush2.bf16.xpose.msra.mxu0 0
    %490 = vmatprep.subr.bf16.mxu0 0
    %491 = vmatpush2.bf16.xpose.msra.mxu0 0
    %492 = vmatprep.subr.bf16.mxu0 0
    %493 = vmatpush2.bf16.xpose.msra.mxu0 0
    %494 = vmatprep.subr.bf16.mxu0 0
    %495 = vmatpush2.bf16.xpose.msra.mxu0 0
    %496 = vmatprep.subr.bf16.mxu0 0
    %497 = vmatpush2.bf16.xpose.msra.mxu0 0
    %498 = vmatprep.mubr.bf16.mxu0 0
    %499 = vmatmul.mubr.bf16.gmra.mxu0 %v461
    %v500 = vpop.f32.mrf.mxu0
    %v501 = vadd.f32 0.0, %v500
    %v502 = vpop.f32.mrf.mxu0
    %v503 = vpop.f32.mrf.mxu0
    %v504 = vadd.f32 0.0, %v503
    %v505 = vpop.f32.mrf.mxu0
    %506 = vdwg.mxu0
    %v508 = vsel %vm459, %v458, 0
    %v511 = vsel %vm459, %v452, 0
    %513 = vmatprep.subr.bf16.mxu0 0
    %514 = vmatpush1.bf16.xpose.msra.mxu0 0
    %515 = vmatprep.subr.bf16.mxu0 0
    %516 = vmatpush1.bf16.xpose.msra.mxu0 0
    %517 = vmatprep.subr.bf16.mxu0 0
    %518 = vmatpush1.bf16.xpose.msra.mxu0 0
    %519 = vmatprep.subr.bf16.mxu0 0
    %520 = vmatpush1.bf16.xpose.msra.mxu0 0
    %521 = vmatprep.subr.bf16.mxu0 0
    %522 = vmatpush1.bf16.xpose.msra.mxu0 0
    %523 = vmatprep.subr.bf16.mxu0 0
    %524 = vmatpush1.bf16.xpose.msra.mxu0 0
    %525 = vmatprep.subr.bf16.mxu0 0
    %526 = vmatpush1.bf16.xpose.msra.mxu0 0
    %527 = vmatprep.subr.bf16.mxu0 0
    %528 = vmatpush1.bf16.xpose.msra.mxu0 %v511
    %529 = vmatprep.subr.bf16.mxu0 0
    %530 = vmatpush2.bf16.xpose.msra.mxu0 0
    %531 = vmatprep.subr.bf16.mxu0 0
    %532 = vmatpush2.bf16.xpose.msra.mxu0 0
    %533 = vmatprep.subr.bf16.mxu0 0
    %534 = vmatpush2.bf16.xpose.msra.mxu0 0
    %535 = vmatprep.subr.bf16.mxu0 0
    %536 = vmatpush2.bf16.xpose.msra.mxu0 0
    %537 = vmatprep.subr.bf16.mxu0 0
    %538 = vmatpush2.bf16.xpose.msra.mxu0 0
    %539 = vmatprep.subr.bf16.mxu0 0
    %540 = vmatpush2.bf16.xpose.msra.mxu0 0
    %541 = vmatprep.subr.bf16.mxu0 0
    %542 = vmatpush2.bf16.xpose.msra.mxu0 0
    %543 = vmatprep.subr.bf16.mxu0 0
    %544 = vmatpush2.bf16.xpose.msra.mxu0 0
    %545 = vmatprep.mubr.bf16.mxu0 0
    %546 = vmatmul.mubr.bf16.gmra.mxu0 %v508
    %v547 = vpop.f32.mrf.mxu0
    %v548 = vadd.f32 0.0, %v547
    %v549 = vpop.f32.mrf.mxu0
    %v550 = vpop.f32.mrf.mxu0
    %v551 = vadd.f32 0.0, %v550
    %v552 = vpop.f32.mrf.mxu0
    %553 = vdwg.mxu0
    %v554 = vadd.f32 %v453, %v501
    %v555 = vadd.f32 %v454, %v504
    %v556 = vadd.f32 %v455, %v548
    %v557 = vadd.f32 %v456, %v551
    %vm558 = vcmask 130048
    %559 = vst.msk [vmem:[#allocation2] sm:$0xff] %vm558, %v554
    %560 = vst.msk [vmem:[#allocation2 + $0x8] sm:$0xff] %vm558, %v555
    %561 = vst.msk [vmem:[#allocation2 + $0x10] sm:$0xff] %vm558, %v556
    %562 = vst.msk [vmem:[#allocation2 + $0x18] sm:$0xff] %vm558, %v557
    // Predicated region
    $region94: #{tpu_custom_call.1} parent=1 // pred_check
      %p563 = pneg %p135
    $region95: #{tpu_custom_call.1} parent=1 // pred_check_branch
      %565 = sbr.rel (%p563) target = $region97
    $region96: #{tpu_custom_call.1} parent=1 // pred_region
      %v566 = vld [vmem:[#allocation2] sm:$0xff]
      %v567 = vld [vmem:[#allocation2 + $0x8] sm:$0xff]
      %v568 = vld [vmem:[#allocation2 + $0x10] sm:$0xff]
      %v569 = vld [vmem:[#allocation2 + $0x18] sm:$0xff]
      %v570 = vsel %vm558, %v566, -inf
      %571 = vmax.xlane.f32.xlu0 %v570
      %v572 = vpop.xlane.xlu0 %571
      %v573 = vsel %vm558, %v567, -inf
      %574 = vmax.xlane.f32.xlu0 %v573
      %v575 = vpop.xlane.xlu0 %574
      %v576 = vsel %vm558, %v568, -inf
      %577 = vmax.xlane.f32.xlu0 %v576
      %v578 = vpop.xlane.xlu0 %577
      %v579 = vsel %vm558, %v569, -inf
      %580 = vmax.xlane.f32.xlu0 %v579
      %v581 = vpop.xlane.xlu0 %580
      %v582 = vsub.f32 %v566, %v572
      %v583 = vsub.f32 %v567, %v575
      %v584 = vsub.f32 %v568, %v578
      %v585 = vsub.f32 %v569, %v581
      %v586 = vmul.f32 %v582, 1.442695
      %v587 = vpow.pop %v586
      %v588 = vmul.f32 %v583, 1.442695
      %v589 = vpow.pop %v588
      %v590 = vmul.f32 %v584, 1.442695
      %v591 = vpow.pop %v590
      %v592 = vmul.f32 %v585, 1.442695
      %v593 = vpow.pop %v592
      %v594 = vsel %vm558, %v587, 0.0
      %595 = vadd.xlane.f32.xlu0 %v594
      %v596 = vpop.xlane.xlu0 %595
      %v597 = vsel %vm558, %v589, 0.0
      %598 = vadd.xlane.f32.xlu0 %v597
      %v599 = vpop.xlane.xlu0 %598
      %v600 = vsel %vm558, %v591, 0.0
      %601 = vadd.xlane.f32.xlu0 %v600
      %v602 = vpop.xlane.xlu0 %601
      %v603 = vsel %vm558, %v593, 0.0
      %604 = vadd.xlane.f32.xlu0 %v603
      %v605 = vpop.xlane.xlu0 %604
      %v606 = vrcp.pop %v596
      %v607 = vrcp.pop %v599
      %v608 = vrcp.pop %v602
      %v609 = vrcp.pop %v605
      %v610 = vmul.f32 %v587, %v606
      %v611 = vmul.f32 %v589, %v607
      %v612 = vmul.f32 %v591, %v608
      %v613 = vmul.f32 %v593, %v609
      %v614 = vpack.c.bf16 %v611, %v610
      %v615 = vpack.c.bf16 %v613, %v612
      %v616 = vlaneseq
      %v617 = vshrl.u32 %v616, 7
      %v618 = vsub.s32 0, %v617
      %v619 = vrot.slane %v144, %v618
      %v620 = vlaneseq
      %v621 = vshrl.u32 %v620, 7
      %v622 = vsub.s32 0, %v621
      %v623 = vrot.slane %v146, %v622
      %v624 = vsub.f32 %v144, %v619
      %v625 = vsub.f32 %v145, %v619
      %v626 = vsub.f32 %v146, %v623
      %v627 = vsub.f32 %v147, %v623
      %v628 = vpack.c.bf16 %v625, %v624
      %v629 = vpack.c.bf16 %v627, %v626
      %v631 = vsel %vm558, %v614, 0
      %633 = vmatprep.subr.bf16.mxu0 0
      %634 = vmatpush1.bf16.msra.mxu0 0
      %635 = vmatprep.subr.bf16.mxu0 0
      %636 = vmatpush1.bf16.msra.mxu0 0
      %637 = vmatprep.subr.bf16.mxu0 0
      %638 = vmatpush1.bf16.msra.mxu0 0
      %639 = vmatprep.subr.bf16.mxu0 0
      %640 = vmatpush1.bf16.msra.mxu0 0
      %641 = vmatprep.subr.bf16.mxu0 0
      %642 = vmatpush1.bf16.msra.mxu0 0
      %643 = vmatprep.subr.bf16.mxu0 0
      %644 = vmatpush1.bf16.msra.mxu0 0
      %645 = vmatprep.subr.bf16.mxu0 0
      %646 = vmatpush1.bf16.msra.mxu0 0
      %647 = vmatprep.subr.bf16.mxu0 0
      %648 = vmatpush1.bf16.msra.mxu0 %v628
      %649 = vmatprep.subr.bf16.mxu0 0
      %650 = vmatpush2.bf16.msra.mxu0 0
      %651 = vmatprep.subr.bf16.mxu0 0
      %652 = vmatpush2.bf16.msra.mxu0 0
      %653 = vmatprep.subr.bf16.mxu0 0
      %654 = vmatpush2.bf16.msra.mxu0 0
      %655 = vmatprep.subr.bf16.mxu0 0
      %656 = vmatpush2.bf16.msra.mxu0 0
      %657 = vmatprep.subr.bf16.mxu0 0
      %658 = vmatpush2.bf16.msra.mxu0 0
      %659 = vmatprep.subr.bf16.mxu0 0
      %660 = vmatpush2.bf16.msra.mxu0 0
      %661 = vmatprep.subr.bf16.mxu0 0
      %662 = vmatpush2.bf16.msra.mxu0 0
      %663 = vmatprep.subr.bf16.mxu0 0
      %664 = vmatpush2.bf16.msra.mxu0 0
      %665 = vmatprep.mubr.bf16.mxu0 0
      %666 = vmatmul.mubr.bf16.gmra.mxu0 %v631
      %v667 = vpop.f32.mrf.mxu0
      %v668 = vadd.f32 0.0, %v667
      %v669 = vpop.f32.mrf.mxu0
      %v670 = vpop.f32.mrf.mxu0
      %v671 = vadd.f32 0.0, %v670
      %v672 = vpop.f32.mrf.mxu0
      %673 = vdwg.mxu0
      %v675 = vsel %vm558, %v615, 0
      %677 = vmatprep.subr.bf16.mxu0 0
      %678 = vmatpush1.bf16.msra.mxu0 0
      %679 = vmatprep.subr.bf16.mxu0 0
      %680 = vmatpush1.bf16.msra.mxu0 0
      %681 = vmatprep.subr.bf16.mxu0 0
      %682 = vmatpush1.bf16.msra.mxu0 0
      %683 = vmatprep.subr.bf16.mxu0 0
      %684 = vmatpush1.bf16.msra.mxu0 0
      %685 = vmatprep.subr.bf16.mxu0 0
      %686 = vmatpush1.bf16.msra.mxu0 0
      %687 = vmatprep.subr.bf16.mxu0 0
      %688 = vmatpush1.bf16.msra.mxu0 0
      %689 = vmatprep.subr.bf16.mxu0 0
      %690 = vmatpush1.bf16.msra.mxu0 0
      %691 = vmatprep.subr.bf16.mxu0 0
      %692 = vmatpush1.bf16.msra.mxu0 %v629
      %693 = vmatprep.subr.bf16.mxu0 0
      %694 = vmatpush2.bf16.msra.mxu0 0
      %695 = vmatprep.subr.bf16.mxu0 0
      %696 = vmatpush2.bf16.msra.mxu0 0
      %697 = vmatprep.subr.bf16.mxu0 0
      %698 = vmatpush2.bf16.msra.mxu0 0
      %699 = vmatprep.subr.bf16.mxu0 0
      %700 = vmatpush2.bf16.msra.mxu0 0
      %701 = vmatprep.subr.bf16.mxu0 0
      %702 = vmatpush2.bf16.msra.mxu0 0
      %703 = vmatprep.subr.bf16.mxu0 0
      %704 = vmatpush2.bf16.msra.mxu0 0
      %705 = vmatprep.subr.bf16.mxu0 0
      %706 = vmatpush2.bf16.msra.mxu0 0
      %707 = vmatprep.subr.bf16.mxu0 0
      %708 = vmatpush2.bf16.msra.mxu0 0
      %709 = vmatprep.mubr.bf16.mxu0 0
      %710 = vmatmul.mubr.bf16.gmra.mxu0 %v675
      %v711 = vpop.f32.mrf.mxu0
      %v712 = vadd.f32 0.0, %v711
      %v713 = vpop.f32.mrf.mxu0
      %v714 = vpop.f32.mrf.mxu0
      %v715 = vadd.f32 0.0, %v714
      %v716 = vpop.f32.mrf.mxu0
      %717 = vdwg.mxu0
      %v718 = vld [vmem:[%s3] sm:$0xff]
      %v719 = vld [vmem:[%s3 + $0x8] sm:$0xff]
      %v720 = vld [vmem:[%s3 + $0x10] sm:$0xff]
      %v721 = vld [vmem:[%s3 + $0x18] sm:$0xff]
      %v722 = vld [vmem:[%s3 + $0x20] sm:$0xff]
      %v723 = vld [vmem:[%s3 + $0x28] sm:$0xff]
      %v724 = vld [vmem:[%s3 + $0x30] sm:$0xff]
      %v725 = vld [vmem:[%s3 + $0x38] sm:$0xff]
      %v726 = vpack.c.bf16 %v719, %v718
      %v727 = vpack.c.bf16 %v721, %v720
      %v728 = vpack.c.bf16 %v723, %v722
      %v729 = vpack.c.bf16 %v725, %v724
      %v730 = vpack.c.bf16 %v671, %v668
      %v731 = vpack.c.bf16 %v715, %v712
      %v733 = vsel %vm162, %v730, 0
      %v736 = vsel %vm162, %v731, 0
      %738 = vmatprep.subr.bf16.mxu0 0
      %739 = vmatpush1.bf16.msra.mxu0 0
      %740 = vmatprep.subr.bf16.mxu0 0
      %741 = vmatpush1.bf16.msra.mxu0 0
      %742 = vmatprep.subr.bf16.mxu0 0
      %743 = vmatpush1.bf16.msra.mxu0 0
      %744 = vmatprep.subr.bf16.mxu0 0
      %745 = vmatpush1.bf16.msra.mxu0 0
      %746 = vmatprep.subr.bf16.mxu0 0
      %747 = vmatpush1.bf16.msra.mxu0 0
      %748 = vmatprep.subr.bf16.mxu0 0
      %749 = vmatpush1.bf16.msra.mxu0 0
      %750 = vmatprep.subr.bf16.mxu0 0
      %751 = vmatpush1.bf16.msra.mxu0 %v729
      %752 = vmatprep.subr.bf16.mxu0 0
      %753 = vmatpush1.bf16.msra.mxu0 %v728
      %754 = vmatprep.subr.bf16.mxu0 0
      %755 = vmatpush2.bf16.msra.mxu0 0
      %756 = vmatprep.subr.bf16.mxu0 0
      %757 = vmatpush2.bf16.msra.mxu0 0
      %758 = vmatprep.subr.bf16.mxu0 0
      %759 = vmatpush2.bf16.msra.mxu0 0
      %760 = vmatprep.subr.bf16.mxu0 0
      %761 = vmatpush2.bf16.msra.mxu0 0
      %762 = vmatprep.subr.bf16.mxu0 0
      %763 = vmatpush2.bf16.msra.mxu0 0
      %764 = vmatprep.subr.bf16.mxu0 0
      %765 = vmatpush2.bf16.msra.mxu0 0
      %766 = vmatprep.subr.bf16.mxu0 0
      %767 = vmatpush2.bf16.msra.mxu0 0
      %768 = vmatprep.subr.bf16.mxu0 0
      %769 = vmatpush2.bf16.msra.mxu0 0
      %770 = vmatprep.mubr.bf16.mxu0 0
      %771 = vmatmul.mubr.bf16.gmra.mxu0 %v733
      %v772 = vpop.f32.mrf.mxu0
      %v773 = vadd.f32 0.0, %v772
      %v774 = vpop.f32.mrf.mxu0
      %v775 = vpop.f32.mrf.mxu0
      %v776 = vadd.f32 0.0, %v775
      %v777 = vpop.f32.mrf.mxu0
      %778 = vmatprep.mubr.bf16.mxu0 0
      %779 = vmatmul.mubr.bf16.gmra.mxu0 %v736
      %v780 = vpop.f32.mrf.mxu0
      %v781 = vadd.f32 0.0, %v780
      %v782 = vpop.f32.mrf.mxu0
      %v783 = vpop.f32.mrf.mxu0
      %v784 = vadd.f32 0.0, %v783
      %v785 = vpop.f32.mrf.mxu0
      %786 = vdwg.mxu0
      %v788 = vsel %vm162, %v628, 0
      %v791 = vsel %vm162, %v629, 0
      %793 = vmatprep.subr.bf16.mxu0 0
      %794 = vmatpush1.bf16.msra.mxu0 0
      %795 = vmatprep.subr.bf16.mxu0 0
      %796 = vmatpush1.bf16.msra.mxu0 0
      %797 = vmatprep.subr.bf16.mxu0 0
      %798 = vmatpush1.bf16.msra.mxu0 0
      %799 = vmatprep.subr.bf16.mxu0 0
      %800 = vmatpush1.bf16.msra.mxu0 0
      %801 = vmatprep.subr.bf16.mxu0 0
      %802 = vmatpush1.bf16.msra.mxu0 0
      %803 = vmatprep.subr.bf16.mxu0 0
      %804 = vmatpush1.bf16.msra.mxu0 0
      %805 = vmatprep.subr.bf16.mxu0 0
      %806 = vmatpush1.bf16.msra.mxu0 %v727
      %807 = vmatprep.subr.bf16.mxu0 0
      %808 = vmatpush1.bf16.msra.mxu0 %v726
      %809 = vmatprep.subr.bf16.mxu0 0
      %810 = vmatpush2.bf16.msra.mxu0 0
      %811 = vmatprep.subr.bf16.mxu0 0
      %812 = vmatpush2.bf16.msra.mxu0 0
      %813 = vmatprep.subr.bf16.mxu0 0
      %814 = vmatpush2.bf16.msra.mxu0 0
      %815 = vmatprep.subr.bf16.mxu0 0
      %816 = vmatpush2.bf16.msra.mxu0 0
      %817 = vmatprep.subr.bf16.mxu0 0
      %818 = vmatpush2.bf16.msra.mxu0 0
      %819 = vmatprep.subr.bf16.mxu0 0
      %820 = vmatpush2.bf16.msra.mxu0 0
      %821 = vmatprep.subr.bf16.mxu0 0
      %822 = vmatpush2.bf16.msra.mxu0 0
      %823 = vmatprep.subr.bf16.mxu0 0
      %824 = vmatpush2.bf16.msra.mxu0 0
      %825 = vmatprep.mubr.bf16.mxu0 0
      %826 = vmatmul.mubr.bf16.gmra.mxu0 %v788
      %v827 = vpop.f32.mrf.mxu0
      %v828 = vadd.f32 %v773, %v827
      %v829 = vpop.f32.mrf.mxu0
      %v830 = vpop.f32.mrf.mxu0
      %v831 = vadd.f32 %v776, %v830
      %v832 = vpop.f32.mrf.mxu0
      %833 = vmatprep.mubr.bf16.mxu0 0
      %834 = vmatmul.mubr.bf16.gmra.mxu0 %v791
      %v835 = vpop.f32.mrf.mxu0
      %v836 = vadd.f32 %v781, %v835
      %v837 = vpop.f32.mrf.mxu0
      %v838 = vpop.f32.mrf.mxu0
      %v839 = vadd.f32 %v784, %v838
      %v840 = vpop.f32.mrf.mxu0
      %841 = vdwg.mxu0
      %v842 = vld [vmem:[%s4] sm:$0x1]
      %v844 = vlaneseq
      %v845 = vshrl.u32 %v844, 7
      %v846 = vsub.s32 0, %v845
      %v847 = vrot.slane %v842, %v846
      %v849 = vadd.f32 %v828, %v847
      %v850 = vadd.f32 %v831, %v847
      %v851 = vadd.f32 %v836, %v847
      %v852 = vadd.f32 %v839, %v847
      %v853 = vmax.f32 %v849, 0.0
      %v854 = vmax.f32 %v850, 0.0
      %v855 = vmax.f32 %v851, 0.0
      %v856 = vmax.f32 %v852, 0.0
      %v857 = vpack.c.bf16 %v854, %v853
      %v858 = vpack.c.bf16 %v856, %v855
      %859 = vmatprep.subr.bf16.mxu0 0
      %860 = vmatpush1.bf16.msra.mxu0 0
      %861 = vmatprep.subr.bf16.mxu0 0
      %862 = vmatpush1.bf16.msra.mxu0 0
      %863 = vmatprep.subr.bf16.mxu0 0
      %864 = vmatpush1.bf16.msra.mxu0 0
      %865 = vmatprep.subr.bf16.mxu0 0
      %866 = vmatpush1.bf16.msra.mxu0 0
      %867 = vmatprep.subr.bf16.mxu0 0
      %868 = vmatpush1.bf16.msra.mxu0 0
      %869 = vmatprep.subr.bf16.mxu0 0
      %870 = vmatpush1.bf16.msra.mxu0 0
      %871 = vmatprep.subr.bf16.mxu0 0
      %872 = vmatpush1.bf16.msra.mxu0 0
      %873 = vmatprep.subr.bf16.mxu0 0
      %874 = vmatpush1.bf16.msra.mxu0 %v857
      %875 = vmatprep.subr.bf16.mxu0 0
      %876 = vmatpush2.bf16.msra.mxu0 0
      %877 = vmatprep.subr.bf16.mxu0 0
      %878 = vmatpush2.bf16.msra.mxu0 0
      %879 = vmatprep.subr.bf16.mxu0 0
      %880 = vmatpush2.bf16.msra.mxu0 0
      %881 = vmatprep.subr.bf16.mxu0 0
      %882 = vmatpush2.bf16.msra.mxu0 0
      %883 = vmatprep.subr.bf16.mxu0 0
      %884 = vmatpush2.bf16.msra.mxu0 0
      %885 = vmatprep.subr.bf16.mxu0 0
      %886 = vmatpush2.bf16.msra.mxu0 0
      %887 = vmatprep.subr.bf16.mxu0 0
      %888 = vmatpush2.bf16.msra.mxu0 0
      %889 = vmatprep.subr.bf16.mxu0 0
      %890 = vmatpush2.bf16.msra.mxu0 0
      %891 = vmatprep.mubr.bf16.mxu0 0
      %892 = vmatmul.mubr.bf16.gmra.mxu0 %v631
      %v893 = vpop.f32.mrf.mxu0
      %v894 = vadd.f32 0.0, %v893
      %v895 = vpop.f32.mrf.mxu0
      %v896 = vpop.f32.mrf.mxu0
      %v897 = vadd.f32 0.0, %v896
      %v898 = vpop.f32.mrf.mxu0
      %899 = vdwg.mxu0
      %900 = vmatprep.subr.bf16.mxu0 0
      %901 = vmatpush1.bf16.msra.mxu0 0
      %902 = vmatprep.subr.bf16.mxu0 0
      %903 = vmatpush1.bf16.msra.mxu0 0
      %904 = vmatprep.subr.bf16.mxu0 0
      %905 = vmatpush1.bf16.msra.mxu0 0
      %906 = vmatprep.subr.bf16.mxu0 0
      %907 = vmatpush1.bf16.msra.mxu0 0
      %908 = vmatprep.subr.bf16.mxu0 0
      %909 = vmatpush1.bf16.msra.mxu0 0
      %910 = vmatprep.subr.bf16.mxu0 0
      %911 = vmatpush1.bf16.msra.mxu0 0
      %912 = vmatprep.subr.bf16.mxu0 0
      %913 = vmatpush1.bf16.msra.mxu0 0
      %914 = vmatprep.subr.bf16.mxu0 0
      %915 = vmatpush1.bf16.msra.mxu0 %v858
      %916 = vmatprep.subr.bf16.mxu0 0
      %917 = vmatpush2.bf16.msra.mxu0 0
      %918 = vmatprep.subr.bf16.mxu0 0
      %919 = vmatpush2.bf16.msra.mxu0 0
      %920 = vmatprep.subr.bf16.mxu0 0
      %921 = vmatpush2.bf16.msra.mxu0 0
      %922 = vmatprep.subr.bf16.mxu0 0
      %923 = vmatpush2.bf16.msra.mxu0 0
      %924 = vmatprep.subr.bf16.mxu0 0
      %925 = vmatpush2.bf16.msra.mxu0 0
      %926 = vmatprep.subr.bf16.mxu0 0
      %927 = vmatpush2.bf16.msra.mxu0 0
      %928 = vmatprep.subr.bf16.mxu0 0
      %929 = vmatpush2.bf16.msra.mxu0 0
      %930 = vmatprep.subr.bf16.mxu0 0
      %931 = vmatpush2.bf16.msra.mxu0 0
      %932 = vmatprep.mubr.bf16.mxu0 0
      %933 = vmatmul.mubr.bf16.gmra.mxu0 %v675
      %v934 = vpop.f32.mrf.mxu0
      %v935 = vadd.f32 0.0, %v934
      %v936 = vpop.f32.mrf.mxu0
      %v937 = vpop.f32.mrf.mxu0
      %v938 = vadd.f32 0.0, %v937
      %v939 = vpop.f32.mrf.mxu0
      %940 = vdwg.mxu0
      %v941 = vld [vmem:[#allocation6] sm:$0xff]
      %v942 = vld [vmem:[#allocation6 + $0x8] sm:$0xff]
      %v943 = vld [vmem:[#allocation6 + $0x10] sm:$0xff]
      %v944 = vld [vmem:[#allocation6 + $0x18] sm:$0xff]
      %v945 = vld [vmem:[#allocation6 + $0x20] sm:$0xff]
      %v946 = vld [vmem:[#allocation6 + $0x28] sm:$0xff]
      %v947 = vld [vmem:[#allocation6 + $0x30] sm:$0xff]
      %v948 = vld [vmem:[#allocation6 + $0x38] sm:$0xff]
      %v949 = vld [vmem:[#allocation6 + $0x40] sm:$0xff]
      %v950 = vld [vmem:[#allocation6 + $0x48] sm:$0xff]
      %v951 = vld [vmem:[#allocation6 + $0x50] sm:$0xff]
      %v952 = vld [vmem:[#allocation6 + $0x58] sm:$0xff]
      %v953 = vld [vmem:[#allocation6 + $0x60] sm:$0xff]
      %v954 = vld [vmem:[#allocation6 + $0x68] sm:$0xff]
      %v955 = vld [vmem:[#allocation6 + $0x70] sm:$0xff]
      %v956 = vld [vmem:[#allocation6 + $0x78] sm:$0xff]
      %v957 = vld [vmem:[#allocation6 + $0x80] sm:$0xff]
      %v958 = vld [vmem:[#allocation6 + $0x88] sm:$0xff]
      %v959 = vld [vmem:[#allocation6 + $0x90] sm:$0xff]
      %v960 = vld [vmem:[#allocation6 + $0x98] sm:$0xff]
      %v961 = vld [vmem:[#allocation6 + $0xa0] sm:$0xff]
      %v962 = vld [vmem:[#allocation6 + $0xa8] sm:$0xff]
      %v963 = vld [vmem:[#allocation6 + $0xb0] sm:$0xff]
      %v964 = vld [vmem:[#allocation6 + $0xb8] sm:$0xff]
      %v965 = vld [vmem:[#allocation6 + $0xc0] sm:$0xff]
      %v966 = vld [vmem:[#allocation6 + $0xc8] sm:$0xff]
      %v967 = vld [vmem:[#allocation6 + $0xd0] sm:$0xff]
      %v968 = vld [vmem:[#allocation6 + $0xd8] sm:$0xff]
      %v969 = vld [vmem:[#allocation6 + $0xe0] sm:$0xff]
      %v970 = vld [vmem:[#allocation6 + $0xe8] sm:$0xff]
      %v971 = vld [vmem:[#allocation6 + $0xf0] sm:$0xff]
      %v972 = vld [vmem:[#allocation6 + $0xf8] sm:$0xff]
      %v973 = vpack.c.bf16 %v945, %v941
      %v974 = vpack.c.bf16 %v946, %v942
      %v975 = vpack.c.bf16 %v947, %v943
      %v976 = vpack.c.bf16 %v948, %v944
      %v977 = vpack.c.bf16 %v953, %v949
      %v978 = vpack.c.bf16 %v954, %v950
      %v979 = vpack.c.bf16 %v955, %v951
      %v980 = vpack.c.bf16 %v956, %v952
      %v981 = vpack.c.bf16 %v961, %v957
      %v982 = vpack.c.bf16 %v962, %v958
      %v983 = vpack.c.bf16 %v963, %v959
      %v984 = vpack.c.bf16 %v964, %v960
      %v985 = vpack.c.bf16 %v969, %v965
      %v986 = vpack.c.bf16 %v970, %v966
      %v987 = vpack.c.bf16 %v971, %v967
      %v988 = vpack.c.bf16 %v972, %v968
      %v989 = vpack.c.bf16 %v897, %v894
      %v990 = vpack.c.bf16 %v938, %v935
      %v992 = vsel %vm162, %v989, 0
      %v995 = vsel %vm162, %v990, 0
      %997 = vmatprep.subr.bf16.mxu0 0
      %998 = vmatpush1.bf16.msra.mxu0 0
      %999 = vmatprep.subr.bf16.mxu0 0
      %1000 = vmatpush1.bf16.msra.mxu0 0
      %1001 = vmatprep.subr.bf16.mxu0 0
      %1002 = vmatpush1.bf16.msra.mxu0 0
      %1003 = vmatprep.subr.bf16.mxu0 0
      %1004 = vmatpush1.bf16.msra.mxu0 0
      %1005 = vmatprep.subr.bf16.mxu0 0
      %1006 = vmatpush1.bf16.msra.mxu0 0
      %1007 = vmatprep.subr.bf16.mxu0 0
      %1008 = vmatpush1.bf16.msra.mxu0 0
      %1009 = vmatprep.subr.bf16.mxu0 %v986
      %1010 = vmatpush1.bf16.msra.mxu0 %v985
      %1011 = vmatprep.subr.bf16.mxu0 %v982
      %1012 = vmatpush1.bf16.msra.mxu0 %v981
      %1013 = vmatprep.subr.bf16.mxu0 0
      %1014 = vmatpush2.bf16.msra.mxu0 0
      %1015 = vmatprep.subr.bf16.mxu0 0
      %1016 = vmatpush2.bf16.msra.mxu0 0
      %1017 = vmatprep.subr.bf16.mxu0 0
      %1018 = vmatpush2.bf16.msra.mxu0 0
      %1019 = vmatprep.subr.bf16.mxu0 0
      %1020 = vmatpush2.bf16.msra.mxu0 0
      %1021 = vmatprep.subr.bf16.mxu0 0
      %1022 = vmatpush2.bf16.msra.mxu0 0
      %1023 = vmatprep.subr.bf16.mxu0 0
      %1024 = vmatpush2.bf16.msra.mxu0 0
      %1025 = vmatprep.subr.bf16.mxu0 0
      %1026 = vmatpush2.bf16.msra.mxu0 0
      %1027 = vmatprep.subr.bf16.mxu0 0
      %1028 = vmatpush2.bf16.msra.mxu0 0
      %1029 = vmatprep.mubr.bf16.mxu0 0
      %1030 = vmatmul.mubr.bf16.gmra.mxu0 %v992
      %v1031 = vpop.f32.mrf.mxu0
      %v1032 = vadd.f32 0.0, %v1031
      %v1033 = vpop.f32.mrf.mxu0
      %v1034 = vadd.f32 0.0, %v1033
      %v1035 = vpop.f32.mrf.mxu0
      %v1036 = vadd.f32 0.0, %v1035
      %v1037 = vpop.f32.mrf.mxu0
      %v1038 = vadd.f32 0.0, %v1037
      %1039 = vmatprep.mubr.bf16.mxu0 0
      %1040 = vmatmul.mubr.bf16.gmra.mxu0 %v995
      %v1041 = vpop.f32.mrf.mxu0
      %v1042 = vadd.f32 0.0, %v1041
      %v1043 = vpop.f32.mrf.mxu0
      %v1044 = vadd.f32 0.0, %v1043
      %v1045 = vpop.f32.mrf.mxu0
      %v1046 = vadd.f32 0.0, %v1045
      %v1047 = vpop.f32.mrf.mxu0
      %v1048 = vadd.f32 0.0, %v1047
      %1049 = vdwg.mxu0
      %1050 = vmatprep.subr.bf16.mxu0 0
      %1051 = vmatpush1.bf16.msra.mxu0 0
      %1052 = vmatprep.subr.bf16.mxu0 0
      %1053 = vmatpush1.bf16.msra.mxu0 0
      %1054 = vmatprep.subr.bf16.mxu0 0
      %1055 = vmatpush1.bf16.msra.mxu0 0
      %1056 = vmatprep.subr.bf16.mxu0 0
      %1057 = vmatpush1.bf16.msra.mxu0 0
      %1058 = vmatprep.subr.bf16.mxu0 0
      %1059 = vmatpush1.bf16.msra.mxu0 0
      %1060 = vmatprep.subr.bf16.mxu0 0
      %1061 = vmatpush1.bf16.msra.mxu0 0
      %1062 = vmatprep.subr.bf16.mxu0 %v988
      %1063 = vmatpush1.bf16.msra.mxu0 %v987
      %1064 = vmatprep.subr.bf16.mxu0 %v984
      %1065 = vmatpush1.bf16.msra.mxu0 %v983
      %1066 = vmatprep.subr.bf16.mxu0 0
      %1067 = vmatpush2.bf16.msra.mxu0 0
      %1068 = vmatprep.subr.bf16.mxu0 0
      %1069 = vmatpush2.bf16.msra.mxu0 0
      %1070 = vmatprep.subr.bf16.mxu0 0
      %1071 = vmatpush2.bf16.msra.mxu0 0
      %1072 = vmatprep.subr.bf16.mxu0 0
      %1073 = vmatpush2.bf16.msra.mxu0 0
      %1074 = vmatprep.subr.bf16.mxu0 0
      %1075 = vmatpush2.bf16.msra.mxu0 0
      %1076 = vmatprep.subr.bf16.mxu0 0
      %1077 = vmatpush2.bf16.msra.mxu0 0
      %1078 = vmatprep.subr.bf16.mxu0 0
      %1079 = vmatpush2.bf16.msra.mxu0 0
      %1080 = vmatprep.subr.bf16.mxu0 0
      %1081 = vmatpush2.bf16.msra.mxu0 0
      %1082 = vmatprep.mubr.bf16.mxu0 0
      %1083 = vmatmul.mubr.bf16.gmra.mxu0 %v992
      %v1084 = vpop.f32.mrf.mxu0
      %v1085 = vadd.f32 0.0, %v1084
      %v1086 = vpop.f32.mrf.mxu0
      %v1087 = vadd.f32 0.0, %v1086
      %v1088 = vpop.f32.mrf.mxu0
      %v1089 = vadd.f32 0.0, %v1088
      %v1090 = vpop.f32.mrf.mxu0
      %v1091 = vadd.f32 0.0, %v1090
      %1092 = vmatprep.mubr.bf16.mxu0 0
      %1093 = vmatmul.mubr.bf16.gmra.mxu0 %v995
      %v1094 = vpop.f32.mrf.mxu0
      %v1095 = vadd.f32 0.0, %v1094
      %v1096 = vpop.f32.mrf.mxu0
      %v1097 = vadd.f32 0.0, %v1096
      %v1098 = vpop.f32.mrf.mxu0
      %v1099 = vadd.f32 0.0, %v1098
      %v1100 = vpop.f32.mrf.mxu0
      %v1101 = vadd.f32 0.0, %v1100
      %1102 = vdwg.mxu0
      %v1104 = vsel %vm162, %v857, 0
      %v1107 = vsel %vm162, %v858, 0
      %1109 = vmatprep.subr.bf16.mxu0 0
      %1110 = vmatpush1.bf16.msra.mxu0 0
      %1111 = vmatprep.subr.bf16.mxu0 0
      %1112 = vmatpush1.bf16.msra.mxu0 0
      %1113 = vmatprep.subr.bf16.mxu0 0
      %1114 = vmatpush1.bf16.msra.mxu0 0
      %1115 = vmatprep.subr.bf16.mxu0 0
      %1116 = vmatpush1.bf16.msra.mxu0 0
      %1117 = vmatprep.subr.bf16.mxu0 0
      %1118 = vmatpush1.bf16.msra.mxu0 0
      %1119 = vmatprep.subr.bf16.mxu0 0
      %1120 = vmatpush1.bf16.msra.mxu0 0
      %1121 = vmatprep.subr.bf16.mxu0 %v978
      %1122 = vmatpush1.bf16.msra.mxu0 %v977
      %1123 = vmatprep.subr.bf16.mxu0 %v974
      %1124 = vmatpush1.bf16.msra.mxu0 %v973
      %1125 = vmatprep.subr.bf16.mxu0 0
      %1126 = vmatpush2.bf16.msra.mxu0 0
      %1127 = vmatprep.subr.bf16.mxu0 0
      %1128 = vmatpush2.bf16.msra.mxu0 0
      %1129 = vmatprep.subr.bf16.mxu0 0
      %1130 = vmatpush2.bf16.msra.mxu0 0
      %1131 = vmatprep.subr.bf16.mxu0 0
      %1132 = vmatpush2.bf16.msra.mxu0 0
      %1133 = vmatprep.subr.bf16.mxu0 0
      %1134 = vmatpush2.bf16.msra.mxu0 0
      %1135 = vmatprep.subr.bf16.mxu0 0
      %1136 = vmatpush2.bf16.msra.mxu0 0
      %1137 = vmatprep.subr.bf16.mxu0 0
      %1138 = vmatpush2.bf16.msra.mxu0 0
      %1139 = vmatprep.subr.bf16.mxu0 0
      %1140 = vmatpush2.bf16.msra.mxu0 0
      %1141 = vmatprep.mubr.bf16.mxu0 0
      %1142 = vmatmul.mubr.bf16.gmra.mxu0 %v1104
      %v1143 = vpop.f32.mrf.mxu0
      %v1144 = vadd.f32 %v1032, %v1143
      %v1145 = vpop.f32.mrf.mxu0
      %v1146 = vadd.f32 %v1034, %v1145
      %v1147 = vpop.f32.mrf.mxu0
      %v1148 = vadd.f32 %v1036, %v1147
      %v1149 = vpop.f32.mrf.mxu0
      %v1150 = vadd.f32 %v1038, %v1149
      %1151 = vmatprep.mubr.bf16.mxu0 0
      %1152 = vmatmul.mubr.bf16.gmra.mxu0 %v1107
      %v1153 = vpop.f32.mrf.mxu0
      %v1154 = vadd.f32 %v1042, %v1153
      %v1155 = vpop.f32.mrf.mxu0
      %v1156 = vadd.f32 %v1044, %v1155
      %v1157 = vpop.f32.mrf.mxu0
      %v1158 = vadd.f32 %v1046, %v1157
      %v1159 = vpop.f32.mrf.mxu0
      %v1160 = vadd.f32 %v1048, %v1159
      %1161 = vdwg.mxu0
      %1162 = vmatprep.subr.bf16.mxu0 0
      %1163 = vmatpush1.bf16.msra.mxu0 0
      %1164 = vmatprep.subr.bf16.mxu0 0
      %1165 = vmatpush1.bf16.msra.mxu0 0
      %1166 = vmatprep.subr.bf16.mxu0 0
      %1167 = vmatpush1.bf16.msra.mxu0 0
      %1168 = vmatprep.subr.bf16.mxu0 0
      %1169 = vmatpush1.bf16.msra.mxu0 0
      %1170 = vmatprep.subr.bf16.mxu0 0
      %1171 = vmatpush1.bf16.msra.mxu0 0
      %1172 = vmatprep.subr.bf16.mxu0 0
      %1173 = vmatpush1.bf16.msra.mxu0 0
      %1174 = vmatprep.subr.bf16.mxu0 %v980
      %1175 = vmatpush1.bf16.msra.mxu0 %v979
      %1176 = vmatprep.subr.bf16.mxu0 %v976
      %1177 = vmatpush1.bf16.msra.mxu0 %v975
      %1178 = vmatprep.subr.bf16.mxu0 0
      %1179 = vmatpush2.bf16.msra.mxu0 0
      %1180 = vmatprep.subr.bf16.mxu0 0
      %1181 = vmatpush2.bf16.msra.mxu0 0
      %1182 = vmatprep.subr.bf16.mxu0 0
      %1183 = vmatpush2.bf16.msra.mxu0 0
      %1184 = vmatprep.subr.bf16.mxu0 0
      %1185 = vmatpush2.bf16.msra.mxu0 0
      %1186 = vmatprep.subr.bf16.mxu0 0
      %1187 = vmatpush2.bf16.msra.mxu0 0
      %1188 = vmatprep.subr.bf16.mxu0 0
      %1189 = vmatpush2.bf16.msra.mxu0 0
      %1190 = vmatprep.subr.bf16.mxu0 0
      %1191 = vmatpush2.bf16.msra.mxu0 0
      %1192 = vmatprep.subr.bf16.mxu0 0
      %1193 = vmatpush2.bf16.msra.mxu0 0
      %1194 = vmatprep.mubr.bf16.mxu0 0
      %1195 = vmatmul.mubr.bf16.gmra.mxu0 %v1104
      %v1196 = vpop.f32.mrf.mxu0
      %v1197 = vadd.f32 %v1085, %v1196
      %v1198 = vpop.f32.mrf.mxu0
      %v1199 = vadd.f32 %v1087, %v1198
      %v1200 = vpop.f32.mrf.mxu0
      %v1201 = vadd.f32 %v1089, %v1200
      %v1202 = vpop.f32.mrf.mxu0
      %v1203 = vadd.f32 %v1091, %v1202
      %1204 = vmatprep.mubr.bf16.mxu0 0
      %1205 = vmatmul.mubr.bf16.gmra.mxu0 %v1107
      %v1206 = vpop.f32.mrf.mxu0
      %v1207 = vadd.f32 %v1095, %v1206
      %v1208 = vpop.f32.mrf.mxu0
      %v1209 = vadd.f32 %v1097, %v1208
      %v1210 = vpop.f32.mrf.mxu0
      %v1211 = vadd.f32 %v1099, %v1210
      %v1212 = vpop.f32.mrf.mxu0
      %v1213 = vadd.f32 %v1101, %v1212
      %1214 = vdwg.mxu0
      %v1215 = vld [vmem:[%s6] sm:$0xf]
      %v1217 = vlaneseq
      %v1218 = vshrl.u32 %v1217, 7
      %v1219 = vsub.s32 0, %v1218
      %v1220 = vrot.slane %v1215, %v1219
      %v1221 = vlaneseq
      %v1222 = vshrl.u32 %v1221, 7
      %v1223 = vsub.s32 1, %v1222
      %v1224 = vrot.slane %v1215, %v1223
      %v1225 = vlaneseq
      %v1226 = vshrl.u32 %v1225, 7
      %v1227 = vsub.s32 2, %v1226
      %v1228 = vrot.slane %v1215, %v1227
      %v1229 = vlaneseq
      %v1230 = vshrl.u32 %v1229, 7
      %v1231 = vsub.s32 3, %v1230
      %v1232 = vrot.slane %v1215, %v1231
      %v1237 = vadd.f32 %v1144, %v1220
      %v1238 = vadd.f32 %v1146, %v1224
      %v1239 = vadd.f32 %v1197, %v1228
      %v1240 = vadd.f32 %v1199, %v1232
      %v1241 = vadd.f32 %v1148, %v1220
      %v1242 = vadd.f32 %v1150, %v1224
      %v1243 = vadd.f32 %v1201, %v1228
      %v1244 = vadd.f32 %v1203, %v1232
      %v1245 = vadd.f32 %v1154, %v1220
      %v1246 = vadd.f32 %v1156, %v1224
      %v1247 = vadd.f32 %v1207, %v1228
      %v1248 = vadd.f32 %v1209, %v1232
      %v1249 = vadd.f32 %v1158, %v1220
      %v1250 = vadd.f32 %v1160, %v1224
      %v1251 = vadd.f32 %v1211, %v1228
      %v1252 = vadd.f32 %v1213, %v1232
      %v1253 = vmax.f32 %v1237, 0.0
      %v1254 = vmax.f32 %v1238, 0.0
      %v1255 = vmax.f32 %v1239, 0.0
      %v1256 = vmax.f32 %v1240, 0.0
      %v1257 = vmax.f32 %v1241, 0.0
      %v1258 = vmax.f32 %v1242, 0.0
      %v1259 = vmax.f32 %v1243, 0.0
      %v1260 = vmax.f32 %v1244, 0.0
      %v1261 = vmax.f32 %v1245, 0.0
      %v1262 = vmax.f32 %v1246, 0.0
      %v1263 = vmax.f32 %v1247, 0.0
      %v1264 = vmax.f32 %v1248, 0.0
      %v1265 = vmax.f32 %v1249, 0.0
      %v1266 = vmax.f32 %v1250, 0.0
      %v1267 = vmax.f32 %v1251, 0.0
      %v1268 = vmax.f32 %v1252, 0.0
      %v1269 = vpack.c.bf16 %v1257, %v1253
      %v1270 = vpack.c.bf16 %v1258, %v1254
      %v1271 = vpack.c.bf16 %v1259, %v1255
      %v1272 = vpack.c.bf16 %v1260, %v1256
      %v1273 = vpack.c.bf16 %v1265, %v1261
      %v1274 = vpack.c.bf16 %v1266, %v1262
      %v1275 = vpack.c.bf16 %v1267, %v1263
      %v1276 = vpack.c.bf16 %v1268, %v1264
      %1277 = vmatprep.subr.bf16.mxu0 0
      %1278 = vmatpush1.bf16.msra.mxu0 0
      %1279 = vmatprep.subr.bf16.mxu0 0
      %1280 = vmatpush1.bf16.msra.mxu0 0
      %1281 = vmatprep.subr.bf16.mxu0 0
      %1282 = vmatpush1.bf16.msra.mxu0 0
      %1283 = vmatprep.subr.bf16.mxu0 0
      %1284 = vmatpush1.bf16.msra.mxu0 0
      %1285 = vmatprep.subr.bf16.mxu0 0
      %1286 = vmatpush1.bf16.msra.mxu0 0
      %1287 = vmatprep.subr.bf16.mxu0 0
      %1288 = vmatpush1.bf16.msra.mxu0 0
      %1289 = vmatprep.subr.bf16.mxu0 0
      %1290 = vmatpush1.bf16.msra.mxu0 0
      %1291 = vmatprep.subr.bf16.mxu0 %v1270
      %1292 = vmatpush1.bf16.msra.mxu0 %v1269
      %1293 = vmatprep.subr.bf16.mxu0 0
      %1294 = vmatpush2.bf16.msra.mxu0 0
      %1295 = vmatprep.subr.bf16.mxu0 0
      %1296 = vmatpush2.bf16.msra.mxu0 0
      %1297 = vmatprep.subr.bf16.mxu0 0
      %1298 = vmatpush2.bf16.msra.mxu0 0
      %1299 = vmatprep.subr.bf16.mxu0 0
      %1300 = vmatpush2.bf16.msra.mxu0 0
      %1301 = vmatprep.subr.bf16.mxu0 0
      %1302 = vmatpush2.bf16.msra.mxu0 0
      %1303 = vmatprep.subr.bf16.mxu0 0
      %1304 = vmatpush2.bf16.msra.mxu0 0
      %1305 = vmatprep.subr.bf16.mxu0 0
      %1306 = vmatpush2.bf16.msra.mxu0 0
      %1307 = vmatprep.subr.bf16.mxu0 0
      %1308 = vmatpush2.bf16.msra.mxu0 0
      %1309 = vmatprep.mubr.bf16.mxu0 0
      %1310 = vmatmul.mubr.bf16.gmra.mxu0 %v631
      %v1311 = vpop.f32.mrf.mxu0
      %v1312 = vadd.f32 0.0, %v1311
      %v1313 = vpop.f32.mrf.mxu0
      %v1314 = vadd.f32 0.0, %v1313
      %v1315 = vpop.f32.mrf.mxu0
      %v1316 = vadd.f32 0.0, %v1315
      %v1317 = vpop.f32.mrf.mxu0
      %v1318 = vadd.f32 0.0, %v1317
      %1319 = vdwg.mxu0
      %1320 = vmatprep.subr.bf16.mxu0 0
      %1321 = vmatpush1.bf16.msra.mxu0 0
      %1322 = vmatprep.subr.bf16.mxu0 0
      %1323 = vmatpush1.bf16.msra.mxu0 0
      %1324 = vmatprep.subr.bf16.mxu0 0
      %1325 = vmatpush1.bf16.msra.mxu0 0
      %1326 = vmatprep.subr.bf16.mxu0 0
      %1327 = vmatpush1.bf16.msra.mxu0 0
      %1328 = vmatprep.subr.bf16.mxu0 0
      %1329 = vmatpush1.bf16.msra.mxu0 0
      %1330 = vmatprep.subr.bf16.mxu0 0
      %1331 = vmatpush1.bf16.msra.mxu0 0
      %1332 = vmatprep.subr.bf16.mxu0 0
      %1333 = vmatpush1.bf16.msra.mxu0 0
      %1334 = vmatprep.subr.bf16.mxu0 %v1272
      %1335 = vmatpush1.bf16.msra.mxu0 %v1271
      %1336 = vmatprep.subr.bf16.mxu0 0
      %1337 = vmatpush2.bf16.msra.mxu0 0
      %1338 = vmatprep.subr.bf16.mxu0 0
      %1339 = vmatpush2.bf16.msra.mxu0 0
      %1340 = vmatprep.subr.bf16.mxu0 0
      %1341 = vmatpush2.bf16.msra.mxu0 0
      %1342 = vmatprep.subr.bf16.mxu0 0
      %1343 = vmatpush2.bf16.msra.mxu0 0
      %1344 = vmatprep.subr.bf16.mxu0 0
      %1345 = vmatpush2.bf16.msra.mxu0 0
      %1346 = vmatprep.subr.bf16.mxu0 0
      %1347 = vmatpush2.bf16.msra.mxu0 0
      %1348 = vmatprep.subr.bf16.mxu0 0
      %1349 = vmatpush2.bf16.msra.mxu0 0
      %1350 = vmatprep.subr.bf16.mxu0 0
      %1351 = vmatpush2.bf16.msra.mxu0 0
      %1352 = vmatprep.mubr.bf16.mxu0 0
      %1353 = vmatmul.mubr.bf16.gmra.mxu0 %v631
      %v1354 = vpop.f32.mrf.mxu0
      %v1355 = vadd.f32 0.0, %v1354
      %v1356 = vpop.f32.mrf.mxu0
      %v1357 = vadd.f32 0.0, %v1356
      %v1358 = vpop.f32.mrf.mxu0
      %v1359 = vadd.f32 0.0, %v1358
      %v1360 = vpop.f32.mrf.mxu0
      %v1361 = vadd.f32 0.0, %v1360
      %1362 = vdwg.mxu0
      %1363 = vmatprep.subr.bf16.mxu0 0
      %1364 = vmatpush1.bf16.msra.mxu0 0
      %1365 = vmatprep.subr.bf16.mxu0 0
      %1366 = vmatpush1.bf16.msra.mxu0 0
      %1367 = vmatprep.subr.bf16.mxu0 0
      %1368 = vmatpush1.bf16.msra.mxu0 0
      %1369 = vmatprep.subr.bf16.mxu0 0
      %1370 = vmatpush1.bf16.msra.mxu0 0
      %1371 = vmatprep.subr.bf16.mxu0 0
      %1372 = vmatpush1.bf16.msra.mxu0 0
      %1373 = vmatprep.subr.bf16.mxu0 0
      %1374 = vmatpush1.bf16.msra.mxu0 0
      %1375 = vmatprep.subr.bf16.mxu0 0
      %1376 = vmatpush1.bf16.msra.mxu0 0
      %1377 = vmatprep.subr.bf16.mxu0 %v1274
      %1378 = vmatpush1.bf16.msra.mxu0 %v1273
      %1379 = vmatprep.subr.bf16.mxu0 0
      %1380 = vmatpush2.bf16.msra.mxu0 0
      %1381 = vmatprep.subr.bf16.mxu0 0
      %1382 = vmatpush2.bf16.msra.mxu0 0
      %1383 = vmatprep.subr.bf16.mxu0 0
      %1384 = vmatpush2.bf16.msra.mxu0 0
      %1385 = vmatprep.subr.bf16.mxu0 0
      %1386 = vmatpush2.bf16.msra.mxu0 0
      %1387 = vmatprep.subr.bf16.mxu0 0
      %1388 = vmatpush2.bf16.msra.mxu0 0
      %1389 = vmatprep.subr.bf16.mxu0 0
      %1390 = vmatpush2.bf16.msra.mxu0 0
      %1391 = vmatprep.subr.bf16.mxu0 0
      %1392 = vmatpush2.bf16.msra.mxu0 0
      %1393 = vmatprep.subr.bf16.mxu0 0
      %1394 = vmatpush2.bf16.msra.mxu0 0
      %1395 = vmatprep.mubr.bf16.mxu0 0
      %1396 = vmatmul.mubr.bf16.gmra.mxu0 %v675
      %v1397 = vpop.f32.mrf.mxu0
      %v1398 = vadd.f32 0.0, %v1397
      %v1399 = vpop.f32.mrf.mxu0
      %v1400 = vadd.f32 0.0, %v1399
      %v1401 = vpop.f32.mrf.mxu0
      %v1402 = vadd.f32 0.0, %v1401
      %v1403 = vpop.f32.mrf.mxu0
      %v1404 = vadd.f32 0.0, %v1403
      %1405 = vdwg.mxu0
      %1406 = vmatprep.subr.bf16.mxu0 0
      %1407 = vmatpush1.bf16.msra.mxu0 0
      %1408 = vmatprep.subr.bf16.mxu0 0
      %1409 = vmatpush1.bf16.msra.mxu0 0
      %1410 = vmatprep.subr.bf16.mxu0 0
      %1411 = vmatpush1.bf16.msra.mxu0 0
      %1412 = vmatprep.subr.bf16.mxu0 0
      %1413 = vmatpush1.bf16.msra.mxu0 0
      %1414 = vmatprep.subr.bf16.mxu0 0
      %1415 = vmatpush1.bf16.msra.mxu0 0
      %1416 = vmatprep.subr.bf16.mxu0 0
      %1417 = vmatpush1.bf16.msra.mxu0 0
      %1418 = vmatprep.subr.bf16.mxu0 0
      %1419 = vmatpush1.bf16.msra.mxu0 0
      %1420 = vmatprep.subr.bf16.mxu0 %v1276
      %1421 = vmatpush1.bf16.msra.mxu0 %v1275
      %1422 = vmatprep.subr.bf16.mxu0 0
      %1423 = vmatpush2.bf16.msra.mxu0 0
      %1424 = vmatprep.subr.bf16.mxu0 0
      %1425 = vmatpush2.bf16.msra.mxu0 0
      %1426 = vmatprep.subr.bf16.mxu0 0
      %1427 = vmatpush2.bf16.msra.mxu0 0
      %1428 = vmatprep.subr.bf16.mxu0 0
      %1429 = vmatpush2.bf16.msra.mxu0 0
      %1430 = vmatprep.subr.bf16.mxu0 0
      %1431 = vmatpush2.bf16.msra.mxu0 0
      %1432 = vmatprep.subr.bf16.mxu0 0
      %1433 = vmatpush2.bf16.msra.mxu0 0
      %1434 = vmatprep.subr.bf16.mxu0 0
      %1435 = vmatpush2.bf16.msra.mxu0 0
      %1436 = vmatprep.subr.bf16.mxu0 0
      %1437 = vmatpush2.bf16.msra.mxu0 0
      %1438 = vmatprep.mubr.bf16.mxu0 0
      %1439 = vmatmul.mubr.bf16.gmra.mxu0 %v675
      %v1440 = vpop.f32.mrf.mxu0
      %v1441 = vadd.f32 0.0, %v1440
      %v1442 = vpop.f32.mrf.mxu0
      %v1443 = vadd.f32 0.0, %v1442
      %v1444 = vpop.f32.mrf.mxu0
      %v1445 = vadd.f32 0.0, %v1444
      %v1446 = vpop.f32.mrf.mxu0
      %v1447 = vadd.f32 0.0, %v1446
      %1448 = vdwg.mxu0
      %v1449 = vpack.c.bf16 %v1316, %v1312
      %v1450 = vpack.c.bf16 %v1318, %v1314
      %v1451 = vpack.c.bf16 %v1359, %v1355
      %v1452 = vpack.c.bf16 %v1361, %v1357
      %v1453 = vpack.c.bf16 %v1402, %v1398
      %v1454 = vpack.c.bf16 %v1404, %v1400
      %v1455 = vpack.c.bf16 %v1445, %v1441
      %v1456 = vpack.c.bf16 %v1447, %v1443
      %v1457 = vld [vmem:[#allocation8] sm:$0xff]
      %v1458 = vld [vmem:[#allocation8 + $0x8] sm:$0xff]
      %v1459 = vld [vmem:[#allocation8 + $0x10] sm:$0xff]
      %v1460 = vld [vmem:[#allocation8 + $0x18] sm:$0xff]
      %v1461 = vld [vmem:[#allocation8 + $0x20] sm:$0xff]
      %v1462 = vld [vmem:[#allocation8 + $0x28] sm:$0xff]
      %v1463 = vld [vmem:[#allocation8 + $0x30] sm:$0xff]
      %v1464 = vld [vmem:[#allocation8 + $0x38] sm:$0xff]
      %v1465 = vld [vmem:[#allocation8 + $0x40] sm:$0xff]
      %v1466 = vld [vmem:[#allocation8 + $0x48] sm:$0xff]
      %v1467 = vld [vmem:[#allocation8 + $0x50] sm:$0xff]
      %v1468 = vld [vmem:[#allocation8 + $0x58] sm:$0xff]
      %v1469 = vld [vmem:[#allocation8 + $0x60] sm:$0xff]
      %v1470 = vld [vmem:[#allocation8 + $0x68] sm:$0xff]
      %v1471 = vld [vmem:[#allocation8 + $0x70] sm:$0xff]
      %v1472 = vld [vmem:[#allocation8 + $0x78] sm:$0xff]
      %v1473 = vld [vmem:[#allocation8 + $0x80] sm:$0xff]
      %v1474 = vld [vmem:[#allocation8 + $0x88] sm:$0xff]
      %v1475 = vld [vmem:[#allocation8 + $0x90] sm:$0xff]
      %v1476 = vld [vmem:[#allocation8 + $0x98] sm:$0xff]
      %v1477 = vld [vmem:[#allocation8 + $0xa0] sm:$0xff]
      %v1478 = vld [vmem:[#allocation8 + $0xa8] sm:$0xff]
      %v1479 = vld [vmem:[#allocation8 + $0xb0] sm:$0xff]
      %v1480 = vld [vmem:[#allocation8 + $0xb8] sm:$0xff]
      %v1481 = vld [vmem:[#allocation8 + $0xc0] sm:$0xff]
      %v1482 = vld [vmem:[#allocation8 + $0xc8] sm:$0xff]
      %v1483 = vld [vmem:[#allocation8 + $0xd0] sm:$0xff]
      %v1484 = vld [vmem:[#allocation8 + $0xd8] sm:$0xff]
      %v1485 = vld [vmem:[#allocation8 + $0xe0] sm:$0xff]
      %v1486 = vld [vmem:[#allocation8 + $0xe8] sm:$0xff]
      %v1487 = vld [vmem:[#allocation8 + $0xf0] sm:$0xff]
      %v1488 = vld [vmem:[#allocation8 + $0xf8] sm:$0xff]
      %v1489 = vld [vmem:[#allocation8 + $0x100] sm:$0xff]
      %v1490 = vld [vmem:[#allocation8 + $0x108] sm:$0xff]
      %v1491 = vld [vmem:[#allocation8 + $0x110] sm:$0xff]
      %v1492 = vld [vmem:[#allocation8 + $0x118] sm:$0xff]
      %v1493 = vld [vmem:[#allocation8 + $0x120] sm:$0xff]
      %v1494 = vld [vmem:[#allocation8 + $0x128] sm:$0xff]
      %v1495 = vld [vmem:[#allocation8 + $0x130] sm:$0xff]
      %v1496 = vld [vmem:[#allocation8 + $0x138] sm:$0xff]
      %v1497 = vld [vmem:[#allocation8 + $0x140] sm:$0xff]
      %v1498 = vld [vmem:[#allocation8 + $0x148] sm:$0xff]
      %v1499 = vld [vmem:[#allocation8 + $0x150] sm:$0xff]
      %v1500 = vld [vmem:[#allocation8 + $0x158] sm:$0xff]
      %v1501 = vld [vmem:[#allocation8 + $0x160] sm:$0xff]
      %v1502 = vld [vmem:[#allocation8 + $0x168] sm:$0xff]
      %v1503 = vld [vmem:[#allocation8 + $0x170] sm:$0xff]
      %v1504 = vld [vmem:[#allocation8 + $0x178] sm:$0xff]
      %v1505 = vld [vmem:[#allocation8 + $0x180] sm:$0xff]
      %v1506 = vld [vmem:[#allocation8 + $0x188] sm:$0xff]
      %v1507 = vld [vmem:[#allocation8 + $0x190] sm:$0xff]
      %v1508 = vld [vmem:[#allocation8 + $0x198] sm:$0xff]
      %v1509 = vld [vmem:[#allocation8 + $0x1a0] sm:$0xff]
      %v1510 = vld [vmem:[#allocation8 + $0x1a8] sm:$0xff]
      %v1511 = vld [vmem:[#allocation8 + $0x1b0] sm:$0xff]
      %v1512 = vld [vmem:[#allocation8 + $0x1b8] sm:$0xff]
      %v1513 = vld [vmem:[#allocation8 + $0x1c0] sm:$0xff]
      %v1514 = vld [vmem:[#allocation8 + $0x1c8] sm:$0xff]
      %v1515 = vld [vmem:[#allocation8 + $0x1d0] sm:$0xff]
      %v1516 = vld [vmem:[#allocation8 + $0x1d8] sm:$0xff]
      %v1517 = vld [vmem:[#allocation8 + $0x1e0] sm:$0xff]
      %v1518 = vld [vmem:[#allocation8 + $0x1e8] sm:$0xff]
      %v1519 = vld [vmem:[#allocation8 + $0x1f0] sm:$0xff]
      %v1520 = vld [vmem:[#allocation8 + $0x1f8] sm:$0xff]
      %v1521 = vld [vmem:[#allocation8 + $0x200] sm:$0xff]
      %v1522 = vld [vmem:[#allocation8 + $0x208] sm:$0xff]
      %v1523 = vld [vmem:[#allocation8 + $0x210] sm:$0xff]
      %v1524 = vld [vmem:[#allocation8 + $0x218] sm:$0xff]
      %v1525 = vld [vmem:[#allocation8 + $0x220] sm:$0xff]
      %v1526 = vld [vmem:[#allocation8 + $0x228] sm:$0xff]
      %v1527 = vld [vmem:[#allocation8 + $0x230] sm:$0xff]
      %v1528 = vld [vmem:[#allocation8 + $0x238] sm:$0xff]
      %v1529 = vld [vmem:[#allocation8 + $0x240] sm:$0xff]
      %v1530 = vld [vmem:[#allocation8 + $0x248] sm:$0xff]
      %v1531 = vld [vmem:[#allocation8 + $0x250] sm:$0xff]
      %v1532 = vld [vmem:[#allocation8 + $0x258] sm:$0xff]
      %v1533 = vld [vmem:[#allocation8 + $0x260] sm:$0xff]
      %v1534 = vld [vmem:[#allocation8 + $0x268] sm:$0xff]
      %v1535 = vld [vmem:[#allocation8 + $0x270] sm:$0xff]
      %v1536 = vld [vmem:[#allocation8 + $0x278] sm:$0xff]
      %v1537 = vld [vmem:[#allocation8 + $0x280] sm:$0xff]
      %v1538 = vld [vmem:[#allocation8 + $0x288] sm:$0xff]
      %v1539 = vld [vmem:[#allocation8 + $0x290] sm:$0xff]
      %v1540 = vld [vmem:[#allocation8 + $0x298] sm:$0xff]
      %v1541 = vld [vmem:[#allocation8 + $0x2a0] sm:$0xff]
      %v1542 = vld [vmem:[#allocation8 + $0x2a8] sm:$0xff]
      %v1543 = vld [vmem:[#allocation8 + $0x2b0] sm:$0xff]
      %v1544 = vld [vmem:[#allocation8 + $0x2b8] sm:$0xff]
      %v1545 = vld [vmem:[#allocation8 + $0x2c0] sm:$0xff]
      %v1546 = vld [vmem:[#allocation8 + $0x2c8] sm:$0xff]
      %v1547 = vld [vmem:[#allocation8 + $0x2d0] sm:$0xff]
      %v1548 = vld [vmem:[#allocation8 + $0x2d8] sm:$0xff]
      %v1549 = vld [vmem:[#allocation8 + $0x2e0] sm:$0xff]
      %v1550 = vld [vmem:[#allocation8 + $0x2e8] sm:$0xff]
      %v1551 = vld [vmem:[#allocation8 + $0x2f0] sm:$0xff]
      %v1552 = vld [vmem:[#allocation8 + $0x2f8] sm:$0xff]
      %v1553 = vld [vmem:[#allocation8 + $0x300] sm:$0xff]
      %v1554 = vld [vmem:[#allocation8 + $0x308] sm:$0xff]
      %v1555 = vld [vmem:[#allocation8 + $0x310] sm:$0xff]
      %v1556 = vld [vmem:[#allocation8 + $0x318] sm:$0xff]
      %v1557 = vld [vmem:[#allocation8 + $0x320] sm:$0xff]
      %v1558 = vld [vmem:[#allocation8 + $0x328] sm:$0xff]
      %v1559 = vld [vmem:[#allocation8 + $0x330] sm:$0xff]
      %v1560 = vld [vmem:[#allocation8 + $0x338] sm:$0xff]
      %v1561 = vld [vmem:[#allocation8 + $0x340] sm:$0xff]
      %v1562 = vld [vmem:[#allocation8 + $0x348] sm:$0xff]
      %v1563 = vld [vmem:[#allocation8 + $0x350] sm:$0xff]
      %v1564 = vld [vmem:[#allocation8 + $0x358] sm:$0xff]
      %v1565 = vld [vmem:[#allocation8 + $0x360] sm:$0xff]
      %v1566 = vld [vmem:[#allocation8 + $0x368] sm:$0xff]
      %v1567 = vld [vmem:[#allocation8 + $0x370] sm:$0xff]
      %v1568 = vld [vmem:[#allocation8 + $0x378] sm:$0xff]
      %v1569 = vld [vmem:[#allocation8 + $0x380] sm:$0xff]
      %v1570 = vld [vmem:[#allocation8 + $0x388] sm:$0xff]
      %v1571 = vld [vmem:[#allocation8 + $0x390] sm:$0xff]
      %v1572 = vld [vmem:[#allocation8 + $0x398] sm:$0xff]
      %v1573 = vld [vmem:[#allocation8 + $0x3a0] sm:$0xff]
      %v1574 = vld [vmem:[#allocation8 + $0x3a8] sm:$0xff]
      %v1575 = vld [vmem:[#allocation8 + $0x3b0] sm:$0xff]
      %v1576 = vld [vmem:[#allocation8 + $0x3b8] sm:$0xff]
      %v1577 = vld [vmem:[#allocation8 + $0x3c0] sm:$0xff]
      %v1578 = vld [vmem:[#allocation8 + $0x3c8] sm:$0xff]
      %v1579 = vld [vmem:[#allocation8 + $0x3d0] sm:$0xff]
      %v1580 = vld [vmem:[#allocation8 + $0x3d8] sm:$0xff]
      %v1581 = vld [vmem:[#allocation8 + $0x3e0] sm:$0xff]
      %v1582 = vld [vmem:[#allocation8 + $0x3e8] sm:$0xff]
      %v1583 = vld [vmem:[#allocation8 + $0x3f0] sm:$0xff]
      %v1584 = vld [vmem:[#allocation8 + $0x3f8] sm:$0xff]
      %v1585 = vld [vmem:[#allocation8 + $0x400] sm:$0xff]
      %v1586 = vld [vmem:[#allocation8 + $0x408] sm:$0xff]
      %v1587 = vld [vmem:[#allocation8 + $0x410] sm:$0xff]
      %v1588 = vld [vmem:[#allocation8 + $0x418] sm:$0xff]
      %v1589 = vld [vmem:[#allocation8 + $0x420] sm:$0xff]
      %v1590 = vld [vmem:[#allocation8 + $0x428] sm:$0xff]
      %v1591 = vld [vmem:[#allocation8 + $0x430] sm:$0xff]
      %v1592 = vld [vmem:[#allocation8 + $0x438] sm:$0xff]
      %v1593 = vld [vmem:[#allocation8 + $0x440] sm:$0xff]
      %v1594 = vld [vmem:[#allocation8 + $0x448] sm:$0xff]
      %v1595 = vld [vmem:[#allocation8 + $0x450] sm:$0xff]
      %v1596 = vld [vmem:[#allocation8 + $0x458] sm:$0xff]
      %v1597 = vld [vmem:[#allocation8 + $0x460] sm:$0xff]
      %v1598 = vld [vmem:[#allocation8 + $0x468] sm:$0xff]
      %v1599 = vld [vmem:[#allocation8 + $0x470] sm:$0xff]
      %v1600 = vld [vmem:[#allocation8 + $0x478] sm:$0xff]
      %v1601 = vld [vmem:[#allocation8 + $0x480] sm:$0xff]
      %v1602 = vld [vmem:[#allocation8 + $0x488] sm:$0xff]
      %v1603 = vld [vmem:[#allocation8 + $0x490] sm:$0xff]
      %v1604 = vld [vmem:[#allocation8 + $0x498] sm:$0xff]
      %v1605 = vld [vmem:[#allocation8 + $0x4a0] sm:$0xff]
      %v1606 = vld [vmem:[#allocation8 + $0x4a8] sm:$0xff]
      %v1607 = vld [vmem:[#allocation8 + $0x4b0] sm:$0xff]
      %v1608 = vld [vmem:[#allocation8 + $0x4b8] sm:$0xff]
      %v1609 = vld [vmem:[#allocation8 + $0x4c0] sm:$0xff]
      %v1610 = vld [vmem:[#allocation8 + $0x4c8] sm:$0xff]
      %v1611 = vld [vmem:[#allocation8 + $0x4d0] sm:$0xff]
      %v1612 = vld [vmem:[#allocation8 + $0x4d8] sm:$0xff]
      %v1613 = vld [vmem:[#allocation8 + $0x4e0] sm:$0xff]
      %v1614 = vld [vmem:[#allocation8 + $0x4e8] sm:$0xff]
      %v1615 = vld [vmem:[#allocation8 + $0x4f0] sm:$0xff]
      %v1616 = vld [vmem:[#allocation8 + $0x4f8] sm:$0xff]
      %v1617 = vld [vmem:[#allocation8 + $0x500] sm:$0xff]
      %v1618 = vld [vmem:[#allocation8 + $0x508] sm:$0xff]
      %v1619 = vld [vmem:[#allocation8 + $0x510] sm:$0xff]
      %v1620 = vld [vmem:[#allocation8 + $0x518] sm:$0xff]
      %v1621 = vld [vmem:[#allocation8 + $0x520] sm:$0xff]
      %v1622 = vld [vmem:[#allocation8 + $0x528] sm:$0xff]
      %v1623 = vld [vmem:[#allocation8 + $0x530] sm:$0xff]
      %v1624 = vld [vmem:[#allocation8 + $0x538] sm:$0xff]
      %v1625 = vld [vmem:[#allocation8 + $0x540] sm:$0xff]
      %v1626 = vld [vmem:[#allocation8 + $0x548] sm:$0xff]
      %v1627 = vld [vmem:[#allocation8 + $0x550] sm:$0xff]
      %v1628 = vld [vmem:[#allocation8 + $0x558] sm:$0xff]
      %v1629 = vld [vmem:[#allocation8 + $0x560] sm:$0xff]
      %v1630 = vld [vmem:[#allocation8 + $0x568] sm:$0xff]
      %v1631 = vld [vmem:[#allocation8 + $0x570] sm:$0xff]
      %v1632 = vld [vmem:[#allocation8 + $0x578] sm:$0xff]
      %v1633 = vld [vmem:[#allocation8 + $0x580] sm:$0xff]
      %v1634 = vld [vmem:[#allocation8 + $0x588] sm:$0xff]
      %v1635 = vld [vmem:[#allocation8 + $0x590] sm:$0xff]
      %v1636 = vld [vmem:[#allocation8 + $0x598] sm:$0xff]
      %v1637 = vld [vmem:[#allocation8 + $0x5a0] sm:$0xff]
      %v1638 = vld [vmem:[#allocation8 + $0x5a8] sm:$0xff]
      %v1639 = vld [vmem:[#allocation8 + $0x5b0] sm:$0xff]
      %v1640 = vld [vmem:[#allocation8 + $0x5b8] sm:$0xff]
      %v1641 = vld [vmem:[#allocation8 + $0x5c0] sm:$0xff]
      %v1642 = vld [vmem:[#allocation8 + $0x5c8] sm:$0xff]
      %v1643 = vld [vmem:[#allocation8 + $0x5d0] sm:$0xff]
      %v1644 = vld [vmem:[#allocation8 + $0x5d8] sm:$0xff]
      %v1645 = vld [vmem:[#allocation8 + $0x5e0] sm:$0xff]
      %v1646 = vld [vmem:[#allocation8 + $0x5e8] sm:$0xff]
      %v1647 = vld [vmem:[#allocation8 + $0x5f0] sm:$0xff]
      %v1648 = vld [vmem:[#allocation8 + $0x5f8] sm:$0xff]
      %v1649 = vld [vmem:[#allocation8 + $0x600] sm:$0xff]
      %v1650 = vld [vmem:[#allocation8 + $0x608] sm:$0xff]
      %v1651 = vld [vmem:[#allocation8 + $0x610] sm:$0xff]
      %v1652 = vld [vmem:[#allocation8 + $0x618] sm:$0xff]
      %v1653 = vld [vmem:[#allocation8 + $0x620] sm:$0xff]
      %v1654 = vld [vmem:[#allocation8 + $0x628] sm:$0xff]
      %v1655 = vld [vmem:[#allocation8 + $0x630] sm:$0xff]
      %v1656 = vld [vmem:[#allocation8 + $0x638] sm:$0xff]
      %v1657 = vld [vmem:[#allocation8 + $0x640] sm:$0xff]
      %v1658 = vld [vmem:[#allocation8 + $0x648] sm:$0xff]
      %v1659 = vld [vmem:[#allocation8 + $0x650] sm:$0xff]
      %v1660 = vld [vmem:[#allocation8 + $0x658] sm:$0xff]
      %v1661 = vld [vmem:[#allocation8 + $0x660] sm:$0xff]
      %v1662 = vld [vmem:[#allocation8 + $0x668] sm:$0xff]
      %v1663 = vld [vmem:[#allocation8 + $0x670] sm:$0xff]
      %v1664 = vld [vmem:[#allocation8 + $0x678] sm:$0xff]
      %v1665 = vld [vmem:[#allocation8 + $0x680] sm:$0xff]
      %v1666 = vld [vmem:[#allocation8 + $0x688] sm:$0xff]
      %v1667 = vld [vmem:[#allocation8 + $0x690] sm:$0xff]
      %v1668 = vld [vmem:[#allocation8 + $0x698] sm:$0xff]
      %v1669 = vld [vmem:[#allocation8 + $0x6a0] sm:$0xff]
      %v1670 = vld [vmem:[#allocation8 + $0x6a8] sm:$0xff]
      %v1671 = vld [vmem:[#allocation8 + $0x6b0] sm:$0xff]
      %v1672 = vld [vmem:[#allocation8 + $0x6b8] sm:$0xff]
      %v1673 = vld [vmem:[#allocation8 + $0x6c0] sm:$0xff]
      %v1674 = vld [vmem:[#allocation8 + $0x6c8] sm:$0xff]
      %v1675 = vld [vmem:[#allocation8 + $0x6d0] sm:$0xff]
      %v1676 = vld [vmem:[#allocation8 + $0x6d8] sm:$0xff]
      %v1677 = vld [vmem:[#allocation8 + $0x6e0] sm:$0xff]
      %v1678 = vld [vmem:[#allocation8 + $0x6e8] sm:$0xff]
      %v1679 = vld [vmem:[#allocation8 + $0x6f0] sm:$0xff]
      %v1680 = vld [vmem:[#allocation8 + $0x6f8] sm:$0xff]
      %v1681 = vld [vmem:[#allocation8 + $0x700] sm:$0xff]
      %v1682 = vld [vmem:[#allocation8 + $0x708] sm:$0xff]
      %v1683 = vld [vmem:[#allocation8 + $0x710] sm:$0xff]
      %v1684 = vld [vmem:[#allocation8 + $0x718] sm:$0xff]
      %v1685 = vld [vmem:[#allocation8 + $0x720] sm:$0xff]
      %v1686 = vld [vmem:[#allocation8 + $0x728] sm:$0xff]
      %v1687 = vld [vmem:[#allocation8 + $0x730] sm:$0xff]
      %v1688 = vld [vmem:[#allocation8 + $0x738] sm:$0xff]
      %v1689 = vld [vmem:[#allocation8 + $0x740] sm:$0xff]
      %v1690 = vld [vmem:[#allocation8 + $0x748] sm:$0xff]
      %v1691 = vld [vmem:[#allocation8 + $0x750] sm:$0xff]
      %v1692 = vld [vmem:[#allocation8 + $0x758] sm:$0xff]
      %v1693 = vld [vmem:[#allocation8 + $0x760] sm:$0xff]
      %v1694 = vld [vmem:[#allocation8 + $0x768] sm:$0xff]
      %v1695 = vld [vmem:[#allocation8 + $0x770] sm:$0xff]
      %v1696 = vld [vmem:[#allocation8 + $0x778] sm:$0xff]
      %v1697 = vld [vmem:[#allocation8 + $0x780] sm:$0xff]
      %v1698 = vld [vmem:[#allocation8 + $0x788] sm:$0xff]
      %v1699 = vld [vmem:[#allocation8 + $0x790] sm:$0xff]
      %v1700 = vld [vmem:[#allocation8 + $0x798] sm:$0xff]
      %v1701 = vld [vmem:[#allocation8 + $0x7a0] sm:$0xff]
      %v1702 = vld [vmem:[#allocation8 + $0x7a8] sm:$0xff]
      %v1703 = vld [vmem:[#allocation8 + $0x7b0] sm:$0xff]
      %v1704 = vld [vmem:[#allocation8 + $0x7b8] sm:$0xff]
      %v1705 = vld [vmem:[#allocation8 + $0x7c0] sm:$0xff]
      %v1706 = vld [vmem:[#allocation8 + $0x7c8] sm:$0xff]
      %v1707 = vld [vmem:[#allocation8 + $0x7d0] sm:$0xff]
      %v1708 = vld [vmem:[#allocation8 + $0x7d8] sm:$0xff]
      %v1709 = vld [vmem:[#allocation8 + $0x7e0] sm:$0xff]
      %v1710 = vld [vmem:[#allocation8 + $0x7e8] sm:$0xff]
      %v1711 = vld [vmem:[#allocation8 + $0x7f0] sm:$0xff]
      %v1712 = vld [vmem:[#allocation8 + $0x7f8] sm:$0xff]
      %v1713 = vpack.c.bf16 %v1459, %v1457
      %v1714 = vpack.c.bf16 %v1460, %v1458
      %v1715 = vpack.c.bf16 %v1463, %v1461
      %v1716 = vpack.c.bf16 %v1464, %v1462
      %v1717 = vpack.c.bf16 %v1467, %v1465
      %v1718 = vpack.c.bf16 %v1468, %v1466
      %v1719 = vpack.c.bf16 %v1471, %v1469
      %v1720 = vpack.c.bf16 %v1472, %v1470
      %v1721 = vpack.c.bf16 %v1475, %v1473
      %v1722 = vpack.c.bf16 %v1476, %v1474
      %v1723 = vpack.c.bf16 %v1479, %v1477
      %v1724 = vpack.c.bf16 %v1480, %v1478
      %v1725 = vpack.c.bf16 %v1483, %v1481
      %v1726 = vpack.c.bf16 %v1484, %v1482
      %v1727 = vpack.c.bf16 %v1487, %v1485
      %v1728 = vpack.c.bf16 %v1488, %v1486
      %v1729 = vpack.c.bf16 %v1491, %v1489
      %v1730 = vpack.c.bf16 %v1492, %v1490
      %v1731 = vpack.c.bf16 %v1495, %v1493
      %v1732 = vpack.c.bf16 %v1496, %v1494
      %v1733 = vpack.c.bf16 %v1499, %v1497
      %v1734 = vpack.c.bf16 %v1500, %v1498
      %v1735 = vpack.c.bf16 %v1503, %v1501
      %v1736 = vpack.c.bf16 %v1504, %v1502
      %v1737 = vpack.c.bf16 %v1507, %v1505
      %v1738 = vpack.c.bf16 %v1508, %v1506
      %v1739 = vpack.c.bf16 %v1511, %v1509
      %v1740 = vpack.c.bf16 %v1512, %v1510
      %v1741 = vpack.c.bf16 %v1515, %v1513
      %v1742 = vpack.c.bf16 %v1516, %v1514
      %v1743 = vpack.c.bf16 %v1519, %v1517
      %v1744 = vpack.c.bf16 %v1520, %v1518
      %v1745 = vpack.c.bf16 %v1523, %v1521
      %v1746 = vpack.c.bf16 %v1524, %v1522
      %v1747 = vpack.c.bf16 %v1527, %v1525
      %v1748 = vpack.c.bf16 %v1528, %v1526
      %v1749 = vpack.c.bf16 %v1531, %v1529
      %v1750 = vpack.c.bf16 %v1532, %v1530
      %v1751 = vpack.c.bf16 %v1535, %v1533
      %v1752 = vpack.c.bf16 %v1536, %v1534
      %v1753 = vpack.c.bf16 %v1539, %v1537
      %v1754 = vpack.c.bf16 %v1540, %v1538
      %v1755 = vpack.c.bf16 %v1543, %v1541
      %v1756 = vpack.c.bf16 %v1544, %v1542
      %v1757 = vpack.c.bf16 %v1547, %v1545
      %v1758 = vpack.c.bf16 %v1548, %v1546
      %v1759 = vpack.c.bf16 %v1551, %v1549
      %v1760 = vpack.c.bf16 %v1552, %v1550
      %v1761 = vpack.c.bf16 %v1555, %v1553
      %v1762 = vpack.c.bf16 %v1556, %v1554
      %v1763 = vpack.c.bf16 %v1559, %v1557
      %v1764 = vpack.c.bf16 %v1560, %v1558
      %v1765 = vpack.c.bf16 %v1563, %v1561
      %v1766 = vpack.c.bf16 %v1564, %v1562
      %v1767 = vpack.c.bf16 %v1567, %v1565
      %v1768 = vpack.c.bf16 %v1568, %v1566
      %v1769 = vpack.c.bf16 %v1571, %v1569
      %v1770 = vpack.c.bf16 %v1572, %v1570
      %v1771 = vpack.c.bf16 %v1575, %v1573
      %v1772 = vpack.c.bf16 %v1576, %v1574
      %v1773 = vpack.c.bf16 %v1579, %v1577
      %v1774 = vpack.c.bf16 %v1580, %v1578
      %v1775 = vpack.c.bf16 %v1583, %v1581
      %v1776 = vpack.c.bf16 %v1584, %v1582
      %v1777 = vpack.c.bf16 %v1587, %v1585
      %v1778 = vpack.c.bf16 %v1588, %v1586
      %v1779 = vpack.c.bf16 %v1591, %v1589
      %v1780 = vpack.c.bf16 %v1592, %v1590
      %v1781 = vpack.c.bf16 %v1595, %v1593
      %v1782 = vpack.c.bf16 %v1596, %v1594
      %v1783 = vpack.c.bf16 %v1599, %v1597
      %v1784 = vpack.c.bf16 %v1600, %v1598
      %v1785 = vpack.c.bf16 %v1603, %v1601
      %v1786 = vpack.c.bf16 %v1604, %v1602
      %v1787 = vpack.c.bf16 %v1607, %v1605
      %v1788 = vpack.c.bf16 %v1608, %v1606
      %v1789 = vpack.c.bf16 %v1611, %v1609
      %v1790 = vpack.c.bf16 %v1612, %v1610
      %v1791 = vpack.c.bf16 %v1615, %v1613
      %v1792 = vpack.c.bf16 %v1616, %v1614
      %v1793 = vpack.c.bf16 %v1619, %v1617
      %v1794 = vpack.c.bf16 %v1620, %v1618
      %v1795 = vpack.c.bf16 %v1623, %v1621
      %v1796 = vpack.c.bf16 %v1624, %v1622
      %v1797 = vpack.c.bf16 %v1627, %v1625
      %v1798 = vpack.c.bf16 %v1628, %v1626
      %v1799 = vpack.c.bf16 %v1631, %v1629
      %v1800 = vpack.c.bf16 %v1632, %v1630
      %v1801 = vpack.c.bf16 %v1635, %v1633
      %v1802 = vpack.c.bf16 %v1636, %v1634
      %v1803 = vpack.c.bf16 %v1639, %v1637
      %v1804 = vpack.c.bf16 %v1640, %v1638
      %v1805 = vpack.c.bf16 %v1643, %v1641
      %v1806 = vpack.c.bf16 %v1644, %v1642
      %v1807 = vpack.c.bf16 %v1647, %v1645
      %v1808 = vpack.c.bf16 %v1648, %v1646
      %v1809 = vpack.c.bf16 %v1651, %v1649
      %v1810 = vpack.c.bf16 %v1652, %v1650
      %v1811 = vpack.c.bf16 %v1655, %v1653
      %v1812 = vpack.c.bf16 %v1656, %v1654
      %v1813 = vpack.c.bf16 %v1659, %v1657
      %v1814 = vpack.c.bf16 %v1660, %v1658
      %v1815 = vpack.c.bf16 %v1663, %v1661
      %v1816 = vpack.c.bf16 %v1664, %v1662
      %v1817 = vpack.c.bf16 %v1667, %v1665
      %v1818 = vpack.c.bf16 %v1668, %v1666
      %v1819 = vpack.c.bf16 %v1671, %v1669
      %v1820 = vpack.c.bf16 %v1672, %v1670
      %v1821 = vpack.c.bf16 %v1675, %v1673
      %v1822 = vpack.c.bf16 %v1676, %v1674
      %v1823 = vpack.c.bf16 %v1679, %v1677
      %v1824 = vpack.c.bf16 %v1680, %v1678
      %v1825 = vpack.c.bf16 %v1683, %v1681
      %v1826 = vpack.c.bf16 %v1684, %v1682
      %v1827 = vpack.c.bf16 %v1687, %v1685
      %v1828 = vpack.c.bf16 %v1688, %v1686
      %v1829 = vpack.c.bf16 %v1691, %v1689
      %v1830 = vpack.c.bf16 %v1692, %v1690
      %v1831 = vpack.c.bf16 %v1695, %v1693
      %v1832 = vpack.c.bf16 %v1696, %v1694
      %v1833 = vpack.c.bf16 %v1699, %v1697
      %v1834 = vpack.c.bf16 %v1700, %v1698
      %v1835 = vpack.c.bf16 %v1703, %v1701
      %v1836 = vpack.c.bf16 %v1704, %v1702
      %v1837 = vpack.c.bf16 %v1707, %v1705
      %v1838 = vpack.c.bf16 %v1708, %v1706
      %v1839 = vpack.c.bf16 %v1711, %v1709
      %v1840 = vpack.c.bf16 %v1712, %v1710
      %v1841 = vld [vmem:[%s8] sm:$0x3]
      %v1843 = vlaneseq
      %v1844 = vshrl.u32 %v1843, 7
      %v1845 = vsub.s32 0, %v1844
      %v1846 = vrot.slane %v1841, %v1845
      %v1847 = vlaneseq
      %v1848 = vshrl.u32 %v1847, 7
      %v1849 = vsub.s32 1, %v1848
      %v1850 = vrot.slane %v1841, %v1849
      %1853 = vmatprep.subr.bf16.mxu0 %v1728
      %1854 = vmatpush1.bf16.msra.mxu0 %v1727
      %1855 = vmatprep.subr.bf16.mxu0 %v1726
      %1856 = vmatpush1.bf16.msra.mxu0 %v1725
      %1857 = vmatprep.subr.bf16.mxu0 %v1724
      %1858 = vmatpush1.bf16.msra.mxu0 %v1723
      %1859 = vmatprep.subr.bf16.mxu0 %v1722
      %1860 = vmatpush1.bf16.msra.mxu0 %v1721
      %1861 = vmatprep.subr.bf16.mxu0 %v1720
      %1862 = vmatpush1.bf16.msra.mxu0 %v1719
      %1863 = vmatprep.subr.bf16.mxu0 %v1718
      %1864 = vmatpush1.bf16.msra.mxu0 %v1717
      %1865 = vmatprep.subr.bf16.mxu0 %v1716
      %1866 = vmatpush1.bf16.msra.mxu0 %v1715
      %1867 = vmatprep.subr.bf16.mxu0 %v1714
      %1868 = vmatpush1.bf16.msra.mxu0 %v1713
      %1869 = vmatprep.subr.bf16.mxu0 %v1744
      %1870 = vmatpush2.bf16.msra.mxu0 %v1743
      %1871 = vmatprep.subr.bf16.mxu0 %v1742
      %1872 = vmatpush2.bf16.msra.mxu0 %v1741
      %1873 = vmatprep.subr.bf16.mxu0 %v1740
      %1874 = vmatpush2.bf16.msra.mxu0 %v1739
      %1875 = vmatprep.subr.bf16.mxu0 %v1738
      %1876 = vmatpush2.bf16.msra.mxu0 %v1737
      %1877 = vmatprep.subr.bf16.mxu0 %v1736
      %1878 = vmatpush2.bf16.msra.mxu0 %v1735
      %1879 = vmatprep.subr.bf16.mxu0 %v1734
      %1880 = vmatpush2.bf16.msra.mxu0 %v1733
      %1881 = vmatprep.subr.bf16.mxu0 %v1732
      %1882 = vmatpush2.bf16.msra.mxu0 %v1731
      %1883 = vmatprep.subr.bf16.mxu0 %v1730
      %1884 = vmatpush2.bf16.msra.mxu0 %v1729
      %1885 = vmatprep.mubr.bf16.mxu0 %v1270
      %1886 = vmatmul.mubr.bf16.gmra.mxu0 %v1269
      %v1887 = vpop.f32.mrf.mxu0
      %v1888 = vadd.f32 %v1846, %v1887
      %v1889 = vpop.f32.mrf.mxu0
      %v1890 = vadd.f32 %v1850, %v1889
      %v1891 = vpop.f32.mrf.mxu0
      %v1892 = vadd.f32 %v1846, %v1891
      %v1893 = vpop.f32.mrf.mxu0
      %v1894 = vadd.f32 %v1850, %v1893
      %1895 = vmatprep.mubr.bf16.mxu0 %v1274
      %1896 = vmatmul.mubr.bf16.gmra.mxu0 %v1273
      %v1897 = vpop.f32.mrf.mxu0
      %v1898 = vadd.f32 %v1846, %v1897
      %v1899 = vpop.f32.mrf.mxu0
      %v1900 = vadd.f32 %v1850, %v1899
      %v1901 = vpop.f32.mrf.mxu0
      %v1902 = vadd.f32 %v1846, %v1901
      %v1903 = vpop.f32.mrf.mxu0
      %v1904 = vadd.f32 %v1850, %v1903
      %1905 = vdwg.mxu0
      %1906 = vmatprep.subr.bf16.mxu0 %v1760
      %1907 = vmatpush1.bf16.msra.mxu0 %v1759
      %1908 = vmatprep.subr.bf16.mxu0 %v1758
      %1909 = vmatpush1.bf16.msra.mxu0 %v1757
      %1910 = vmatprep.subr.bf16.mxu0 %v1756
      %1911 = vmatpush1.bf16.msra.mxu0 %v1755
      %1912 = vmatprep.subr.bf16.mxu0 %v1754
      %1913 = vmatpush1.bf16.msra.mxu0 %v1753
      %1914 = vmatprep.subr.bf16.mxu0 %v1752
      %1915 = vmatpush1.bf16.msra.mxu0 %v1751
      %1916 = vmatprep.subr.bf16.mxu0 %v1750
      %1917 = vmatpush1.bf16.msra.mxu0 %v1749
      %1918 = vmatprep.subr.bf16.mxu0 %v1748
      %1919 = vmatpush1.bf16.msra.mxu0 %v1747
      %1920 = vmatprep.subr.bf16.mxu0 %v1746
      %1921 = vmatpush1.bf16.msra.mxu0 %v1745
      %1922 = vmatprep.subr.bf16.mxu0 %v1776
      %1923 = vmatpush2.bf16.msra.mxu0 %v1775
      %1924 = vmatprep.subr.bf16.mxu0 %v1774
      %1925 = vmatpush2.bf16.msra.mxu0 %v1773
      %1926 = vmatprep.subr.bf16.mxu0 %v1772
      %1927 = vmatpush2.bf16.msra.mxu0 %v1771
      %1928 = vmatprep.subr.bf16.mxu0 %v1770
      %1929 = vmatpush2.bf16.msra.mxu0 %v1769
      %1930 = vmatprep.subr.bf16.mxu0 %v1768
      %1931 = vmatpush2.bf16.msra.mxu0 %v1767
      %1932 = vmatprep.subr.bf16.mxu0 %v1766
      %1933 = vmatpush2.bf16.msra.mxu0 %v1765
      %1934 = vmatprep.subr.bf16.mxu0 %v1764
      %1935 = vmatpush2.bf16.msra.mxu0 %v1763
      %1936 = vmatprep.subr.bf16.mxu0 %v1762
      %1937 = vmatpush2.bf16.msra.mxu0 %v1761
      %1938 = vmatprep.mubr.bf16.mxu0 %v1272
      %1939 = vmatmul.mubr.bf16.gmra.mxu0 %v1271
      %v1940 = vpop.f32.mrf.mxu0
      %v1941 = vadd.f32 %v1888, %v1940
      %v1942 = vpop.f32.mrf.mxu0
      %v1943 = vadd.f32 %v1890, %v1942
      %v1944 = vpop.f32.mrf.mxu0
      %v1945 = vadd.f32 %v1892, %v1944
      %v1946 = vpop.f32.mrf.mxu0
      %v1947 = vadd.f32 %v1894, %v1946
      %1948 = vmatprep.mubr.bf16.mxu0 %v1276
      %1949 = vmatmul.mubr.bf16.gmra.mxu0 %v1275
      %v1950 = vpop.f32.mrf.mxu0
      %v1951 = vadd.f32 %v1898, %v1950
      %v1952 = vpop.f32.mrf.mxu0
      %v1953 = vadd.f32 %v1900, %v1952
      %v1954 = vpop.f32.mrf.mxu0
      %v1955 = vadd.f32 %v1902, %v1954
      %v1956 = vpop.f32.mrf.mxu0
      %v1957 = vadd.f32 %v1904, %v1956
      %1958 = vdwg.mxu0
      %1959 = vmatprep.subr.bf16.mxu0 %v1792
      %1960 = vmatpush1.bf16.msra.mxu0 %v1791
      %1961 = vmatprep.subr.bf16.mxu0 %v1790
      %1962 = vmatpush1.bf16.msra.mxu0 %v1789
      %1963 = vmatprep.subr.bf16.mxu0 %v1788
      %1964 = vmatpush1.bf16.msra.mxu0 %v1787
      %1965 = vmatprep.subr.bf16.mxu0 %v1786
      %1966 = vmatpush1.bf16.msra.mxu0 %v1785
      %1967 = vmatprep.subr.bf16.mxu0 %v1784
      %1968 = vmatpush1.bf16.msra.mxu0 %v1783
      %1969 = vmatprep.subr.bf16.mxu0 %v1782
      %1970 = vmatpush1.bf16.msra.mxu0 %v1781
      %1971 = vmatprep.subr.bf16.mxu0 %v1780
      %1972 = vmatpush1.bf16.msra.mxu0 %v1779
      %1973 = vmatprep.subr.bf16.mxu0 %v1778
      %1974 = vmatpush1.bf16.msra.mxu0 %v1777
      %1975 = vmatprep.subr.bf16.mxu0 %v1808
      %1976 = vmatpush2.bf16.msra.mxu0 %v1807
      %1977 = vmatprep.subr.bf16.mxu0 %v1806
      %1978 = vmatpush2.bf16.msra.mxu0 %v1805
      %1979 = vmatprep.subr.bf16.mxu0 %v1804
      %1980 = vmatpush2.bf16.msra.mxu0 %v1803
      %1981 = vmatprep.subr.bf16.mxu0 %v1802
      %1982 = vmatpush2.bf16.msra.mxu0 %v1801
      %1983 = vmatprep.subr.bf16.mxu0 %v1800
      %1984 = vmatpush2.bf16.msra.mxu0 %v1799
      %1985 = vmatprep.subr.bf16.mxu0 %v1798
      %1986 = vmatpush2.bf16.msra.mxu0 %v1797
      %1987 = vmatprep.subr.bf16.mxu0 %v1796
      %1988 = vmatpush2.bf16.msra.mxu0 %v1795
      %1989 = vmatprep.subr.bf16.mxu0 %v1794
      %1990 = vmatpush2.bf16.msra.mxu0 %v1793
      %1991 = vmatprep.mubr.bf16.mxu0 %v1450
      %1992 = vmatmul.mubr.bf16.gmra.mxu0 %v1449
      %v1993 = vpop.f32.mrf.mxu0
      %v1994 = vadd.f32 %v1941, %v1993
      %v1995 = vpop.f32.mrf.mxu0
      %v1996 = vadd.f32 %v1943, %v1995
      %v1997 = vpop.f32.mrf.mxu0
      %v1998 = vadd.f32 %v1945, %v1997
      %v1999 = vpop.f32.mrf.mxu0
      %v2000 = vadd.f32 %v1947, %v1999
      %2001 = vmatprep.mubr.bf16.mxu0 %v1454
      %2002 = vmatmul.mubr.bf16.gmra.mxu0 %v1453
      %v2003 = vpop.f32.mrf.mxu0
      %v2004 = vadd.f32 %v1951, %v2003
      %v2005 = vpop.f32.mrf.mxu0
      %v2006 = vadd.f32 %v1953, %v2005
      %v2007 = vpop.f32.mrf.mxu0
      %v2008 = vadd.f32 %v1955, %v2007
      %v2009 = vpop.f32.mrf.mxu0
      %v2010 = vadd.f32 %v1957, %v2009
      %2011 = vdwg.mxu0
      %2012 = vmatprep.subr.bf16.mxu0 %v1824
      %2013 = vmatpush1.bf16.msra.mxu0 %v1823
      %2014 = vmatprep.subr.bf16.mxu0 %v1822
      %2015 = vmatpush1.bf16.msra.mxu0 %v1821
      %2016 = vmatprep.subr.bf16.mxu0 %v1820
      %2017 = vmatpush1.bf16.msra.mxu0 %v1819
      %2018 = vmatprep.subr.bf16.mxu0 %v1818
      %2019 = vmatpush1.bf16.msra.mxu0 %v1817
      %2020 = vmatprep.subr.bf16.mxu0 %v1816
      %2021 = vmatpush1.bf16.msra.mxu0 %v1815
      %2022 = vmatprep.subr.bf16.mxu0 %v1814
      %2023 = vmatpush1.bf16.msra.mxu0 %v1813
      %2024 = vmatprep.subr.bf16.mxu0 %v1812
      %2025 = vmatpush1.bf16.msra.mxu0 %v1811
      %2026 = vmatprep.subr.bf16.mxu0 %v1810
      %2027 = vmatpush1.bf16.msra.mxu0 %v1809
      %2028 = vmatprep.subr.bf16.mxu0 %v1840
      %2029 = vmatpush2.bf16.msra.mxu0 %v1839
      %2030 = vmatprep.subr.bf16.mxu0 %v1838
      %2031 = vmatpush2.bf16.msra.mxu0 %v1837
      %2032 = vmatprep.subr.bf16.mxu0 %v1836
      %2033 = vmatpush2.bf16.msra.mxu0 %v1835
      %2034 = vmatprep.subr.bf16.mxu0 %v1834
      %2035 = vmatpush2.bf16.msra.mxu0 %v1833
      %2036 = vmatprep.subr.bf16.mxu0 %v1832
      %2037 = vmatpush2.bf16.msra.mxu0 %v1831
      %2038 = vmatprep.subr.bf16.mxu0 %v1830
      %2039 = vmatpush2.bf16.msra.mxu0 %v1829
      %2040 = vmatprep.subr.bf16.mxu0 %v1828
      %2041 = vmatpush2.bf16.msra.mxu0 %v1827
      %2042 = vmatprep.subr.bf16.mxu0 %v1826
      %2043 = vmatpush2.bf16.msra.mxu0 %v1825
      %2044 = vmatprep.mubr.bf16.mxu0 %v1452
      %2045 = vmatmul.mubr.bf16.gmra.mxu0 %v1451
      %v2046 = vpop.f32.mrf.mxu0
      %v2047 = vadd.f32 %v1994, %v2046
      %v2048 = vpop.f32.mrf.mxu0
      %v2049 = vadd.f32 %v1996, %v2048
      %v2050 = vpop.f32.mrf.mxu0
      %v2051 = vadd.f32 %v1998, %v2050
      %v2052 = vpop.f32.mrf.mxu0
      %v2053 = vadd.f32 %v2000, %v2052
      %2054 = vmatprep.mubr.bf16.mxu0 %v1456
      %2055 = vmatmul.mubr.bf16.gmra.mxu0 %v1455
      %v2056 = vpop.f32.mrf.mxu0
      %v2057 = vadd.f32 %v2004, %v2056
      %v2058 = vpop.f32.mrf.mxu0
      %v2059 = vadd.f32 %v2006, %v2058
      %v2060 = vpop.f32.mrf.mxu0
      %v2061 = vadd.f32 %v2008, %v2060
      %v2062 = vpop.f32.mrf.mxu0
      %v2063 = vadd.f32 %v2010, %v2062
      %2064 = vdwg.mxu0
      %v2065 = vmax.f32 %v2047, 0.0
      %v2066 = vmax.f32 %v2049, 0.0
      %v2067 = vmax.f32 %v2051, 0.0
      %v2068 = vmax.f32 %v2053, 0.0
      %v2069 = vmax.f32 %v2057, 0.0
      %v2070 = vmax.f32 %v2059, 0.0
      %v2071 = vmax.f32 %v2061, 0.0
      %v2072 = vmax.f32 %v2063, 0.0
      %v2073 = vpack.c.bf16 %v2067, %v2065
      %v2074 = vpack.c.bf16 %v2068, %v2066
      %v2075 = vpack.c.bf16 %v2071, %v2069
      %v2076 = vpack.c.bf16 %v2072, %v2070
      %2077 = vmatprep.subr.bf16.mxu0 0
      %2078 = vmatpush1.bf16.msra.mxu0 0
      %2079 = vmatprep.subr.bf16.mxu0 0
      %2080 = vmatpush1.bf16.msra.mxu0 0
      %2081 = vmatprep.subr.bf16.mxu0 0
      %2082 = vmatpush1.bf16.msra.mxu0 0
      %2083 = vmatprep.subr.bf16.mxu0 0
      %2084 = vmatpush1.bf16.msra.mxu0 0
      %2085 = vmatprep.subr.bf16.mxu0 0
      %2086 = vmatpush1.bf16.msra.mxu0 0
      %2087 = vmatprep.subr.bf16.mxu0 0
      %2088 = vmatpush1.bf16.msra.mxu0 0
      %2089 = vmatprep.subr.bf16.mxu0 0
      %2090 = vmatpush1.bf16.msra.mxu0 0
      %2091 = vmatprep.subr.bf16.mxu0 %v2074
      %2092 = vmatpush1.bf16.msra.mxu0 %v2073
      %2093 = vmatprep.subr.bf16.mxu0 0
      %2094 = vmatpush2.bf16.msra.mxu0 0
      %2095 = vmatprep.subr.bf16.mxu0 0
      %2096 = vmatpush2.bf16.msra.mxu0 0
      %2097 = vmatprep.subr.bf16.mxu0 0
      %2098 = vmatpush2.bf16.msra.mxu0 0
      %2099 = vmatprep.subr.bf16.mxu0 0
      %2100 = vmatpush2.bf16.msra.mxu0 0
      %2101 = vmatprep.subr.bf16.mxu0 0
      %2102 = vmatpush2.bf16.msra.mxu0 0
      %2103 = vmatprep.subr.bf16.mxu0 0
      %2104 = vmatpush2.bf16.msra.mxu0 0
      %2105 = vmatprep.subr.bf16.mxu0 0
      %2106 = vmatpush2.bf16.msra.mxu0 0
      %2107 = vmatprep.subr.bf16.mxu0 0
      %2108 = vmatpush2.bf16.msra.mxu0 0
      %2109 = vmatprep.mubr.bf16.mxu0 0
      %2110 = vmatmul.mubr.bf16.gmra.mxu0 %v631
      %v2111 = vpop.f32.mrf.mxu0
      %v2112 = vadd.f32 0.0, %v2111
      %v2113 = vpop.f32.mrf.mxu0
      %v2114 = vadd.f32 0.0, %v2113
      %v2115 = vpop.f32.mrf.mxu0
      %v2116 = vadd.f32 0.0, %v2115
      %v2117 = vpop.f32.mrf.mxu0
      %v2118 = vadd.f32 0.0, %v2117
      %2119 = vdwg.mxu0
      %2120 = vmatprep.subr.bf16.mxu0 0
      %2121 = vmatpush1.bf16.msra.mxu0 0
      %2122 = vmatprep.subr.bf16.mxu0 0
      %2123 = vmatpush1.bf16.msra.mxu0 0
      %2124 = vmatprep.subr.bf16.mxu0 0
      %2125 = vmatpush1.bf16.msra.mxu0 0
      %2126 = vmatprep.subr.bf16.mxu0 0
      %2127 = vmatpush1.bf16.msra.mxu0 0
      %2128 = vmatprep.subr.bf16.mxu0 0
      %2129 = vmatpush1.bf16.msra.mxu0 0
      %2130 = vmatprep.subr.bf16.mxu0 0
      %2131 = vmatpush1.bf16.msra.mxu0 0
      %2132 = vmatprep.subr.bf16.mxu0 0
      %2133 = vmatpush1.bf16.msra.mxu0 0
      %2134 = vmatprep.subr.bf16.mxu0 %v2076
      %2135 = vmatpush1.bf16.msra.mxu0 %v2075
      %2136 = vmatprep.subr.bf16.mxu0 0
      %2137 = vmatpush2.bf16.msra.mxu0 0
      %2138 = vmatprep.subr.bf16.mxu0 0
      %2139 = vmatpush2.bf16.msra.mxu0 0
      %2140 = vmatprep.subr.bf16.mxu0 0
      %2141 = vmatpush2.bf16.msra.mxu0 0
      %2142 = vmatprep.subr.bf16.mxu0 0
      %2143 = vmatpush2.bf16.msra.mxu0 0
      %2144 = vmatprep.subr.bf16.mxu0 0
      %2145 = vmatpush2.bf16.msra.mxu0 0
      %2146 = vmatprep.subr.bf16.mxu0 0
      %2147 = vmatpush2.bf16.msra.mxu0 0
      %2148 = vmatprep.subr.bf16.mxu0 0
      %2149 = vmatpush2.bf16.msra.mxu0 0
      %2150 = vmatprep.subr.bf16.mxu0 0
      %2151 = vmatpush2.bf16.msra.mxu0 0
      %2152 = vmatprep.mubr.bf16.mxu0 0
      %2153 = vmatmul.mubr.bf16.gmra.mxu0 %v675
      %v2154 = vpop.f32.mrf.mxu0
      %v2155 = vadd.f32 0.0, %v2154
      %v2156 = vpop.f32.mrf.mxu0
      %v2157 = vadd.f32 0.0, %v2156
      %v2158 = vpop.f32.mrf.mxu0
      %v2159 = vadd.f32 0.0, %v2158
      %v2160 = vpop.f32.mrf.mxu0
      %v2161 = vadd.f32 0.0, %v2160
      %2162 = vdwg.mxu0
      %v2163 = vpack.c.bf16 %v2116, %v2112
      %v2164 = vpack.c.bf16 %v2118, %v2114
      %v2165 = vpack.c.bf16 %v2159, %v2155
      %v2166 = vpack.c.bf16 %v2161, %v2157
      %v2167 = vld [vmem:[#allocation9] sm:$0xff]
      %v2168 = vld [vmem:[#allocation9 + $0x8] sm:$0xff]
      %v2169 = vld [vmem:[#allocation9 + $0x10] sm:$0xff]
      %v2170 = vld [vmem:[#allocation9 + $0x18] sm:$0xff]
      %v2171 = vld [vmem:[#allocation9 + $0x20] sm:$0xff]
      %v2172 = vld [vmem:[#allocation9 + $0x28] sm:$0xff]
      %v2173 = vld [vmem:[#allocation9 + $0x30] sm:$0xff]
      %v2174 = vld [vmem:[#allocation9 + $0x38] sm:$0xff]
      %v2175 = vld [vmem:[#allocation9 + $0x40] sm:$0xff]
      %v2176 = vld [vmem:[#allocation9 + $0x48] sm:$0xff]
      %v2177 = vld [vmem:[#allocation9 + $0x50] sm:$0xff]
      %v2178 = vld [vmem:[#allocation9 + $0x58] sm:$0xff]
      %v2179 = vld [vmem:[#allocation9 + $0x60] sm:$0xff]
      %v2180 = vld [vmem:[#allocation9 + $0x68] sm:$0xff]
      %v2181 = vld [vmem:[#allocation9 + $0x70] sm:$0xff]
      %v2182 = vld [vmem:[#allocation9 + $0x78] sm:$0xff]
      %v2183 = vld [vmem:[#allocation9 + $0x80] sm:$0xff]
      %v2184 = vld [vmem:[#allocation9 + $0x88] sm:$0xff]
      %v2185 = vld [vmem:[#allocation9 + $0x90] sm:$0xff]
      %v2186 = vld [vmem:[#allocation9 + $0x98] sm:$0xff]
      %v2187 = vld [vmem:[#allocation9 + $0xa0] sm:$0xff]
      %v2188 = vld [vmem:[#allocation9 + $0xa8] sm:$0xff]
      %v2189 = vld [vmem:[#allocation9 + $0xb0] sm:$0xff]
      %v2190 = vld [vmem:[#allocation9 + $0xb8] sm:$0xff]
      %v2191 = vld [vmem:[#allocation9 + $0xc0] sm:$0xff]
      %v2192 = vld [vmem:[#allocation9 + $0xc8] sm:$0xff]
      %v2193 = vld [vmem:[#allocation9 + $0xd0] sm:$0xff]
      %v2194 = vld [vmem:[#allocation9 + $0xd8] sm:$0xff]
      %v2195 = vld [vmem:[#allocation9 + $0xe0] sm:$0xff]
      %v2196 = vld [vmem:[#allocation9 + $0xe8] sm:$0xff]
      %v2197 = vld [vmem:[#allocation9 + $0xf0] sm:$0xff]
      %v2198 = vld [vmem:[#allocation9 + $0xf8] sm:$0xff]
      %v2199 = vld [vmem:[#allocation9 + $0x100] sm:$0xff]
      %v2200 = vld [vmem:[#allocation9 + $0x108] sm:$0xff]
      %v2201 = vld [vmem:[#allocation9 + $0x110] sm:$0xff]
      %v2202 = vld [vmem:[#allocation9 + $0x118] sm:$0xff]
      %v2203 = vld [vmem:[#allocation9 + $0x120] sm:$0xff]
      %v2204 = vld [vmem:[#allocation9 + $0x128] sm:$0xff]
      %v2205 = vld [vmem:[#allocation9 + $0x130] sm:$0xff]
      %v2206 = vld [vmem:[#allocation9 + $0x138] sm:$0xff]
      %v2207 = vld [vmem:[#allocation9 + $0x140] sm:$0xff]
      %v2208 = vld [vmem:[#allocation9 + $0x148] sm:$0xff]
      %v2209 = vld [vmem:[#allocation9 + $0x150] sm:$0xff]
      %v2210 = vld [vmem:[#allocation9 + $0x158] sm:$0xff]
      %v2211 = vld [vmem:[#allocation9 + $0x160] sm:$0xff]
      %v2212 = vld [vmem:[#allocation9 + $0x168] sm:$0xff]
      %v2213 = vld [vmem:[#allocation9 + $0x170] sm:$0xff]
      %v2214 = vld [vmem:[#allocation9 + $0x178] sm:$0xff]
      %v2215 = vld [vmem:[#allocation9 + $0x180] sm:$0xff]
      %v2216 = vld [vmem:[#allocation9 + $0x188] sm:$0xff]
      %v2217 = vld [vmem:[#allocation9 + $0x190] sm:$0xff]
      %v2218 = vld [vmem:[#allocation9 + $0x198] sm:$0xff]
      %v2219 = vld [vmem:[#allocation9 + $0x1a0] sm:$0xff]
      %v2220 = vld [vmem:[#allocation9 + $0x1a8] sm:$0xff]
      %v2221 = vld [vmem:[#allocation9 + $0x1b0] sm:$0xff]
      %v2222 = vld [vmem:[#allocation9 + $0x1b8] sm:$0xff]
      %v2223 = vld [vmem:[#allocation9 + $0x1c0] sm:$0xff]
      %v2224 = vld [vmem:[#allocation9 + $0x1c8] sm:$0xff]
      %v2225 = vld [vmem:[#allocation9 + $0x1d0] sm:$0xff]
      %v2226 = vld [vmem:[#allocation9 + $0x1d8] sm:$0xff]
      %v2227 = vld [vmem:[#allocation9 + $0x1e0] sm:$0xff]
      %v2228 = vld [vmem:[#allocation9 + $0x1e8] sm:$0xff]
      %v2229 = vld [vmem:[#allocation9 + $0x1f0] sm:$0xff]
      %v2230 = vld [vmem:[#allocation9 + $0x1f8] sm:$0xff]
      %v2231 = vld [vmem:[#allocation9 + $0x200] sm:$0xff]
      %v2232 = vld [vmem:[#allocation9 + $0x208] sm:$0xff]
      %v2233 = vld [vmem:[#allocation9 + $0x210] sm:$0xff]
      %v2234 = vld [vmem:[#allocation9 + $0x218] sm:$0xff]
      %v2235 = vld [vmem:[#allocation9 + $0x220] sm:$0xff]
      %v2236 = vld [vmem:[#allocation9 + $0x228] sm:$0xff]
      %v2237 = vld [vmem:[#allocation9 + $0x230] sm:$0xff]
      %v2238 = vld [vmem:[#allocation9 + $0x238] sm:$0xff]
      %v2239 = vld [vmem:[#allocation9 + $0x240] sm:$0xff]
      %v2240 = vld [vmem:[#allocation9 + $0x248] sm:$0xff]
      %v2241 = vld [vmem:[#allocation9 + $0x250] sm:$0xff]
      %v2242 = vld [vmem:[#allocation9 + $0x258] sm:$0xff]
      %v2243 = vld [vmem:[#allocation9 + $0x260] sm:$0xff]
      %v2244 = vld [vmem:[#allocation9 + $0x268] sm:$0xff]
      %v2245 = vld [vmem:[#allocation9 + $0x270] sm:$0xff]
      %v2246 = vld [vmem:[#allocation9 + $0x278] sm:$0xff]
      %v2247 = vld [vmem:[#allocation9 + $0x280] sm:$0xff]
      %v2248 = vld [vmem:[#allocation9 + $0x288] sm:$0xff]
      %v2249 = vld [vmem:[#allocation9 + $0x290] sm:$0xff]
      %v2250 = vld [vmem:[#allocation9 + $0x298] sm:$0xff]
      %v2251 = vld [vmem:[#allocation9 + $0x2a0] sm:$0xff]
      %v2252 = vld [vmem:[#allocation9 + $0x2a8] sm:$0xff]
      %v2253 = vld [vmem:[#allocation9 + $0x2b0] sm:$0xff]
      %v2254 = vld [vmem:[#allocation9 + $0x2b8] sm:$0xff]
      %v2255 = vld [vmem:[#allocation9 + $0x2c0] sm:$0xff]
      %v2256 = vld [vmem:[#allocation9 + $0x2c8] sm:$0xff]
      %v2257 = vld [vmem:[#allocation9 + $0x2d0] sm:$0xff]
      %v2258 = vld [vmem:[#allocation9 + $0x2d8] sm:$0xff]
      %v2259 = vld [vmem:[#allocation9 + $0x2e0] sm:$0xff]
      %v2260 = vld [vmem:[#allocation9 + $0x2e8] sm:$0xff]
      %v2261 = vld [vmem:[#allocation9 + $0x2f0] sm:$0xff]
      %v2262 = vld [vmem:[#allocation9 + $0x2f8] sm:$0xff]
      %v2263 = vld [vmem:[#allocation9 + $0x300] sm:$0xff]
      %v2264 = vld [vmem:[#allocation9 + $0x308] sm:$0xff]
      %v2265 = vld [vmem:[#allocation9 + $0x310] sm:$0xff]
      %v2266 = vld [vmem:[#allocation9 + $0x318] sm:$0xff]
      %v2267 = vld [vmem:[#allocation9 + $0x320] sm:$0xff]
      %v2268 = vld [vmem:[#allocation9 + $0x328] sm:$0xff]
      %v2269 = vld [vmem:[#allocation9 + $0x330] sm:$0xff]
      %v2270 = vld [vmem:[#allocation9 + $0x338] sm:$0xff]
      %v2271 = vld [vmem:[#allocation9 + $0x340] sm:$0xff]
      %v2272 = vld [vmem:[#allocation9 + $0x348] sm:$0xff]
      %v2273 = vld [vmem:[#allocation9 + $0x350] sm:$0xff]
      %v2274 = vld [vmem:[#allocation9 + $0x358] sm:$0xff]
      %v2275 = vld [vmem:[#allocation9 + $0x360] sm:$0xff]
      %v2276 = vld [vmem:[#allocation9 + $0x368] sm:$0xff]
      %v2277 = vld [vmem:[#allocation9 + $0x370] sm:$0xff]
      %v2278 = vld [vmem:[#allocation9 + $0x378] sm:$0xff]
      %v2279 = vld [vmem:[#allocation9 + $0x380] sm:$0xff]
      %v2280 = vld [vmem:[#allocation9 + $0x388] sm:$0xff]
      %v2281 = vld [vmem:[#allocation9 + $0x390] sm:$0xff]
      %v2282 = vld [vmem:[#allocation9 + $0x398] sm:$0xff]
      %v2283 = vld [vmem:[#allocation9 + $0x3a0] sm:$0xff]
      %v2284 = vld [vmem:[#allocation9 + $0x3a8] sm:$0xff]
      %v2285 = vld [vmem:[#allocation9 + $0x3b0] sm:$0xff]
      %v2286 = vld [vmem:[#allocation9 + $0x3b8] sm:$0xff]
      %v2287 = vld [vmem:[#allocation9 + $0x3c0] sm:$0xff]
      %v2288 = vld [vmem:[#allocation9 + $0x3c8] sm:$0xff]
      %v2289 = vld [vmem:[#allocation9 + $0x3d0] sm:$0xff]
      %v2290 = vld [vmem:[#allocation9 + $0x3d8] sm:$0xff]
      %v2291 = vld [vmem:[#allocation9 + $0x3e0] sm:$0xff]
      %v2292 = vld [vmem:[#allocation9 + $0x3e8] sm:$0xff]
      %v2293 = vld [vmem:[#allocation9 + $0x3f0] sm:$0xff]
      %v2294 = vld [vmem:[#allocation9 + $0x3f8] sm:$0xff]
      %v2295 = vpack.c.bf16 %v2169, %v2167
      %v2296 = vpack.c.bf16 %v2170, %v2168
      %v2297 = vpack.c.bf16 %v2173, %v2171
      %v2298 = vpack.c.bf16 %v2174, %v2172
      %v2299 = vpack.c.bf16 %v2177, %v2175
      %v2300 = vpack.c.bf16 %v2178, %v2176
      %v2301 = vpack.c.bf16 %v2181, %v2179
      %v2302 = vpack.c.bf16 %v2182, %v2180
      %v2303 = vpack.c.bf16 %v2185, %v2183
      %v2304 = vpack.c.bf16 %v2186, %v2184
      %v2305 = vpack.c.bf16 %v2189, %v2187
      %v2306 = vpack.c.bf16 %v2190, %v2188
      %v2307 = vpack.c.bf16 %v2193, %v2191
      %v2308 = vpack.c.bf16 %v2194, %v2192
      %v2309 = vpack.c.bf16 %v2197, %v2195
      %v2310 = vpack.c.bf16 %v2198, %v2196
      %v2311 = vpack.c.bf16 %v2201, %v2199
      %v2312 = vpack.c.bf16 %v2202, %v2200
      %v2313 = vpack.c.bf16 %v2205, %v2203
      %v2314 = vpack.c.bf16 %v2206, %v2204
      %v2315 = vpack.c.bf16 %v2209, %v2207
      %v2316 = vpack.c.bf16 %v2210, %v2208
      %v2317 = vpack.c.bf16 %v2213, %v2211
      %v2318 = vpack.c.bf16 %v2214, %v2212
      %v2319 = vpack.c.bf16 %v2217, %v2215
      %v2320 = vpack.c.bf16 %v2218, %v2216
      %v2321 = vpack.c.bf16 %v2221, %v2219
      %v2322 = vpack.c.bf16 %v2222, %v2220
      %v2323 = vpack.c.bf16 %v2225, %v2223
      %v2324 = vpack.c.bf16 %v2226, %v2224
      %v2325 = vpack.c.bf16 %v2229, %v2227
      %v2326 = vpack.c.bf16 %v2230, %v2228
      %v2327 = vpack.c.bf16 %v2233, %v2231
      %v2328 = vpack.c.bf16 %v2234, %v2232
      %v2329 = vpack.c.bf16 %v2237, %v2235
      %v2330 = vpack.c.bf16 %v2238, %v2236
      %v2331 = vpack.c.bf16 %v2241, %v2239
      %v2332 = vpack.c.bf16 %v2242, %v2240
      %v2333 = vpack.c.bf16 %v2245, %v2243
      %v2334 = vpack.c.bf16 %v2246, %v2244
      %v2335 = vpack.c.bf16 %v2249, %v2247
      %v2336 = vpack.c.bf16 %v2250, %v2248
      %v2337 = vpack.c.bf16 %v2253, %v2251
      %v2338 = vpack.c.bf16 %v2254, %v2252
      %v2339 = vpack.c.bf16 %v2257, %v2255
      %v2340 = vpack.c.bf16 %v2258, %v2256
      %v2341 = vpack.c.bf16 %v2261, %v2259
      %v2342 = vpack.c.bf16 %v2262, %v2260
      %v2343 = vpack.c.bf16 %v2265, %v2263
      %v2344 = vpack.c.bf16 %v2266, %v2264
      %v2345 = vpack.c.bf16 %v2269, %v2267
      %v2346 = vpack.c.bf16 %v2270, %v2268
      %v2347 = vpack.c.bf16 %v2273, %v2271
      %v2348 = vpack.c.bf16 %v2274, %v2272
      %v2349 = vpack.c.bf16 %v2277, %v2275
      %v2350 = vpack.c.bf16 %v2278, %v2276
      %v2351 = vpack.c.bf16 %v2281, %v2279
      %v2352 = vpack.c.bf16 %v2282, %v2280
      %v2353 = vpack.c.bf16 %v2285, %v2283
      %v2354 = vpack.c.bf16 %v2286, %v2284
      %v2355 = vpack.c.bf16 %v2289, %v2287
      %v2356 = vpack.c.bf16 %v2290, %v2288
      %v2357 = vpack.c.bf16 %v2293, %v2291
      %v2358 = vpack.c.bf16 %v2294, %v2292
      %v2359 = vld [vmem:[%s10] sm:$0x3]
      %v2361 = vlaneseq
      %v2362 = vshrl.u32 %v2361, 7
      %v2363 = vsub.s32 0, %v2362
      %v2364 = vrot.slane %v2359, %v2363
      %v2365 = vlaneseq
      %v2366 = vshrl.u32 %v2365, 7
      %v2367 = vsub.s32 1, %v2366
      %v2368 = vrot.slane %v2359, %v2367
      %2371 = vmatprep.subr.bf16.mxu0 %v2310
      %2372 = vmatpush1.bf16.msra.mxu0 %v2309
      %2373 = vmatprep.subr.bf16.mxu0 %v2308
      %2374 = vmatpush1.bf16.msra.mxu0 %v2307
      %2375 = vmatprep.subr.bf16.mxu0 %v2306
      %2376 = vmatpush1.bf16.msra.mxu0 %v2305
      %2377 = vmatprep.subr.bf16.mxu0 %v2304
      %2378 = vmatpush1.bf16.msra.mxu0 %v2303
      %2379 = vmatprep.subr.bf16.mxu0 %v2302
      %2380 = vmatpush1.bf16.msra.mxu0 %v2301
      %2381 = vmatprep.subr.bf16.mxu0 %v2300
      %2382 = vmatpush1.bf16.msra.mxu0 %v2299
      %2383 = vmatprep.subr.bf16.mxu0 %v2298
      %2384 = vmatpush1.bf16.msra.mxu0 %v2297
      %2385 = vmatprep.subr.bf16.mxu0 %v2296
      %2386 = vmatpush1.bf16.msra.mxu0 %v2295
      %2387 = vmatprep.subr.bf16.mxu0 %v2326
      %2388 = vmatpush2.bf16.msra.mxu0 %v2325
      %2389 = vmatprep.subr.bf16.mxu0 %v2324
      %2390 = vmatpush2.bf16.msra.mxu0 %v2323
      %2391 = vmatprep.subr.bf16.mxu0 %v2322
      %2392 = vmatpush2.bf16.msra.mxu0 %v2321
      %2393 = vmatprep.subr.bf16.mxu0 %v2320
      %2394 = vmatpush2.bf16.msra.mxu0 %v2319
      %2395 = vmatprep.subr.bf16.mxu0 %v2318
      %2396 = vmatpush2.bf16.msra.mxu0 %v2317
      %2397 = vmatprep.subr.bf16.mxu0 %v2316
      %2398 = vmatpush2.bf16.msra.mxu0 %v2315
      %2399 = vmatprep.subr.bf16.mxu0 %v2314
      %2400 = vmatpush2.bf16.msra.mxu0 %v2313
      %2401 = vmatprep.subr.bf16.mxu0 %v2312
      %2402 = vmatpush2.bf16.msra.mxu0 %v2311
      %2403 = vmatprep.mubr.bf16.mxu0 %v2074
      %2404 = vmatmul.mubr.bf16.gmra.mxu0 %v2073
      %v2405 = vpop.f32.mrf.mxu0
      %v2406 = vadd.f32 %v2364, %v2405
      %v2407 = vpop.f32.mrf.mxu0
      %v2408 = vadd.f32 %v2368, %v2407
      %v2409 = vpop.f32.mrf.mxu0
      %v2410 = vadd.f32 %v2364, %v2409
      %v2411 = vpop.f32.mrf.mxu0
      %v2412 = vadd.f32 %v2368, %v2411
      %2413 = vmatprep.mubr.bf16.mxu0 %v2076
      %2414 = vmatmul.mubr.bf16.gmra.mxu0 %v2075
      %v2415 = vpop.f32.mrf.mxu0
      %v2416 = vadd.f32 %v2364, %v2415
      %v2417 = vpop.f32.mrf.mxu0
      %v2418 = vadd.f32 %v2368, %v2417
      %v2419 = vpop.f32.mrf.mxu0
      %v2420 = vadd.f32 %v2364, %v2419
      %v2421 = vpop.f32.mrf.mxu0
      %v2422 = vadd.f32 %v2368, %v2421
      %2423 = vdwg.mxu0
      %2424 = vmatprep.subr.bf16.mxu0 %v2342
      %2425 = vmatpush1.bf16.msra.mxu0 %v2341
      %2426 = vmatprep.subr.bf16.mxu0 %v2340
      %2427 = vmatpush1.bf16.msra.mxu0 %v2339
      %2428 = vmatprep.subr.bf16.mxu0 %v2338
      %2429 = vmatpush1.bf16.msra.mxu0 %v2337
      %2430 = vmatprep.subr.bf16.mxu0 %v2336
      %2431 = vmatpush1.bf16.msra.mxu0 %v2335
      %2432 = vmatprep.subr.bf16.mxu0 %v2334
      %2433 = vmatpush1.bf16.msra.mxu0 %v2333
      %2434 = vmatprep.subr.bf16.mxu0 %v2332
      %2435 = vmatpush1.bf16.msra.mxu0 %v2331
      %2436 = vmatprep.subr.bf16.mxu0 %v2330
      %2437 = vmatpush1.bf16.msra.mxu0 %v2329
      %2438 = vmatprep.subr.bf16.mxu0 %v2328
      %2439 = vmatpush1.bf16.msra.mxu0 %v2327
      %2440 = vmatprep.subr.bf16.mxu0 %v2358
      %2441 = vmatpush2.bf16.msra.mxu0 %v2357
      %2442 = vmatprep.subr.bf16.mxu0 %v2356
      %2443 = vmatpush2.bf16.msra.mxu0 %v2355
      %2444 = vmatprep.subr.bf16.mxu0 %v2354
      %2445 = vmatpush2.bf16.msra.mxu0 %v2353
      %2446 = vmatprep.subr.bf16.mxu0 %v2352
      %2447 = vmatpush2.bf16.msra.mxu0 %v2351
      %2448 = vmatprep.subr.bf16.mxu0 %v2350
      %2449 = vmatpush2.bf16.msra.mxu0 %v2349
      %2450 = vmatprep.subr.bf16.mxu0 %v2348
      %2451 = vmatpush2.bf16.msra.mxu0 %v2347
      %2452 = vmatprep.subr.bf16.mxu0 %v2346
      %2453 = vmatpush2.bf16.msra.mxu0 %v2345
      %2454 = vmatprep.subr.bf16.mxu0 %v2344
      %2455 = vmatpush2.bf16.msra.mxu0 %v2343
      %2456 = vmatprep.mubr.bf16.mxu0 %v2164
      %2457 = vmatmul.mubr.bf16.gmra.mxu0 %v2163
      %v2458 = vpop.f32.mrf.mxu0
      %v2459 = vadd.f32 %v2406, %v2458
      %v2460 = vpop.f32.mrf.mxu0
      %v2461 = vadd.f32 %v2408, %v2460
      %v2462 = vpop.f32.mrf.mxu0
      %v2463 = vadd.f32 %v2410, %v2462
      %v2464 = vpop.f32.mrf.mxu0
      %v2465 = vadd.f32 %v2412, %v2464
      %2466 = vmatprep.mubr.bf16.mxu0 %v2166
      %2467 = vmatmul.mubr.bf16.gmra.mxu0 %v2165
      %v2468 = vpop.f32.mrf.mxu0
      %v2469 = vadd.f32 %v2416, %v2468
      %v2470 = vpop.f32.mrf.mxu0
      %v2471 = vadd.f32 %v2418, %v2470
      %v2472 = vpop.f32.mrf.mxu0
      %v2473 = vadd.f32 %v2420, %v2472
      %v2474 = vpop.f32.mrf.mxu0
      %v2475 = vadd.f32 %v2422, %v2474
      %2476 = vdwg.mxu0
      %v2477 = vmax.f32 %v2459, 0.0
      %v2478 = vmax.f32 %v2461, 0.0
      %v2479 = vmax.f32 %v2463, 0.0
      %v2480 = vmax.f32 %v2465, 0.0
      %v2481 = vmax.f32 %v2469, 0.0
      %v2482 = vmax.f32 %v2471, 0.0
      %v2483 = vmax.f32 %v2473, 0.0
      %v2484 = vmax.f32 %v2475, 0.0
      %v2485 = vpack.c.bf16 %v2479, %v2477
      %v2486 = vpack.c.bf16 %v2480, %v2478
      %v2487 = vpack.c.bf16 %v2483, %v2481
      %v2488 = vpack.c.bf16 %v2484, %v2482
      %v2489 = vld [vmem:[#allocation11] sm:$0xff]
      %v2490 = vld [vmem:[#allocation11 + $0x8] sm:$0xff]
      %v2491 = vld [vmem:[#allocation11 + $0x10] sm:$0xff]
      %v2492 = vld [vmem:[#allocation11 + $0x18] sm:$0xff]
      %v2493 = vld [vmem:[#allocation11 + $0x20] sm:$0xff]
      %v2494 = vld [vmem:[#allocation11 + $0x28] sm:$0xff]
      %v2495 = vld [vmem:[#allocation11 + $0x30] sm:$0xff]
      %v2496 = vld [vmem:[#allocation11 + $0x38] sm:$0xff]
      %v2497 = vld [vmem:[#allocation11 + $0x40] sm:$0xff]
      %v2498 = vld [vmem:[#allocation11 + $0x48] sm:$0xff]
      %v2499 = vld [vmem:[#allocation11 + $0x50] sm:$0xff]
      %v2500 = vld [vmem:[#allocation11 + $0x58] sm:$0xff]
      %v2501 = vld [vmem:[#allocation11 + $0x60] sm:$0xff]
      %v2502 = vld [vmem:[#allocation11 + $0x68] sm:$0xff]
      %v2503 = vld [vmem:[#allocation11 + $0x70] sm:$0xff]
      %v2504 = vld [vmem:[#allocation11 + $0x78] sm:$0xff]
      %v2505 = vld [vmem:[#allocation11 + $0x80] sm:$0xff]
      %v2506 = vld [vmem:[#allocation11 + $0x88] sm:$0xff]
      %v2507 = vld [vmem:[#allocation11 + $0x90] sm:$0xff]
      %v2508 = vld [vmem:[#allocation11 + $0x98] sm:$0xff]
      %v2509 = vld [vmem:[#allocation11 + $0xa0] sm:$0xff]
      %v2510 = vld [vmem:[#allocation11 + $0xa8] sm:$0xff]
      %v2511 = vld [vmem:[#allocation11 + $0xb0] sm:$0xff]
      %v2512 = vld [vmem:[#allocation11 + $0xb8] sm:$0xff]
      %v2513 = vld [vmem:[#allocation11 + $0xc0] sm:$0xff]
      %v2514 = vld [vmem:[#allocation11 + $0xc8] sm:$0xff]
      %v2515 = vld [vmem:[#allocation11 + $0xd0] sm:$0xff]
      %v2516 = vld [vmem:[#allocation11 + $0xd8] sm:$0xff]
      %v2517 = vld [vmem:[#allocation11 + $0xe0] sm:$0xff]
      %v2518 = vld [vmem:[#allocation11 + $0xe8] sm:$0xff]
      %v2519 = vld [vmem:[#allocation11 + $0xf0] sm:$0xff]
      %v2520 = vld [vmem:[#allocation11 + $0xf8] sm:$0xff]
      %v2521 = vld [vmem:[#allocation11 + $0x100] sm:$0xff]
      %v2522 = vld [vmem:[#allocation11 + $0x108] sm:$0xff]
      %v2523 = vld [vmem:[#allocation11 + $0x110] sm:$0xff]
      %v2524 = vld [vmem:[#allocation11 + $0x118] sm:$0xff]
      %v2525 = vld [vmem:[#allocation11 + $0x120] sm:$0xff]
      %v2526 = vld [vmem:[#allocation11 + $0x128] sm:$0xff]
      %v2527 = vld [vmem:[#allocation11 + $0x130] sm:$0xff]
      %v2528 = vld [vmem:[#allocation11 + $0x138] sm:$0xff]
      %v2529 = vld [vmem:[#allocation11 + $0x140] sm:$0xff]
      %v2530 = vld [vmem:[#allocation11 + $0x148] sm:$0xff]
      %v2531 = vld [vmem:[#allocation11 + $0x150] sm:$0xff]
      %v2532 = vld [vmem:[#allocation11 + $0x158] sm:$0xff]
      %v2533 = vld [vmem:[#allocation11 + $0x160] sm:$0xff]
      %v2534 = vld [vmem:[#allocation11 + $0x168] sm:$0xff]
      %v2535 = vld [vmem:[#allocation11 + $0x170] sm:$0xff]
      %v2536 = vld [vmem:[#allocation11 + $0x178] sm:$0xff]
      %v2537 = vld [vmem:[#allocation11 + $0x180] sm:$0xff]
      %v2538 = vld [vmem:[#allocation11 + $0x188] sm:$0xff]
      %v2539 = vld [vmem:[#allocation11 + $0x190] sm:$0xff]
      %v2540 = vld [vmem:[#allocation11 + $0x198] sm:$0xff]
      %v2541 = vld [vmem:[#allocation11 + $0x1a0] sm:$0xff]
      %v2542 = vld [vmem:[#allocation11 + $0x1a8] sm:$0xff]
      %v2543 = vld [vmem:[#allocation11 + $0x1b0] sm:$0xff]
      %v2544 = vld [vmem:[#allocation11 + $0x1b8] sm:$0xff]
      %v2545 = vld [vmem:[#allocation11 + $0x1c0] sm:$0xff]
      %v2546 = vld [vmem:[#allocation11 + $0x1c8] sm:$0xff]
      %v2547 = vld [vmem:[#allocation11 + $0x1d0] sm:$0xff]
      %v2548 = vld [vmem:[#allocation11 + $0x1d8] sm:$0xff]
      %v2549 = vld [vmem:[#allocation11 + $0x1e0] sm:$0xff]
      %v2550 = vld [vmem:[#allocation11 + $0x1e8] sm:$0xff]
      %v2551 = vld [vmem:[#allocation11 + $0x1f0] sm:$0xff]
      %v2552 = vld [vmem:[#allocation11 + $0x1f8] sm:$0xff]
      %v2553 = vpack.c.bf16 %v2491, %v2489
      %v2554 = vpack.c.bf16 %v2492, %v2490
      %v2555 = vpack.c.bf16 %v2495, %v2493
      %v2556 = vpack.c.bf16 %v2496, %v2494
      %v2557 = vpack.c.bf16 %v2499, %v2497
      %v2558 = vpack.c.bf16 %v2500, %v2498
      %v2559 = vpack.c.bf16 %v2503, %v2501
      %v2560 = vpack.c.bf16 %v2504, %v2502
      %v2561 = vpack.c.bf16 %v2507, %v2505
      %v2562 = vpack.c.bf16 %v2508, %v2506
      %v2563 = vpack.c.bf16 %v2511, %v2509
      %v2564 = vpack.c.bf16 %v2512, %v2510
      %v2565 = vpack.c.bf16 %v2515, %v2513
      %v2566 = vpack.c.bf16 %v2516, %v2514
      %v2567 = vpack.c.bf16 %v2519, %v2517
      %v2568 = vpack.c.bf16 %v2520, %v2518
      %v2569 = vpack.c.bf16 %v2523, %v2521
      %v2570 = vpack.c.bf16 %v2524, %v2522
      %v2571 = vpack.c.bf16 %v2527, %v2525
      %v2572 = vpack.c.bf16 %v2528, %v2526
      %v2573 = vpack.c.bf16 %v2531, %v2529
      %v2574 = vpack.c.bf16 %v2532, %v2530
      %v2575 = vpack.c.bf16 %v2535, %v2533
      %v2576 = vpack.c.bf16 %v2536, %v2534
      %v2577 = vpack.c.bf16 %v2539, %v2537
      %v2578 = vpack.c.bf16 %v2540, %v2538
      %v2579 = vpack.c.bf16 %v2543, %v2541
      %v2580 = vpack.c.bf16 %v2544, %v2542
      %v2581 = vpack.c.bf16 %v2547, %v2545
      %v2582 = vpack.c.bf16 %v2548, %v2546
      %v2583 = vpack.c.bf16 %v2551, %v2549
      %v2584 = vpack.c.bf16 %v2552, %v2550
      %v2585 = vld [vmem:[%s12] sm:$0x3]
      %v2587 = vlaneseq
      %v2588 = vshrl.u32 %v2587, 7
      %v2589 = vsub.s32 0, %v2588
      %v2590 = vrot.slane %v2585, %v2589
      %v2591 = vlaneseq
      %v2592 = vshrl.u32 %v2591, 7
      %v2593 = vsub.s32 1, %v2592
      %v2594 = vrot.slane %v2585, %v2593
      %2597 = vmatprep.subr.bf16.mxu0 %v2568
      %2598 = vmatpush1.bf16.msra.mxu0 %v2567
      %2599 = vmatprep.subr.bf16.mxu0 %v2566
      %2600 = vmatpush1.bf16.msra.mxu0 %v2565
      %2601 = vmatprep.subr.bf16.mxu0 %v2564
      %2602 = vmatpush1.bf16.msra.mxu0 %v2563
      %2603 = vmatprep.subr.bf16.mxu0 %v2562
      %2604 = vmatpush1.bf16.msra.mxu0 %v2561
      %2605 = vmatprep.subr.bf16.mxu0 %v2560
      %2606 = vmatpush1.bf16.msra.mxu0 %v2559
      %2607 = vmatprep.subr.bf16.mxu0 %v2558
      %2608 = vmatpush1.bf16.msra.mxu0 %v2557
      %2609 = vmatprep.subr.bf16.mxu0 %v2556
      %2610 = vmatpush1.bf16.msra.mxu0 %v2555
      %2611 = vmatprep.subr.bf16.mxu0 %v2554
      %2612 = vmatpush1.bf16.msra.mxu0 %v2553
      %2613 = vmatprep.subr.bf16.mxu0 %v2584
      %2614 = vmatpush2.bf16.msra.mxu0 %v2583
      %2615 = vmatprep.subr.bf16.mxu0 %v2582
      %2616 = vmatpush2.bf16.msra.mxu0 %v2581
      %2617 = vmatprep.subr.bf16.mxu0 %v2580
      %2618 = vmatpush2.bf16.msra.mxu0 %v2579
      %2619 = vmatprep.subr.bf16.mxu0 %v2578
      %2620 = vmatpush2.bf16.msra.mxu0 %v2577
      %2621 = vmatprep.subr.bf16.mxu0 %v2576
      %2622 = vmatpush2.bf16.msra.mxu0 %v2575
      %2623 = vmatprep.subr.bf16.mxu0 %v2574
      %2624 = vmatpush2.bf16.msra.mxu0 %v2573
      %2625 = vmatprep.subr.bf16.mxu0 %v2572
      %2626 = vmatpush2.bf16.msra.mxu0 %v2571
      %2627 = vmatprep.subr.bf16.mxu0 %v2570
      %2628 = vmatpush2.bf16.msra.mxu0 %v2569
      %2629 = vmatprep.mubr.bf16.mxu0 %v2486
      %2630 = vmatmul.mubr.bf16.gmra.mxu0 %v2485
      %v2631 = vpop.f32.mrf.mxu0
      %v2632 = vadd.f32 %v2590, %v2631
      %v2633 = vpop.f32.mrf.mxu0
      %v2634 = vadd.f32 %v2594, %v2633
      %v2635 = vpop.f32.mrf.mxu0
      %v2636 = vadd.f32 %v2590, %v2635
      %v2637 = vpop.f32.mrf.mxu0
      %v2638 = vadd.f32 %v2594, %v2637
      %2639 = vmatprep.mubr.bf16.mxu0 %v2488
      %2640 = vmatmul.mubr.bf16.gmra.mxu0 %v2487
      %v2641 = vpop.f32.mrf.mxu0
      %v2642 = vadd.f32 %v2590, %v2641
      %v2643 = vpop.f32.mrf.mxu0
      %v2644 = vadd.f32 %v2594, %v2643
      %v2645 = vpop.f32.mrf.mxu0
      %v2646 = vadd.f32 %v2590, %v2645
      %v2647 = vpop.f32.mrf.mxu0
      %v2648 = vadd.f32 %v2594, %v2647
      %2649 = vdwg.mxu0
      %vm2650 = vcmp.ge.f32.partialorder %v2632, 0.0
      %vm2651 = vcmp.ge.f32.partialorder %v2634, 0.0
      %vm2652 = vcmp.ge.f32.partialorder %v2636, 0.0
      %vm2653 = vcmp.ge.f32.partialorder %v2638, 0.0
      %vm2654 = vcmp.ge.f32.partialorder %v2642, 0.0
      %vm2655 = vcmp.ge.f32.partialorder %v2644, 0.0
      %vm2656 = vcmp.ge.f32.partialorder %v2646, 0.0
      %vm2657 = vcmp.ge.f32.partialorder %v2648, 0.0
      %v2658 = vld [vmem:[%s13] sm:$0x3]
      %v2660 = vlaneseq
      %v2661 = vshrl.u32 %v2660, 7
      %v2662 = vsub.s32 0, %v2661
      %v2663 = vrot.slane %v2658, %v2662
      %v2664 = vlaneseq
      %v2665 = vshrl.u32 %v2664, 7
      %v2666 = vsub.s32 1, %v2665
      %v2667 = vrot.slane %v2658, %v2666
      %v2670 = vmul.f32 %v2663, %v2632
      %v2671 = vmul.f32 %v2667, %v2634
      %v2672 = vmul.f32 %v2663, %v2636
      %v2673 = vmul.f32 %v2667, %v2638
      %v2674 = vmul.f32 %v2663, %v2642
      %v2675 = vmul.f32 %v2667, %v2644
      %v2676 = vmul.f32 %v2663, %v2646
      %v2677 = vmul.f32 %v2667, %v2648
      %v2678 = vsel %vm2650, %v2632, %v2670
      %v2679 = vsel %vm2651, %v2634, %v2671
      %v2680 = vsel %vm2652, %v2636, %v2672
      %v2681 = vsel %vm2653, %v2638, %v2673
      %v2682 = vsel %vm2654, %v2642, %v2674
      %v2683 = vsel %vm2655, %v2644, %v2675
      %v2684 = vsel %vm2656, %v2646, %v2676
      %v2685 = vsel %vm2657, %v2648, %v2677
      %v2686 = vpack.c.bf16 %v2680, %v2678
      %v2687 = vpack.c.bf16 %v2681, %v2679
      %v2688 = vpack.c.bf16 %v2684, %v2682
      %v2689 = vpack.c.bf16 %v2685, %v2683
      %v2690 = vld [vmem:[%s14] sm:$0xff]
      %v2691 = vld [vmem:[%s14 + $0x8] sm:$0xff]
      %v2692 = vld [vmem:[%s14 + $0x10] sm:$0xff]
      %v2693 = vld [vmem:[%s14 + $0x18] sm:$0xff]
      %v2694 = vld [vmem:[%s14 + $0x20] sm:$0xff]
      %v2695 = vld [vmem:[%s14 + $0x28] sm:$0xff]
      %v2696 = vld [vmem:[%s14 + $0x30] sm:$0xff]
      %v2697 = vld [vmem:[%s14 + $0x38] sm:$0xff]
      %v2698 = vld [vmem:[%s14 + $0x40] sm:$0xff]
      %v2699 = vld [vmem:[%s14 + $0x48] sm:$0xff]
      %v2700 = vld [vmem:[%s14 + $0x50] sm:$0xff]
      %v2701 = vld [vmem:[%s14 + $0x58] sm:$0xff]
      %v2702 = vld [vmem:[%s14 + $0x60] sm:$0xff]
      %v2703 = vld [vmem:[%s14 + $0x68] sm:$0xff]
      %v2704 = vld [vmem:[%s14 + $0x70] sm:$0xff]
      %v2705 = vld [vmem:[%s14 + $0x78] sm:$0xff]
      %v2706 = vld [vmem:[%s14 + $0x80] sm:$0xff]
      %v2707 = vld [vmem:[%s14 + $0x88] sm:$0xff]
      %v2708 = vld [vmem:[%s14 + $0x90] sm:$0xff]
      %v2709 = vld [vmem:[%s14 + $0x98] sm:$0xff]
      %v2710 = vld [vmem:[%s14 + $0xa0] sm:$0xff]
      %v2711 = vld [vmem:[%s14 + $0xa8] sm:$0xff]
      %v2712 = vld [vmem:[%s14 + $0xb0] sm:$0xff]
      %v2713 = vld [vmem:[%s14 + $0xb8] sm:$0xff]
      %v2714 = vld [vmem:[%s14 + $0xc0] sm:$0xff]
      %v2715 = vld [vmem:[%s14 + $0xc8] sm:$0xff]
      %v2716 = vld [vmem:[%s14 + $0xd0] sm:$0xff]
      %v2717 = vld [vmem:[%s14 + $0xd8] sm:$0xff]
      %v2718 = vld [vmem:[%s14 + $0xe0] sm:$0xff]
      %v2719 = vld [vmem:[%s14 + $0xe8] sm:$0xff]
      %v2720 = vld [vmem:[%s14 + $0xf0] sm:$0xff]
      %v2721 = vld [vmem:[%s14 + $0xf8] sm:$0xff]
      %v2722 = vpack.c.bf16 %v2691, %v2690
      %v2723 = vpack.c.bf16 %v2693, %v2692
      %v2724 = vpack.c.bf16 %v2695, %v2694
      %v2725 = vpack.c.bf16 %v2697, %v2696
      %v2726 = vpack.c.bf16 %v2699, %v2698
      %v2727 = vpack.c.bf16 %v2701, %v2700
      %v2728 = vpack.c.bf16 %v2703, %v2702
      %v2729 = vpack.c.bf16 %v2705, %v2704
      %v2730 = vpack.c.bf16 %v2707, %v2706
      %v2731 = vpack.c.bf16 %v2709, %v2708
      %v2732 = vpack.c.bf16 %v2711, %v2710
      %v2733 = vpack.c.bf16 %v2713, %v2712
      %v2734 = vpack.c.bf16 %v2715, %v2714
      %v2735 = vpack.c.bf16 %v2717, %v2716
      %v2736 = vpack.c.bf16 %v2719, %v2718
      %v2737 = vpack.c.bf16 %v2721, %v2720
      %v2738 = vld [vmem:[#allocation12] sm:$0x1]
      %v2740 = vlaneseq
      %v2741 = vshrl.u32 %v2740, 7
      %v2742 = vsub.s32 0, %v2741
      %v2743 = vrot.slane %v2738, %v2742
      %2745 = vmatprep.subr.bf16.mxu0 0
      %2746 = vmatpush1.bf16.msra.mxu0 %v2729
      %2747 = vmatprep.subr.bf16.mxu0 0
      %2748 = vmatpush1.bf16.msra.mxu0 %v2728
      %2749 = vmatprep.subr.bf16.mxu0 0
      %2750 = vmatpush1.bf16.msra.mxu0 %v2727
      %2751 = vmatprep.subr.bf16.mxu0 0
      %2752 = vmatpush1.bf16.msra.mxu0 %v2726
      %2753 = vmatprep.subr.bf16.mxu0 0
      %2754 = vmatpush1.bf16.msra.mxu0 %v2725
      %2755 = vmatprep.subr.bf16.mxu0 0
      %2756 = vmatpush1.bf16.msra.mxu0 %v2724
      %2757 = vmatprep.subr.bf16.mxu0 0
      %2758 = vmatpush1.bf16.msra.mxu0 %v2723
      %2759 = vmatprep.subr.bf16.mxu0 0
      %2760 = vmatpush1.bf16.msra.mxu0 %v2722
      %2761 = vmatprep.subr.bf16.mxu0 0
      %2762 = vmatpush2.bf16.msra.mxu0 %v2737
      %2763 = vmatprep.subr.bf16.mxu0 0
      %2764 = vmatpush2.bf16.msra.mxu0 %v2736
      %2765 = vmatprep.subr.bf16.mxu0 0
      %2766 = vmatpush2.bf16.msra.mxu0 %v2735
      %2767 = vmatprep.subr.bf16.mxu0 0
      %2768 = vmatpush2.bf16.msra.mxu0 %v2734
      %2769 = vmatprep.subr.bf16.mxu0 0
      %2770 = vmatpush2.bf16.msra.mxu0 %v2733
      %2771 = vmatprep.subr.bf16.mxu0 0
      %2772 = vmatpush2.bf16.msra.mxu0 %v2732
      %2773 = vmatprep.subr.bf16.mxu0 0
      %2774 = vmatpush2.bf16.msra.mxu0 %v2731
      %2775 = vmatprep.subr.bf16.mxu0 0
      %2776 = vmatpush2.bf16.msra.mxu0 %v2730
      %2777 = vmatprep.mubr.bf16.mxu0 %v2687
      %2778 = vmatmul.mubr.bf16.gmra.mxu0 %v2686
      %v2779 = vpop.f32.mrf.mxu0
      %v2780 = vadd.f32 %v2743, %v2779
      %v2781 = vpop.f32.mrf.mxu0
      %v2782 = vpop.f32.mrf.mxu0
      %v2783 = vadd.f32 %v2743, %v2782
      %v2784 = vpop.f32.mrf.mxu0
      %2785 = vmatprep.mubr.bf16.mxu0 %v2689
      %2786 = vmatmul.mubr.bf16.gmra.mxu0 %v2688
      %v2787 = vpop.f32.mrf.mxu0
      %v2788 = vadd.f32 %v2743, %v2787
      %v2789 = vpop.f32.mrf.mxu0
      %v2790 = vpop.f32.mrf.mxu0
      %v2791 = vadd.f32 %v2743, %v2790
      %v2792 = vpop.f32.mrf.mxu0
      %2793 = vdwg.mxu0
      %2794 = vmax.xlane.f32.xlu0 %v2780
      %v2795 = vpop.xlane.xlu0 %2794
      %2796 = vmax.xlane.f32.xlu0 %v2783
      %v2797 = vpop.xlane.xlu0 %2796
      %2798 = vmax.xlane.f32.xlu0 %v2788
      %v2799 = vpop.xlane.xlu0 %2798
      %2800 = vmax.xlane.f32.xlu0 %v2791
      %v2801 = vpop.xlane.xlu0 %2800
      %v2802 = vsub.f32 %v2780, %v2795
      %v2803 = vsub.f32 %v2783, %v2797
      %v2804 = vsub.f32 %v2788, %v2799
      %v2805 = vsub.f32 %v2791, %v2801
      %v2806 = vmul.f32 %v2802, 1.442695
      %v2807 = vpow.pop %v2806
      %v2808 = vmul.f32 %v2803, 1.442695
      %v2809 = vpow.pop %v2808
      %v2810 = vmul.f32 %v2804, 1.442695
      %v2811 = vpow.pop %v2810
      %v2812 = vmul.f32 %v2805, 1.442695
      %v2813 = vpow.pop %v2812
      %2814 = vadd.xlane.f32.xlu0 %v2807
      %v2815 = vpop.xlane.xlu0 %2814
      %2816 = vadd.xlane.f32.xlu0 %v2809
      %v2817 = vpop.xlane.xlu0 %2816
      %2818 = vadd.xlane.f32.xlu0 %v2811
      %v2819 = vpop.xlane.xlu0 %2818
      %2820 = vadd.xlane.f32.xlu0 %v2813
      %v2821 = vpop.xlane.xlu0 %2820
      %v2822 = vrcp.pop %v2815
      %v2823 = vrcp.pop %v2817
      %v2824 = vrcp.pop %v2819
      %v2825 = vrcp.pop %v2821
      %v2826 = vmul.f32 %v2807, %v2822
      %v2827 = vmul.f32 %v2809, %v2823
      %v2828 = vmul.f32 %v2811, %v2824
      %v2829 = vmul.f32 %v2813, %v2825
      %2830 = vst [vmem:[#allocation14] sm:$0xff] %v2826
      %2831 = vst [vmem:[#allocation14 + $0x8] sm:$0xff] %v2827
      %2832 = vst [vmem:[#allocation14 + $0x10] sm:$0xff] %v2828
      %2833 = vst [vmem:[#allocation14 + $0x18] sm:$0xff] %v2829
    $region97: #{tpu_custom_call.1} parent=1 // pred_fallthru
      _
    // Predicated region
    $region98: #{tpu_custom_call.1} parent=1 // pred_check
      _
    $region99: #{tpu_custom_call.1} parent=1 // pred_check_branch
      %2835 = sbr.rel (0) target = $region101
    $region100: #{tpu_custom_call.1} parent=1 // pred_region
      %s2837 = ssub.s32 512, 512
      %2838 = vsyncadd [#allocation5], %s2837
      %s2839 = sshll.u32 [#allocation14], 4
      %s2840 = int_to_ptr.vmem [resolvable:$true] %s2839
      %2845 = dma.vmem_to_hbm [thread:$0]  %s2840, 512, %s16, [#allocation5], 128, 128, 8
    $region101: #{tpu_custom_call.1} parent=1 // pred_fallthru
      _
    // Predicated region
    $region102: #{tpu_custom_call.1} parent=1 // pred_check
      _
    $region103: #{tpu_custom_call.1} parent=1 // pred_check_branch
      %2847 = sbr.rel (0) target = $region105
    $region104: #{tpu_custom_call.1} parent=1 // pred_region
      %2848 = dma.done [#allocation5], 512
    $region105: #{tpu_custom_call.1} parent=1 // pred_fallthru
      _
    %2849 = vsyncpa [#allocation4], 1
    %2850 = vsyncpa [#allocation7], 1
    %2851 = vsyncpa [#allocation10], 1
    %2852 = vsyncpa [#allocation13], 1
    %2853 = vsyncpa [#allocation5], 1

</llo_original>
